<compile_context>
chip_gen: v7x
topology: tpu7x:2x2x1
jax: 0.10.0
libtpu: 0.0.40
codegen_flags: <defaults>
</compile_context>

<pallas_src>
import functools

import numpy as np

import jax
import jax.numpy as jnp
from jax.experimental import pallas as pl
from jax.experimental.pallas import tpu as pltpu

BN_EPS = 1e-5


def _round_up(x, m):
    return (x + m - 1) // m * m


def _resblock_kernel(x_ref, mask_ref, w1_ref, w2_ref, shift_ref, out_ref,
                     h_ref, *, wp):
    # x_ref    : (R, C)   flattened zero-padded input rows for this batch block
    #                     (row n*Q + Y*wp + X  <->  padded pixel (Y, X) of image n)
    # mask_ref : (R, 1)   1.0 on interior rows of the padded grid, else 0.0
    # w1_ref   : (9*C, C) conv1 weights * bn1 scale, rows ordered (ky, kx, cin)
    # w2_ref   : (9*C, C) conv2 weights * bn2 scale
    # shift_ref: (2, C)   rows = [bn1 shift, bn2 shift] (folded eval-mode BN)
    # out_ref  : (Lg, C)  conv output rows ("top-left of 3x3 window" convention)
    # h_ref    : (R, C)   VMEM scratch: padded-grid ReLU(BN1(conv1))
    lg = out_ref.shape[0]
    r = x_ref.shape[0]
    cc = x_ref.shape[1]

    def conv3x3(src_ref, w_ref):
        # 9 shifted row-slices @ (C, C) weight slabs, accumulated in f32.
        acc = jnp.zeros((lg, cc), jnp.float32)
        for ky in range(3):
            for kx in range(3):
                off = ky * wp + kx
                wrow = (ky * 3 + kx) * cc
                acc = acc + jnp.dot(src_ref[off:off + lg, :],
                                    w_ref[wrow:wrow + cc, :],
                                    preferred_element_type=jnp.float32)
        return acc

    # ---- conv1 (bn1 scale pre-folded into w1) -> +shift -> relu ------------
    h = jnp.maximum(conv3x3(x_ref, w1_ref) + shift_ref[0:1, :], 0.0)

    # ---- re-embed h on the padded grid (single write per scratch row) ------
    # shift by (wp + 1) rows (top-left -> center); interior rows keep h,
    # border / alignment rows become zero via the mask; only the small
    # top/bottom halos need an explicit zero store.
    h_ref[0:wp + 1, :] = jnp.zeros((wp + 1, cc), jnp.float32)
    h_ref[wp + 1:wp + 1 + lg, :] = h * mask_ref[wp + 1:wp + 1 + lg, :]
    h_ref[wp + 1 + lg:r, :] = jnp.zeros((r - wp - 1 - lg, cc), jnp.float32)

    # ---- conv2 (bn2 scale pre-folded) -> +shift -> +residual -> relu -------
    out = (conv3x3(h_ref, w2_ref) + shift_ref[1:2, :]
           + x_ref[wp + 1:wp + 1 + lg, :])
    out_ref[...] = jnp.maximum(out, 0.0)


def _default_batch_block(n):
    # v7x has 2 TensorCores/chip: keep a batch grid so "parallel" shards it.
    # v5e / v6e are single-TC: fold the whole batch into the matmul M dim.
    try:
        kind = jax.devices()[0].device_kind.lower()
    except Exception:
        return n
    if "v7" in kind or "7x" in kind:
        return 1 if n > 1 else n
    return n


@functools.partial(jax.jit, static_argnames=("batch_block",))
def resblock_pallas(x_nchw, w1_oihw, w2_oihw,
                    g1, b1, m1, v1, g2, b2, m2, v2, batch_block=None):
    N, C, H, W = x_nchw.shape
    Cout = w1_oihw.shape[0]
    assert C == Cout, "ResBlock residual add requires inplanes == planes"

    nb = batch_block if batch_block is not None else _default_batch_block(N)
    if N % nb != 0:
        nb = 1
    G = N // nb

    Hp, Wp = H + 2, W + 2
    P = Hp * Wp                                   # padded pixels per image
    pad_rows = _round_up(2 * Wp + 2, 8)           # halo rows per grid step
    Q = max(_round_up(P, 8),                      # per-image row chunk (8-aligned)
            _round_up((H - 1) * Wp + W + pad_rows, 8))
    R = nb * Q                                    # input rows per grid step
    Lg = R - pad_rows                             # computed conv rows per step

    # ---- layout glue (plain XLA): NCHW -> flattened padded rows ------------
    x_nhwc = jnp.transpose(x_nchw, (0, 2, 3, 1)).astype(jnp.float32)
    xp = jnp.pad(x_nhwc, ((0, 0), (1, 1), (1, 1), (0, 0))).reshape(N, P, C)
    xp = jnp.pad(xp, ((0, 0), (0, Q - P), (0, 0))).reshape(N * Q, C)

    # interior-of-padded-grid mask (static constant, one lane wide)
    yy, xx = np.meshgrid(np.arange(Hp), np.arange(Wp), indexing="ij")
    interior = ((yy >= 1) & (yy <= H) & (xx >= 1) & (xx <= W)).reshape(-1)
    m_np = np.zeros((Q, 1), np.float32)
    m_np[:P, 0] = interior.astype(np.float32)
    mask = jnp.asarray(np.tile(m_np, (N, 1)))

    # Folded eval-mode BN: scale goes into the conv weight columns (computed
    # once on the small weight slabs), only the per-channel shift reaches the
    # kernel.
    s1 = (g1 / jnp.sqrt(v1 + BN_EPS)).astype(jnp.float32)
    s2 = (g2 / jnp.sqrt(v2 + BN_EPS)).astype(jnp.float32)
    sh1 = (b1 - m1 * s1).astype(jnp.float32)
    sh2 = (b2 - m2 * s2).astype(jnp.float32)

    # conv weights: OIHW -> HWIO -> (9*Cin, Cout), rows ordered (ky, kx, cin)
    w1 = jnp.transpose(w1_oihw, (2, 3, 1, 0)).astype(jnp.float32).reshape(9 * C, Cout)
    w2 = jnp.transpose(w2_oihw, (2, 3, 1, 0)).astype(jnp.float32).reshape(9 * Cout, Cout)
    w1 = w1 * s1[None, :]
    w2 = w2 * s2[None, :]
    shifts = jnp.stack([sh1, sh2], axis=0)        # (2, C)

    kernel = functools.partial(_resblock_kernel, wp=Wp)
    out_flat = pl.pallas_call(
        kernel,
        out_shape=jax.ShapeDtypeStruct((G * Lg, Cout), jnp.float32),
        grid_spec=pltpu.PrefetchScalarGridSpec(
            num_scalar_prefetch=0,
            grid=(G,),
            in_specs=[
                pl.BlockSpec((R, C), lambda i: (i, 0)),
                pl.BlockSpec((R, 1), lambda i: (i, 0)),
                pl.BlockSpec((9 * C, Cout), lambda i: (0, 0)),
                pl.BlockSpec((9 * Cout, Cout), lambda i: (0, 0)),
                pl.BlockSpec((2, Cout), lambda i: (0, 0)),
            ],
            out_specs=pl.BlockSpec((Lg, Cout), lambda i: (i, 0)),
            scratch_shapes=[pltpu.VMEM((R, Cout), jnp.float32)],
        ),
        compiler_params=pltpu.CompilerParams(
            dimension_semantics=("parallel",)),
    )(xp, mask, w1, w2, shifts)

    # ---- unpack padded-grid rows -> NCHW ------------------------------------
    out = out_flat.reshape(G, Lg, Cout)
    out = jnp.pad(out, ((0, 0), (0, nb * Q - Lg), (0, 0)))
    out = out.reshape(N, Q, Cout)[:, :P, :].reshape(N, Hp, Wp, Cout)[:, :H, :W, :]
    return jnp.transpose(out, (0, 3, 1, 2))  # back to NCHW


def resblock_reference(x, w1, w2, g1, b1, m1, v1, g2, b2, m2, v2):
    """Pure-JAX reference of the PyTorch forward (eval-mode BN)."""
    def conv(a, w):
        return jax.lax.conv_general_dilated(
            a, w, window_strides=(1, 1), padding="SAME",
            dimension_numbers=("NCHW", "OIHW", "NCHW"),
            precision=jax.lax.Precision.HIGHEST)

    def bn(a, g, b, m, v):
        g, b, m, v = (t.reshape(1, -1, 1, 1) for t in (g, b, m, v))
        return (a - m) / jnp.sqrt(v + BN_EPS) * g + b

    out = jax.nn.relu(bn(conv(x, w1), g1, b1, m1, v1))
    out = bn(conv(out, w2), g2, b2, m2, v2)
    return jax.nn.relu(out + x)


if __name__ == "__main__":
    # Module-default channel width (128) on the 7x7 board, small batch.
    N, C, H, W = 2, 128, 7, 7

    key = jax.random.PRNGKey(0)
    ks = jax.random.split(key, 10)
    x = jax.random.normal(ks[0], (N, C, H, W), jnp.float32)

    # Conv weights in PyTorch OIHW layout (bias=False).
    w1 = jax.random.normal(ks[1], (C, C, 3, 3), jnp.float32) * 0.05
    w2 = jax.random.normal(ks[2], (C, C, 3, 3), jnp.float32) * 0.05

    # BatchNorm parameters / running stats (deterministic, non-trivial).
    g1 = 1.0 + 0.1 * jax.random.normal(ks[3], (C,), jnp.float32)
    b1 = 0.1 * jax.random.normal(ks[4], (C,), jnp.float32)
    m1 = 0.1 * jax.random.normal(ks[5], (C,), jnp.float32)
    v1 = 1.0 + 0.1 * jnp.abs(jax.random.normal(ks[6], (C,), jnp.float32))
    g2 = 1.0 + 0.1 * jax.random.normal(ks[7], (C,), jnp.float32)
    b2 = 0.1 * jax.random.normal(ks[8], (C,), jnp.float32)
    m2 = 0.1 * jax.random.normal(ks[9], (C,), jnp.float32)
    v2 = 1.0 + 0.1 * jnp.abs(jax.random.normal(key, (C,), jnp.float32))

    ref = resblock_reference(x, w1, w2, g1, b1, m1, v1, g2, b2, m2, v2)

    # Default path: batch folded into M on v5e/v6e, batch grid on v7x.
    out = resblock_pallas(x, w1, w2, g1, b1, m1, v1, g2, b2, m2, v2)
    out = jax.block_until_ready(out)
    assert out.shape == (N, C, H, W)
    assert jnp.allclose(out, ref, atol=1e-3, rtol=1e-3), (
        float(jnp.max(jnp.abs(out - ref))))

    # Explicitly exercise both batching strategies regardless of chip.
    for nb in (1, N):
        o = resblock_pallas(x, w1, w2, g1, b1, m1, v1, g2, b2, m2, v2,
                            batch_block=nb)
        o = jax.block_until_ready(o)
        assert jnp.allclose(o, ref, atol=1e-3, rtol=1e-3), (
            nb, float(jnp.max(jnp.abs(o - ref))))

    print("KERNEL_OK")
</pallas_src>

<mosaic_0001>
module attributes {stable_mosaic.version = 11 : i64} {
  func.func @_resblock_kernel(%arg0: i32, %arg1: memref<176x128xf32, #tpu.memory_space<vmem>>, %arg2: memref<176x1xf32, #tpu.memory_space<vmem>>, %arg3: memref<1152x128xf32, #tpu.memory_space<vmem>>, %arg4: memref<1152x128xf32, #tpu.memory_space<vmem>>, %arg5: memref<2x128xf32, #tpu.memory_space<vmem>>, %arg6: memref<152x128xf32, #tpu.memory_space<vmem>>, %arg7: memref<176x128xf32, #tpu.memory_space<vmem>>) attributes {dimension_semantics = [#tpu.dimension_semantics<parallel>], iteration_bounds = array<i64: 1>, scalar_prefetch = 0 : i64, scratch_operands = 1 : i64, tpu.core_type = #tpu.core_type<tc>, window_params = [{transform_indices = @transform_0, window_bounds = array<i64: 176, 128>}, {transform_indices = @transform_1, window_bounds = array<i64: 176, 1>}, {pipeline_mode = #tpu.pipeline_mode<synchronous>, transform_indices = @transform_2, window_bounds = array<i64: 1152, 128>}, {pipeline_mode = #tpu.pipeline_mode<synchronous>, transform_indices = @transform_3, window_bounds = array<i64: 1152, 128>}, {pipeline_mode = #tpu.pipeline_mode<synchronous>, transform_indices = @transform_4, window_bounds = array<i64: 2, 128>}, {transform_indices = @transform_5, window_bounds = array<i64: 152, 128>}]} {
    %cst = arith.constant 0.000000e+00 : f32
    %0 = vector.broadcast %cst : f32 to vector<152x128xf32>
    %c0 = arith.constant 0 : index
    %c0_0 = arith.constant 0 : index
    %1 = vector.load %arg1[%c0, %c0_0] : memref<176x128xf32, #tpu.memory_space<vmem>>, vector<152x128xf32>
    %c0_1 = arith.constant 0 : index
    %c0_2 = arith.constant 0 : index
    %2 = vector.load %arg3[%c0_1, %c0_2] : memref<1152x128xf32, #tpu.memory_space<vmem>>, vector<128x128xf32>
    %cst_3 = arith.constant dense<0.000000e+00> : vector<152x128xf32>
    %3 = tpu.matmul %1, %2, %cst_3 {dimension_numbers = #tpu.dot_dimension_numbers<[1], [0], [0], [1], [0, 0, 1, 1], [], []>} : vector<152x128xf32>, vector<128x128xf32>, vector<152x128xf32> -> vector<152x128xf32>
    %4 = arith.addf %0, %3 : vector<152x128xf32>
    %c1 = arith.constant 1 : index
    %c0_4 = arith.constant 0 : index
    %5 = vector.load %arg1[%c1, %c0_4] : memref<176x128xf32, #tpu.memory_space<vmem>>, vector<152x128xf32>
    %c128 = arith.constant 128 : index
    %c0_5 = arith.constant 0 : index
    %6 = vector.load %arg3[%c128, %c0_5] : memref<1152x128xf32, #tpu.memory_space<vmem>>, vector<128x128xf32>
    %cst_6 = arith.constant dense<0.000000e+00> : vector<152x128xf32>
    %7 = tpu.matmul %5, %6, %cst_6 {dimension_numbers = #tpu.dot_dimension_numbers<[1], [0], [0], [1], [0, 0, 1, 1], [], []>} : vector<152x128xf32>, vector<128x128xf32>, vector<152x128xf32> -> vector<152x128xf32>
    %8 = arith.addf %4, %7 : vector<152x128xf32>
    %c2 = arith.constant 2 : index
    %c0_7 = arith.constant 0 : index
    %9 = vector.load %arg1[%c2, %c0_7] : memref<176x128xf32, #tpu.memory_space<vmem>>, vector<152x128xf32>
    %c256 = arith.constant 256 : index
    %c0_8 = arith.constant 0 : index
    %10 = vector.load %arg3[%c256, %c0_8] : memref<1152x128xf32, #tpu.memory_space<vmem>>, vector<128x128xf32>
    %cst_9 = arith.constant dense<0.000000e+00> : vector<152x128xf32>
    %11 = tpu.matmul %9, %10, %cst_9 {dimension_numbers = #tpu.dot_dimension_numbers<[1], [0], [0], [1], [0, 0, 1, 1], [], []>} : vector<152x128xf32>, vector<128x128xf32>, vector<152x128xf32> -> vector<152x128xf32>
    %12 = arith.addf %8, %11 : vector<152x128xf32>
    %c9 = arith.constant 9 : index
    %c0_10 = arith.constant 0 : index
    %13 = vector.load %arg1[%c9, %c0_10] : memref<176x128xf32, #tpu.memory_space<vmem>>, vector<152x128xf32>
    %c384 = arith.constant 384 : index
    %c0_11 = arith.constant 0 : index
    %14 = vector.load %arg3[%c384, %c0_11] : memref<1152x128xf32, #tpu.memory_space<vmem>>, vector<128x128xf32>
    %cst_12 = arith.constant dense<0.000000e+00> : vector<152x128xf32>
    %15 = tpu.matmul %13, %14, %cst_12 {dimension_numbers = #tpu.dot_dimension_numbers<[1], [0], [0], [1], [0, 0, 1, 1], [], []>} : vector<152x128xf32>, vector<128x128xf32>, vector<152x128xf32> -> vector<152x128xf32>
    %16 = arith.addf %12, %15 : vector<152x128xf32>
    %c10 = arith.constant 10 : index
    %c0_13 = arith.constant 0 : index
    %17 = vector.load %arg1[%c10, %c0_13] : memref<176x128xf32, #tpu.memory_space<vmem>>, vector<152x128xf32>
    %c512 = arith.constant 512 : index
    %c0_14 = arith.constant 0 : index
    %18 = vector.load %arg3[%c512, %c0_14] : memref<1152x128xf32, #tpu.memory_space<vmem>>, vector<128x128xf32>
    %cst_15 = arith.constant dense<0.000000e+00> : vector<152x128xf32>
    %19 = tpu.matmul %17, %18, %cst_15 {dimension_numbers = #tpu.dot_dimension_numbers<[1], [0], [0], [1], [0, 0, 1, 1], [], []>} : vector<152x128xf32>, vector<128x128xf32>, vector<152x128xf32> -> vector<152x128xf32>
    %20 = arith.addf %16, %19 : vector<152x128xf32>
    %c11 = arith.constant 11 : index
    %c0_16 = arith.constant 0 : index
    %21 = vector.load %arg1[%c11, %c0_16] : memref<176x128xf32, #tpu.memory_space<vmem>>, vector<152x128xf32>
    %c640 = arith.constant 640 : index
    %c0_17 = arith.constant 0 : index
    %22 = vector.load %arg3[%c640, %c0_17] : memref<1152x128xf32, #tpu.memory_space<vmem>>, vector<128x128xf32>
    %cst_18 = arith.constant dense<0.000000e+00> : vector<152x128xf32>
    %23 = tpu.matmul %21, %22, %cst_18 {dimension_numbers = #tpu.dot_dimension_numbers<[1], [0], [0], [1], [0, 0, 1, 1], [], []>} : vector<152x128xf32>, vector<128x128xf32>, vector<152x128xf32> -> vector<152x128xf32>
    %24 = arith.addf %20, %23 : vector<152x128xf32>
    %c18 = arith.constant 18 : index
    %c0_19 = arith.constant 0 : index
    %25 = vector.load %arg1[%c18, %c0_19] : memref<176x128xf32, #tpu.memory_space<vmem>>, vector<152x128xf32>
    %c768 = arith.constant 768 : index
    %c0_20 = arith.constant 0 : index
    %26 = vector.load %arg3[%c768, %c0_20] : memref<1152x128xf32, #tpu.memory_space<vmem>>, vector<128x128xf32>
    %cst_21 = arith.constant dense<0.000000e+00> : vector<152x128xf32>
    %27 = tpu.matmul %25, %26, %cst_21 {dimension_numbers = #tpu.dot_dimension_numbers<[1], [0], [0], [1], [0, 0, 1, 1], [], []>} : vector<152x128xf32>, vector<128x128xf32>, vector<152x128xf32> -> vector<152x128xf32>
    %28 = arith.addf %24, %27 : vector<152x128xf32>
    %c19 = arith.constant 19 : index
    %c0_22 = arith.constant 0 : index
    %29 = vector.load %arg1[%c19, %c0_22] : memref<176x128xf32, #tpu.memory_space<vmem>>, vector<152x128xf32>
    %c896 = arith.constant 896 : index
    %c0_23 = arith.constant 0 : index
    %30 = vector.load %arg3[%c896, %c0_23] : memref<1152x128xf32, #tpu.memory_space<vmem>>, vector<128x128xf32>
    %cst_24 = arith.constant dense<0.000000e+00> : vector<152x128xf32>
    %31 = tpu.matmul %29, %30, %cst_24 {dimension_numbers = #tpu.dot_dimension_numbers<[1], [0], [0], [1], [0, 0, 1, 1], [], []>} : vector<152x128xf32>, vector<128x128xf32>, vector<152x128xf32> -> vector<152x128xf32>
    %32 = arith.addf %28, %31 : vector<152x128xf32>
    %c20 = arith.constant 20 : index
    %c0_25 = arith.constant 0 : index
    %33 = vector.load %arg1[%c20, %c0_25] : memref<176x128xf32, #tpu.memory_space<vmem>>, vector<152x128xf32>
    %c1024 = arith.constant 1024 : index
    %c0_26 = arith.constant 0 : index
    %34 = vector.load %arg3[%c1024, %c0_26] : memref<1152x128xf32, #tpu.memory_space<vmem>>, vector<128x128xf32>
    %cst_27 = arith.constant dense<0.000000e+00> : vector<152x128xf32>
    %35 = tpu.matmul %33, %34, %cst_27 {dimension_numbers = #tpu.dot_dimension_numbers<[1], [0], [0], [1], [0, 0, 1, 1], [], []>} : vector<152x128xf32>, vector<128x128xf32>, vector<152x128xf32> -> vector<152x128xf32>
    %36 = arith.addf %32, %35 : vector<152x128xf32>
    %c0_28 = arith.constant 0 : index
    %c0_29 = arith.constant 0 : index
    %37 = vector.load %arg5[%c0_28, %c0_29] : memref<2x128xf32, #tpu.memory_space<vmem>>, vector<1x128xf32>
    %38 = vector.broadcast %37 : vector<1x128xf32> to vector<152x128xf32>
    %39 = arith.addf %36, %38 : vector<152x128xf32>
    %cst_30 = arith.constant 0.000000e+00 : f32
    %40 = vector.broadcast %cst_30 : f32 to vector<152x128xf32>
    %41 = arith.maximumf %39, %40 : vector<152x128xf32>
    %cst_31 = arith.constant 0.000000e+00 : f32
    %42 = vector.broadcast %cst_31 : f32 to vector<10x128xf32>
    %c0_32 = arith.constant 0 : index
    %c0_33 = arith.constant 0 : index
    %43 = vector.load %arg7[%c0_32, %c0_33] : memref<176x128xf32, #tpu.memory_space<vmem>>, vector<10x128xf32>
    tpu.vector_store %arg7[%c0_32, %c0_33], %42 {strides = array<i32>} : memref<176x128xf32, #tpu.memory_space<vmem>>, vector<10x128xf32>,
    %c10_34 = arith.constant 10 : index
    %c0_35 = arith.constant 0 : index
    %44 = vector.load %arg2[%c10_34, %c0_35] : memref<176x1xf32, #tpu.memory_space<vmem>>, vector<152x1xf32>
    %45 = vector.broadcast %44 : vector<152x1xf32> to vector<152x128xf32>
    %46 = arith.mulf %41, %45 : vector<152x128xf32>
    %c10_36 = arith.constant 10 : index
    %c0_37 = arith.constant 0 : index
    %47 = vector.load %arg7[%c10_36, %c0_37] : memref<176x128xf32, #tpu.memory_space<vmem>>, vector<152x128xf32>
    tpu.vector_store %arg7[%c10_36, %c0_37], %46 {strides = array<i32>} : memref<176x128xf32, #tpu.memory_space<vmem>>, vector<152x128xf32>,
    %cst_38 = arith.constant 0.000000e+00 : f32
    %48 = vector.broadcast %cst_38 : f32 to vector<14x128xf32>
    %c162 = arith.constant 162 : index
    %c0_39 = arith.constant 0 : index
    %49 = vector.load %arg7[%c162, %c0_39] : memref<176x128xf32, #tpu.memory_space<vmem>>, vector<14x128xf32>
    tpu.vector_store %arg7[%c162, %c0_39], %48 {strides = array<i32>} : memref<176x128xf32, #tpu.memory_space<vmem>>, vector<14x128xf32>,
    %cst_40 = arith.constant 0.000000e+00 : f32
    %50 = vector.broadcast %cst_40 : f32 to vector<152x128xf32>
    %c0_41 = arith.constant 0 : index
    %c0_42 = arith.constant 0 : index
    %51 = vector.load %arg7[%c0_41, %c0_42] : memref<176x128xf32, #tpu.memory_space<vmem>>, vector<152x128xf32>
    %c0_43 = arith.constant 0 : index
    %c0_44 = arith.constant 0 : index
    %52 = vector.load %arg4[%c0_43, %c0_44] : memref<1152x128xf32, #tpu.memory_space<vmem>>, vector<128x128xf32>
    %cst_45 = arith.constant dense<0.000000e+00> : vector<152x128xf32>
    %53 = tpu.matmul %51, %52, %cst_45 {dimension_numbers = #tpu.dot_dimension_numbers<[1], [0], [0], [1], [0, 0, 1, 1], [], []>} : vector<152x128xf32>, vector<128x128xf32>, vector<152x128xf32> -> vector<152x128xf32>
    %54 = arith.addf %50, %53 : vector<152x128xf32>
    %c1_46 = arith.constant 1 : index
    %c0_47 = arith.constant 0 : index
    %55 = vector.load %arg7[%c1_46, %c0_47] : memref<176x128xf32, #tpu.memory_space<vmem>>, vector<152x128xf32>
    %c128_48 = arith.constant 128 : index
    %c0_49 = arith.constant 0 : index
    %56 = vector.load %arg4[%c128_48, %c0_49] : memref<1152x128xf32, #tpu.memory_space<vmem>>, vector<128x128xf32>
    %cst_50 = arith.constant dense<0.000000e+00> : vector<152x128xf32>
    %57 = tpu.matmul %55, %56, %cst_50 {dimension_numbers = #tpu.dot_dimension_numbers<[1], [0], [0], [1], [0, 0, 1, 1], [], []>} : vector<152x128xf32>, vector<128x128xf32>, vector<152x128xf32> -> vector<152x128xf32>
    %58 = arith.addf %54, %57 : vector<152x128xf32>
    %c2_51 = arith.constant 2 : index
    %c0_52 = arith.constant 0 : index
    %59 = vector.load %arg7[%c2_51, %c0_52] : memref<176x128xf32, #tpu.memory_space<vmem>>, vector<152x128xf32>
    %c256_53 = arith.constant 256 : index
    %c0_54 = arith.constant 0 : index
    %60 = vector.load %arg4[%c256_53, %c0_54] : memref<1152x128xf32, #tpu.memory_space<vmem>>, vector<128x128xf32>
    %cst_55 = arith.constant dense<0.000000e+00> : vector<152x128xf32>
    %61 = tpu.matmul %59, %60, %cst_55 {dimension_numbers = #tpu.dot_dimension_numbers<[1], [0], [0], [1], [0, 0, 1, 1], [], []>} : vector<152x128xf32>, vector<128x128xf32>, vector<152x128xf32> -> vector<152x128xf32>
    %62 = arith.addf %58, %61 : vector<152x128xf32>
    %c9_56 = arith.constant 9 : index
    %c0_57 = arith.constant 0 : index
    %63 = vector.load %arg7[%c9_56, %c0_57] : memref<176x128xf32, #tpu.memory_space<vmem>>, vector<152x128xf32>
    %c384_58 = arith.constant 384 : index
    %c0_59 = arith.constant 0 : index
    %64 = vector.load %arg4[%c384_58, %c0_59] : memref<1152x128xf32, #tpu.memory_space<vmem>>, vector<128x128xf32>
    %cst_60 = arith.constant dense<0.000000e+00> : vector<152x128xf32>
    %65 = tpu.matmul %63, %64, %cst_60 {dimension_numbers = #tpu.dot_dimension_numbers<[1], [0], [0], [1], [0, 0, 1, 1], [], []>} : vector<152x128xf32>, vector<128x128xf32>, vector<152x128xf32> -> vector<152x128xf32>
    %66 = arith.addf %62, %65 : vector<152x128xf32>
    %c10_61 = arith.constant 10 : index
    %c0_62 = arith.constant 0 : index
    %67 = vector.load %arg7[%c10_61, %c0_62] : memref<176x128xf32, #tpu.memory_space<vmem>>, vector<152x128xf32>
    %c512_63 = arith.constant 512 : index
    %c0_64 = arith.constant 0 : index
    %68 = vector.load %arg4[%c512_63, %c0_64] : memref<1152x128xf32, #tpu.memory_space<vmem>>, vector<128x128xf32>
    %cst_65 = arith.constant dense<0.000000e+00> : vector<152x128xf32>
    %69 = tpu.matmul %67, %68, %cst_65 {dimension_numbers = #tpu.dot_dimension_numbers<[1], [0], [0], [1], [0, 0, 1, 1], [], []>} : vector<152x128xf32>, vector<128x128xf32>, vector<152x128xf32> -> vector<152x128xf32>
    %70 = arith.addf %66, %69 : vector<152x128xf32>
    %c11_66 = arith.constant 11 : index
    %c0_67 = arith.constant 0 : index
    %71 = vector.load %arg7[%c11_66, %c0_67] : memref<176x128xf32, #tpu.memory_space<vmem>>, vector<152x128xf32>
    %c640_68 = arith.constant 640 : index
    %c0_69 = arith.constant 0 : index
    %72 = vector.load %arg4[%c640_68, %c0_69] : memref<1152x128xf32, #tpu.memory_space<vmem>>, vector<128x128xf32>
    %cst_70 = arith.constant dense<0.000000e+00> : vector<152x128xf32>
    %73 = tpu.matmul %71, %72, %cst_70 {dimension_numbers = #tpu.dot_dimension_numbers<[1], [0], [0], [1], [0, 0, 1, 1], [], []>} : vector<152x128xf32>, vector<128x128xf32>, vector<152x128xf32> -> vector<152x128xf32>
    %74 = arith.addf %70, %73 : vector<152x128xf32>
    %c18_71 = arith.constant 18 : index
    %c0_72 = arith.constant 0 : index
    %75 = vector.load %arg7[%c18_71, %c0_72] : memref<176x128xf32, #tpu.memory_space<vmem>>, vector<152x128xf32>
    %c768_73 = arith.constant 768 : index
    %c0_74 = arith.constant 0 : index
    %76 = vector.load %arg4[%c768_73, %c0_74] : memref<1152x128xf32, #tpu.memory_space<vmem>>, vector<128x128xf32>
    %cst_75 = arith.constant dense<0.000000e+00> : vector<152x128xf32>
    %77 = tpu.matmul %75, %76, %cst_75 {dimension_numbers = #tpu.dot_dimension_numbers<[1], [0], [0], [1], [0, 0, 1, 1], [], []>} : vector<152x128xf32>, vector<128x128xf32>, vector<152x128xf32> -> vector<152x128xf32>
    %78 = arith.addf %74, %77 : vector<152x128xf32>
    %c19_76 = arith.constant 19 : index
    %c0_77 = arith.constant 0 : index
    %79 = vector.load %arg7[%c19_76, %c0_77] : memref<176x128xf32, #tpu.memory_space<vmem>>, vector<152x128xf32>
    %c896_78 = arith.constant 896 : index
    %c0_79 = arith.constant 0 : index
    %80 = vector.load %arg4[%c896_78, %c0_79] : memref<1152x128xf32, #tpu.memory_space<vmem>>, vector<128x128xf32>
    %cst_80 = arith.constant dense<0.000000e+00> : vector<152x128xf32>
    %81 = tpu.matmul %79, %80, %cst_80 {dimension_numbers = #tpu.dot_dimension_numbers<[1], [0], [0], [1], [0, 0, 1, 1], [], []>} : vector<152x128xf32>, vector<128x128xf32>, vector<152x128xf32> -> vector<152x128xf32>
    %82 = arith.addf %78, %81 : vector<152x128xf32>
    %c20_81 = arith.constant 20 : index
    %c0_82 = arith.constant 0 : index
    %83 = vector.load %arg7[%c20_81, %c0_82] : memref<176x128xf32, #tpu.memory_space<vmem>>, vector<152x128xf32>
    %c1024_83 = arith.constant 1024 : index
    %c0_84 = arith.constant 0 : index
    %84 = vector.load %arg4[%c1024_83, %c0_84] : memref<1152x128xf32, #tpu.memory_space<vmem>>, vector<128x128xf32>
    %cst_85 = arith.constant dense<0.000000e+00> : vector<152x128xf32>
    %85 = tpu.matmul %83, %84, %cst_85 {dimension_numbers = #tpu.dot_dimension_numbers<[1], [0], [0], [1], [0, 0, 1, 1], [], []>} : vector<152x128xf32>, vector<128x128xf32>, vector<152x128xf32> -> vector<152x128xf32>
    %86 = arith.addf %82, %85 : vector<152x128xf32>
    %c1_86 = arith.constant 1 : index
    %c0_87 = arith.constant 0 : index
    %87 = vector.load %arg5[%c1_86, %c0_87] : memref<2x128xf32, #tpu.memory_space<vmem>>, vector<1x128xf32>
    %88 = vector.broadcast %87 : vector<1x128xf32> to vector<152x128xf32>
    %89 = arith.addf %86, %88 : vector<152x128xf32>
    %c10_88 = arith.constant 10 : index
    %c0_89 = arith.constant 0 : index
    %90 = vector.load %arg1[%c10_88, %c0_89] : memref<176x128xf32, #tpu.memory_space<vmem>>, vector<152x128xf32>
    %91 = arith.addf %89, %90 : vector<152x128xf32>
    %cst_90 = arith.constant 0.000000e+00 : f32
    %92 = vector.broadcast %cst_90 : f32 to vector<152x128xf32>
    %93 = arith.maximumf %91, %92 : vector<152x128xf32>
    %c0_91 = arith.constant 0 : index
    %c0_92 = arith.constant 0 : index
    %94 = vector.load %arg6[%c0_91, %c0_92] : memref<152x128xf32, #tpu.memory_space<vmem>>, vector<152x128xf32>
    tpu.vector_store %arg6[%c0_91, %c0_92], %93 {strides = array<i32>} : memref<152x128xf32, #tpu.memory_space<vmem>>, vector<152x128xf32>,
    return
  }
  func.func @transform_0(%arg0: i32) -> (i32, i32) {
    %c0_i32 = arith.constant 0 : i32
    %c0_i32_0 = arith.constant 0 : i32
    return %arg0, %c0_i32 : i32, i32
  }
  func.func @transform_1(%arg0: i32) -> (i32, i32) {
    %c0_i32 = arith.constant 0 : i32
    %c0_i32_0 = arith.constant 0 : i32
    return %arg0, %c0_i32 : i32, i32
  }
  func.func @transform_2(%arg0: i32) -> (i32, i32) {
    %c0_i32 = arith.constant 0 : i32
    %c0_i32_0 = arith.constant 0 : i32
    %c0_i32_1 = arith.constant 0 : i32
    return %c0_i32, %c0_i32_0 : i32, i32
  }
  func.func @transform_3(%arg0: i32) -> (i32, i32) {
    %c0_i32 = arith.constant 0 : i32
    %c0_i32_0 = arith.constant 0 : i32
    %c0_i32_1 = arith.constant 0 : i32
    return %c0_i32, %c0_i32_0 : i32, i32
  }
  func.func @transform_4(%arg0: i32) -> (i32, i32) {
    %c0_i32 = arith.constant 0 : i32
    %c0_i32_0 = arith.constant 0 : i32
    %c0_i32_1 = arith.constant 0 : i32
    return %c0_i32, %c0_i32_0 : i32, i32
  }
  func.func @transform_5(%arg0: i32) -> (i32, i32) {
    %c0_i32 = arith.constant 0 : i32
    %c0_i32_0 = arith.constant 0 : i32
    return %arg0, %c0_i32 : i32, i32
  }
}

</mosaic_0001>

<llo_original>
// kernel: resblock_pallas.1
$region0: #{resblock_pallas.1}
  #allocation0 [shape = 'u32[]', space=smem, size = 0x4, offset = 0x4, fixed_abs, tag = 'smem constant byte address 0x4 - core index']
  #allocation1 [shape = 'u32[144,128]{1,0:T(1,128)}', space=vmem, size = 0x12000, scoped, tag = 'internal scratch']
  #allocation2 [shape = 'f32[176,128]{1,0:T(8,128)}', space=vmem, size = 0x16000, scoped, tag = 'scratch operand']
  %s0 = inlined_call_operand.vmem [shape: f32[176,128], index: 0, kind: input, shape index: {}]
  %s1 = inlined_call_operand.vmem [shape: f32[176,1], index: 1, kind: input, shape index: {}]
  %s2 = inlined_call_operand.vmem [shape: f32[1152,128], index: 2, kind: input, shape index: {}]
  %s3 = inlined_call_operand.vmem [shape: f32[1152,128], index: 3, kind: input, shape index: {}]
  %s4 = inlined_call_operand.vmem [shape: f32[2,128], index: 4, kind: input, shape index: {}]
  %s5 = inlined_call_operand.vmem [shape: f32[152,128], index: 5, kind: output, shape index: {}]
  %s6 = sld [smem:[#allocation0]]
  $region30: #{resblock_pallas.1} parent=0
    _
  %s8 = ssub.s32 1, %s6
  %s9 = scalar_select 0, %s8, %s6
  // Predicated region
  $region2: #{resblock_pallas.1} parent=0 // pred_check
    _
  $region3: #{resblock_pallas.1} parent=0 // pred_check_branch
    %11 = sbr.rel (0) target = $region5
  $region4: #{resblock_pallas.1} parent=0 // pred_region
    _
  $region5: #{resblock_pallas.1} parent=0 // pred_fallthru
    _
  // Predicated region
  $region6: #{resblock_pallas.1} parent=0 // pred_check
    _
  $region7: #{resblock_pallas.1} parent=0 // pred_check_branch
    %13 = sbr.rel (0) target = $region9
  $region8: #{resblock_pallas.1} parent=0 // pred_region
    _
  $region9: #{resblock_pallas.1} parent=0 // pred_fallthru
    _
  // Predicated region
  $region10: #{resblock_pallas.1} parent=0 // pred_check
    _
  $region11: #{resblock_pallas.1} parent=0 // pred_check_branch
    %15 = sbr.rel (0) target = $region13
  $region12: #{resblock_pallas.1} parent=0 // pred_region
    _
  $region13: #{resblock_pallas.1} parent=0 // pred_fallthru
    _
  // Predicated region
  $region14: #{resblock_pallas.1} parent=0 // pred_check
    _
  $region15: #{resblock_pallas.1} parent=0 // pred_check_branch
    %17 = sbr.rel (0) target = $region17
  $region16: #{resblock_pallas.1} parent=0 // pred_region
    _
  $region17: #{resblock_pallas.1} parent=0 // pred_fallthru
    _
  // Predicated region
  $region18: #{resblock_pallas.1} parent=0 // pred_check
    _
  $region19: #{resblock_pallas.1} parent=0 // pred_check_branch
    %19 = sbr.rel (0) target = $region21
  $region20: #{resblock_pallas.1} parent=0 // pred_region
    _
  $region21: #{resblock_pallas.1} parent=0 // pred_fallthru
    _
  %v20 = vld [vmem:[%s0] sm:$0xff]
  %v21 = vld [vmem:[%s0 + $0x8] sm:$0xff]
  %v22 = vld [vmem:[%s0 + $0x10] sm:$0xff]
  %v23 = vld [vmem:[%s0 + $0x18] sm:$0xff]
  %v24 = vld [vmem:[%s0 + $0x20] sm:$0xff]
  %v25 = vld [vmem:[%s0 + $0x28] sm:$0xff]
  %v26 = vld [vmem:[%s0 + $0x30] sm:$0xff]
  %v27 = vld [vmem:[%s0 + $0x38] sm:$0xff]
  %v28 = vld [vmem:[%s0 + $0x40] sm:$0xff]
  %v29 = vld [vmem:[%s0 + $0x48] sm:$0xff]
  %v30 = vld [vmem:[%s0 + $0x50] sm:$0xff]
  %v31 = vld [vmem:[%s0 + $0x58] sm:$0xff]
  %v32 = vld [vmem:[%s0 + $0x60] sm:$0xff]
  %v33 = vld [vmem:[%s0 + $0x68] sm:$0xff]
  %v34 = vld [vmem:[%s0 + $0x70] sm:$0xff]
  %v35 = vld [vmem:[%s0 + $0x78] sm:$0xff]
  %v36 = vld [vmem:[%s0 + $0x80] sm:$0xff]
  %v37 = vld [vmem:[%s0 + $0x88] sm:$0xff]
  %v38 = vld [vmem:[%s0 + $0x90] sm:$0xff]
  %v39 = vld [vmem:[%s2] sm:$0xff]
  %v40 = vld [vmem:[%s2 + $0x8] sm:$0xff]
  %v41 = vld [vmem:[%s2 + $0x10] sm:$0xff]
  %v42 = vld [vmem:[%s2 + $0x18] sm:$0xff]
  %v43 = vld [vmem:[%s2 + $0x20] sm:$0xff]
  %v44 = vld [vmem:[%s2 + $0x28] sm:$0xff]
  %v45 = vld [vmem:[%s2 + $0x30] sm:$0xff]
  %v46 = vld [vmem:[%s2 + $0x38] sm:$0xff]
  %v47 = vld [vmem:[%s2 + $0x40] sm:$0xff]
  %v48 = vld [vmem:[%s2 + $0x48] sm:$0xff]
  %v49 = vld [vmem:[%s2 + $0x50] sm:$0xff]
  %v50 = vld [vmem:[%s2 + $0x58] sm:$0xff]
  %v51 = vld [vmem:[%s2 + $0x60] sm:$0xff]
  %v52 = vld [vmem:[%s2 + $0x68] sm:$0xff]
  %v53 = vld [vmem:[%s2 + $0x70] sm:$0xff]
  %v54 = vld [vmem:[%s2 + $0x78] sm:$0xff]
  %v55 = vld [vmem:[%s0 + $0x1] sm:$0xff]
  %v56 = vld [vmem:[%s0 + $0x9] sm:$0xff]
  %v57 = vld [vmem:[%s0 + $0x11] sm:$0xff]
  %v58 = vld [vmem:[%s0 + $0x19] sm:$0xff]
  %v59 = vld [vmem:[%s0 + $0x21] sm:$0xff]
  %v60 = vld [vmem:[%s0 + $0x29] sm:$0xff]
  %v61 = vld [vmem:[%s0 + $0x31] sm:$0xff]
  %v62 = vld [vmem:[%s0 + $0x39] sm:$0xff]
  %v63 = vld [vmem:[%s0 + $0x41] sm:$0xff]
  %v64 = vld [vmem:[%s0 + $0x49] sm:$0xff]
  %v65 = vld [vmem:[%s0 + $0x51] sm:$0xff]
  %v66 = vld [vmem:[%s0 + $0x59] sm:$0xff]
  %v67 = vld [vmem:[%s0 + $0x61] sm:$0xff]
  %v68 = vld [vmem:[%s0 + $0x69] sm:$0xff]
  %v69 = vld [vmem:[%s0 + $0x71] sm:$0xff]
  %v70 = vld [vmem:[%s0 + $0x79] sm:$0xff]
  %v71 = vld [vmem:[%s0 + $0x81] sm:$0xff]
  %v72 = vld [vmem:[%s0 + $0x89] sm:$0xff]
  %v73 = vld [vmem:[%s0 + $0x91] sm:$0xff]
  %v74 = vld [vmem:[%s2 + $0x80] sm:$0xff]
  %v75 = vld [vmem:[%s2 + $0x88] sm:$0xff]
  %v76 = vld [vmem:[%s2 + $0x90] sm:$0xff]
  %v77 = vld [vmem:[%s2 + $0x98] sm:$0xff]
  %v78 = vld [vmem:[%s2 + $0xa0] sm:$0xff]
  %v79 = vld [vmem:[%s2 + $0xa8] sm:$0xff]
  %v80 = vld [vmem:[%s2 + $0xb0] sm:$0xff]
  %v81 = vld [vmem:[%s2 + $0xb8] sm:$0xff]
  %v82 = vld [vmem:[%s2 + $0xc0] sm:$0xff]
  %v83 = vld [vmem:[%s2 + $0xc8] sm:$0xff]
  %v84 = vld [vmem:[%s2 + $0xd0] sm:$0xff]
  %v85 = vld [vmem:[%s2 + $0xd8] sm:$0xff]
  %v86 = vld [vmem:[%s2 + $0xe0] sm:$0xff]
  %v87 = vld [vmem:[%s2 + $0xe8] sm:$0xff]
  %v88 = vld [vmem:[%s2 + $0xf0] sm:$0xff]
  %v89 = vld [vmem:[%s2 + $0xf8] sm:$0xff]
  %90 = vmatprep.subr.mxu0 0.0
  %91 = vmatpush1.msra.mxu0 %v74
  %92 = vmatprep.subr.mxu0 0.0
  %93 = vmatpush1.msra.mxu0 %v75
  %94 = vmatprep.subr.mxu0 0.0
  %95 = vmatpush1.msra.mxu0 %v76
  %96 = vmatprep.subr.mxu0 0.0
  %97 = vmatpush1.msra.mxu0 %v77
  %98 = vmatprep.subr.mxu0 0.0
  %99 = vmatpush1.msra.mxu0 %v78
  %100 = vmatprep.subr.mxu0 0.0
  %101 = vmatpush1.msra.mxu0 %v79
  %102 = vmatprep.subr.mxu0 0.0
  %103 = vmatpush1.msra.mxu0 %v80
  %104 = vmatprep.subr.mxu0 0.0
  %105 = vmatpush1.msra.mxu0 %v81
  %106 = vmatprep.subr.mxu0 0.0
  %107 = vmatpush1.msra.mxu0 %v82
  %108 = vmatprep.subr.mxu0 0.0
  %109 = vmatpush1.msra.mxu0 %v83
  %110 = vmatprep.subr.mxu0 0.0
  %111 = vmatpush1.msra.mxu0 %v84
  %112 = vmatprep.subr.mxu0 0.0
  %113 = vmatpush1.msra.mxu0 %v85
  %114 = vmatprep.subr.mxu0 0.0
  %115 = vmatpush1.msra.mxu0 %v86
  %116 = vmatprep.subr.mxu0 0.0
  %117 = vmatpush1.msra.mxu0 %v87
  %118 = vmatprep.subr.mxu0 0.0
  %119 = vmatpush1.msra.mxu0 %v88
  %120 = vmatprep.subr.mxu0 0.0
  %121 = vmatpush1.msra.mxu0 %v89
  %122 = vmatprep.subr.mxu0 0.0
  %123 = vmatpush1.msra.mxu0 0.0
  %124 = vmatprep.subr.mxu0 0.0
  %125 = vmatpush1.msra.mxu0 0.0
  %126 = vmatprep.subr.mxu0 0.0
  %127 = vmatpush1.msra.mxu0 0.0
  %128 = vmatprep.subr.mxu0 0.0
  %129 = vmatpush1.msra.mxu0 0.0
  %130 = vmatprep.subr.mxu0 0.0
  %131 = vmatpush1.msra.mxu0 0.0
  %132 = vmatprep.subr.mxu0 0.0
  %133 = vmatpush1.msra.mxu0 0.0
  %134 = vmatprep.subr.mxu0 0.0
  %135 = vmatpush1.msra.mxu0 0.0
  %136 = vmatprep.subr.mxu0 0.0
  %137 = vmatpush1.msra.mxu0 0.0
  %138 = vmatprep.subr.mxu0 0.0
  %139 = vmatpush1.msra.mxu0 0.0
  %140 = vmatprep.subr.mxu0 0.0
  %141 = vmatpush1.msra.mxu0 0.0
  %142 = vmatprep.subr.mxu0 0.0
  %143 = vmatpush1.msra.mxu0 0.0
  %144 = vmatprep.subr.mxu0 0.0
  %145 = vmatpush1.msra.mxu0 0.0
  %146 = vmatprep.subr.mxu0 0.0
  %147 = vmatpush1.msra.mxu0 0.0
  %148 = vmatprep.subr.mxu0 0.0
  %149 = vmatpush1.msra.mxu0 0.0
  %150 = vmatprep.subr.mxu0 0.0
  %151 = vmatpush1.msra.mxu0 0.0
  %152 = vmatprep.subr.mxu0 0.0
  %153 = vmatpush1.msra.mxu0 0.0
  %154 = vmatprep.mubr.f32.mxu0 0.0
  %155 = vmatmul.mubr.f32.gmra.mrb[0].mxu0 %v55
  %v156 = vpop.f32.mrb[0].mxu0
  %v157 = vadd.f32 0.0, %v156
  %v158 = vpop.f32.mrb[0].mxu0
  %159 = vmatprep.mubr.f32.mxu0 0.0
  %160 = vmatmul.mubr.f32.gmra.mrb[0].mxu0 %v56
  %v161 = vpop.f32.mrb[0].mxu0
  %v162 = vadd.f32 0.0, %v161
  %v163 = vpop.f32.mrb[0].mxu0
  %164 = vmatprep.mubr.f32.mxu0 0.0
  %165 = vmatmul.mubr.f32.gmra.mrb[0].mxu0 %v57
  %v166 = vpop.f32.mrb[0].mxu0
  %v167 = vadd.f32 0.0, %v166
  %v168 = vpop.f32.mrb[0].mxu0
  %169 = vmatprep.mubr.f32.mxu0 0.0
  %170 = vmatmul.mubr.f32.gmra.mrb[0].mxu0 %v58
  %v171 = vpop.f32.mrb[0].mxu0
  %v172 = vadd.f32 0.0, %v171
  %v173 = vpop.f32.mrb[0].mxu0
  %174 = vmatprep.mubr.f32.mxu0 0.0
  %175 = vmatmul.mubr.f32.gmra.mrb[0].mxu0 %v59
  %v176 = vpop.f32.mrb[0].mxu0
  %v177 = vadd.f32 0.0, %v176
  %v178 = vpop.f32.mrb[0].mxu0
  %179 = vmatprep.mubr.f32.mxu0 0.0
  %180 = vmatmul.mubr.f32.gmra.mrb[0].mxu0 %v60
  %v181 = vpop.f32.mrb[0].mxu0
  %v182 = vadd.f32 0.0, %v181
  %v183 = vpop.f32.mrb[0].mxu0
  %184 = vmatprep.mubr.f32.mxu0 0.0
  %185 = vmatmul.mubr.f32.gmra.mrb[0].mxu0 %v61
  %v186 = vpop.f32.mrb[0].mxu0
  %v187 = vadd.f32 0.0, %v186
  %v188 = vpop.f32.mrb[0].mxu0
  %189 = vmatprep.mubr.f32.mxu0 0.0
  %190 = vmatmul.mubr.f32.gmra.mrb[0].mxu0 %v62
  %v191 = vpop.f32.mrb[0].mxu0
  %v192 = vadd.f32 0.0, %v191
  %v193 = vpop.f32.mrb[0].mxu0
  %194 = vmatprep.mubr.f32.mxu0 0.0
  %195 = vmatmul.mubr.f32.gmra.mrb[0].mxu0 %v63
  %v196 = vpop.f32.mrb[0].mxu0
  %v197 = vadd.f32 0.0, %v196
  %v198 = vpop.f32.mrb[0].mxu0
  %199 = vmatprep.mubr.f32.mxu0 0.0
  %200 = vmatmul.mubr.f32.gmra.mrb[0].mxu0 %v64
  %v201 = vpop.f32.mrb[0].mxu0
  %v202 = vadd.f32 0.0, %v201
  %v203 = vpop.f32.mrb[0].mxu0
  %204 = vmatprep.mubr.f32.mxu0 0.0
  %205 = vmatmul.mubr.f32.gmra.mrb[0].mxu0 %v65
  %v206 = vpop.f32.mrb[0].mxu0
  %v207 = vadd.f32 0.0, %v206
  %v208 = vpop.f32.mrb[0].mxu0
  %209 = vmatprep.mubr.f32.mxu0 0.0
  %210 = vmatmul.mubr.f32.gmra.mrb[0].mxu0 %v66
  %v211 = vpop.f32.mrb[0].mxu0
  %v212 = vadd.f32 0.0, %v211
  %v213 = vpop.f32.mrb[0].mxu0
  %214 = vmatprep.mubr.f32.mxu0 0.0
  %215 = vmatmul.mubr.f32.gmra.mrb[0].mxu0 %v67
  %v216 = vpop.f32.mrb[0].mxu0
  %v217 = vadd.f32 0.0, %v216
  %v218 = vpop.f32.mrb[0].mxu0
  %219 = vmatprep.mubr.f32.mxu0 0.0
  %220 = vmatmul.mubr.f32.gmra.mrb[0].mxu0 %v68
  %v221 = vpop.f32.mrb[0].mxu0
  %v222 = vadd.f32 0.0, %v221
  %v223 = vpop.f32.mrb[0].mxu0
  %224 = vmatprep.mubr.f32.mxu0 0.0
  %225 = vmatmul.mubr.f32.gmra.mrb[0].mxu0 %v69
  %v226 = vpop.f32.mrb[0].mxu0
  %v227 = vadd.f32 0.0, %v226
  %v228 = vpop.f32.mrb[0].mxu0
  %229 = vmatprep.mubr.f32.mxu0 0.0
  %230 = vmatmul.mubr.f32.gmra.mrb[0].mxu0 %v70
  %v231 = vpop.f32.mrb[0].mxu0
  %v232 = vadd.f32 0.0, %v231
  %v233 = vpop.f32.mrb[0].mxu0
  %234 = vmatprep.mubr.f32.mxu0 0.0
  %235 = vmatmul.mubr.f32.gmra.mrb[0].mxu0 %v71
  %v236 = vpop.f32.mrb[0].mxu0
  %v237 = vadd.f32 0.0, %v236
  %v238 = vpop.f32.mrb[0].mxu0
  %239 = vmatprep.mubr.f32.mxu0 0.0
  %240 = vmatmul.mubr.f32.gmra.mrb[0].mxu0 %v72
  %v241 = vpop.f32.mrb[0].mxu0
  %v242 = vadd.f32 0.0, %v241
  %v243 = vpop.f32.mrb[0].mxu0
  %244 = vmatprep.mubr.f32.mxu0 0.0
  %245 = vmatmul.mubr.f32.gmra.mrb[0].mxu0 %v73
  %v246 = vpop.f32.mrb[0].mxu0
  %v247 = vadd.f32 0.0, %v246
  %v248 = vpop.f32.mrb[0].mxu0
  %249 = vdwg.mxu0
  %250 = vmatprep.subr.mxu0 0.0
  %251 = vmatpush1.msra.mxu0 %v39
  %252 = vmatprep.subr.mxu0 0.0
  %253 = vmatpush1.msra.mxu0 %v40
  %254 = vmatprep.subr.mxu0 0.0
  %255 = vmatpush1.msra.mxu0 %v41
  %256 = vmatprep.subr.mxu0 0.0
  %257 = vmatpush1.msra.mxu0 %v42
  %258 = vmatprep.subr.mxu0 0.0
  %259 = vmatpush1.msra.mxu0 %v43
  %260 = vmatprep.subr.mxu0 0.0
  %261 = vmatpush1.msra.mxu0 %v44
  %262 = vmatprep.subr.mxu0 0.0
  %263 = vmatpush1.msra.mxu0 %v45
  %264 = vmatprep.subr.mxu0 0.0
  %265 = vmatpush1.msra.mxu0 %v46
  %266 = vmatprep.subr.mxu0 0.0
  %267 = vmatpush1.msra.mxu0 %v47
  %268 = vmatprep.subr.mxu0 0.0
  %269 = vmatpush1.msra.mxu0 %v48
  %270 = vmatprep.subr.mxu0 0.0
  %271 = vmatpush1.msra.mxu0 %v49
  %272 = vmatprep.subr.mxu0 0.0
  %273 = vmatpush1.msra.mxu0 %v50
  %274 = vmatprep.subr.mxu0 0.0
  %275 = vmatpush1.msra.mxu0 %v51
  %276 = vmatprep.subr.mxu0 0.0
  %277 = vmatpush1.msra.mxu0 %v52
  %278 = vmatprep.subr.mxu0 0.0
  %279 = vmatpush1.msra.mxu0 %v53
  %280 = vmatprep.subr.mxu0 0.0
  %281 = vmatpush1.msra.mxu0 %v54
  %282 = vmatprep.subr.mxu0 0.0
  %283 = vmatpush1.msra.mxu0 0.0
  %284 = vmatprep.subr.mxu0 0.0
  %285 = vmatpush1.msra.mxu0 0.0
  %286 = vmatprep.subr.mxu0 0.0
  %287 = vmatpush1.msra.mxu0 0.0
  %288 = vmatprep.subr.mxu0 0.0
  %289 = vmatpush1.msra.mxu0 0.0
  %290 = vmatprep.subr.mxu0 0.0
  %291 = vmatpush1.msra.mxu0 0.0
  %292 = vmatprep.subr.mxu0 0.0
  %293 = vmatpush1.msra.mxu0 0.0
  %294 = vmatprep.subr.mxu0 0.0
  %295 = vmatpush1.msra.mxu0 0.0
  %296 = vmatprep.subr.mxu0 0.0
  %297 = vmatpush1.msra.mxu0 0.0
  %298 = vmatprep.subr.mxu0 0.0
  %299 = vmatpush1.msra.mxu0 0.0
  %300 = vmatprep.subr.mxu0 0.0
  %301 = vmatpush1.msra.mxu0 0.0
  %302 = vmatprep.subr.mxu0 0.0
  %303 = vmatpush1.msra.mxu0 0.0
  %304 = vmatprep.subr.mxu0 0.0
  %305 = vmatpush1.msra.mxu0 0.0
  %306 = vmatprep.subr.mxu0 0.0
  %307 = vmatpush1.msra.mxu0 0.0
  %308 = vmatprep.subr.mxu0 0.0
  %309 = vmatpush1.msra.mxu0 0.0
  %310 = vmatprep.subr.mxu0 0.0
  %311 = vmatpush1.msra.mxu0 0.0
  %312 = vmatprep.subr.mxu0 0.0
  %313 = vmatpush1.msra.mxu0 0.0
  %314 = vmatprep.mubr.f32.mxu0 0.0
  %315 = vmatmul.mubr.f32.gmra.mrb[0].mxu0 %v20
  %v316 = vpop.f32.mrb[0].mxu0
  %v317 = vadd.f32 %v157, %v316
  %v318 = vpop.f32.mrb[0].mxu0
  %319 = vmatprep.mubr.f32.mxu0 0.0
  %320 = vmatmul.mubr.f32.gmra.mrb[0].mxu0 %v21
  %v321 = vpop.f32.mrb[0].mxu0
  %v322 = vadd.f32 %v162, %v321
  %v323 = vpop.f32.mrb[0].mxu0
  %324 = vmatprep.mubr.f32.mxu0 0.0
  %325 = vmatmul.mubr.f32.gmra.mrb[0].mxu0 %v22
  %v326 = vpop.f32.mrb[0].mxu0
  %v327 = vadd.f32 %v167, %v326
  %v328 = vpop.f32.mrb[0].mxu0
  %329 = vmatprep.mubr.f32.mxu0 0.0
  %330 = vmatmul.mubr.f32.gmra.mrb[0].mxu0 %v23
  %v331 = vpop.f32.mrb[0].mxu0
  %v332 = vadd.f32 %v172, %v331
  %v333 = vpop.f32.mrb[0].mxu0
  %334 = vmatprep.mubr.f32.mxu0 0.0
  %335 = vmatmul.mubr.f32.gmra.mrb[0].mxu0 %v24
  %v336 = vpop.f32.mrb[0].mxu0
  %v337 = vadd.f32 %v177, %v336
  %v338 = vpop.f32.mrb[0].mxu0
  %339 = vmatprep.mubr.f32.mxu0 0.0
  %340 = vmatmul.mubr.f32.gmra.mrb[0].mxu0 %v25
  %v341 = vpop.f32.mrb[0].mxu0
  %v342 = vadd.f32 %v182, %v341
  %v343 = vpop.f32.mrb[0].mxu0
  %344 = vmatprep.mubr.f32.mxu0 0.0
  %345 = vmatmul.mubr.f32.gmra.mrb[0].mxu0 %v26
  %v346 = vpop.f32.mrb[0].mxu0
  %v347 = vadd.f32 %v187, %v346
  %v348 = vpop.f32.mrb[0].mxu0
  %349 = vmatprep.mubr.f32.mxu0 0.0
  %350 = vmatmul.mubr.f32.gmra.mrb[0].mxu0 %v27
  %v351 = vpop.f32.mrb[0].mxu0
  %v352 = vadd.f32 %v192, %v351
  %v353 = vpop.f32.mrb[0].mxu0
  %354 = vmatprep.mubr.f32.mxu0 0.0
  %355 = vmatmul.mubr.f32.gmra.mrb[0].mxu0 %v28
  %v356 = vpop.f32.mrb[0].mxu0
  %v357 = vadd.f32 %v197, %v356
  %v358 = vpop.f32.mrb[0].mxu0
  %359 = vmatprep.mubr.f32.mxu0 0.0
  %360 = vmatmul.mubr.f32.gmra.mrb[0].mxu0 %v29
  %v361 = vpop.f32.mrb[0].mxu0
  %v362 = vadd.f32 %v202, %v361
  %v363 = vpop.f32.mrb[0].mxu0
  %364 = vmatprep.mubr.f32.mxu0 0.0
  %365 = vmatmul.mubr.f32.gmra.mrb[0].mxu0 %v30
  %v366 = vpop.f32.mrb[0].mxu0
  %v367 = vadd.f32 %v207, %v366
  %v368 = vpop.f32.mrb[0].mxu0
  %369 = vmatprep.mubr.f32.mxu0 0.0
  %370 = vmatmul.mubr.f32.gmra.mrb[0].mxu0 %v31
  %v371 = vpop.f32.mrb[0].mxu0
  %v372 = vadd.f32 %v212, %v371
  %v373 = vpop.f32.mrb[0].mxu0
  %374 = vmatprep.mubr.f32.mxu0 0.0
  %375 = vmatmul.mubr.f32.gmra.mrb[0].mxu0 %v32
  %v376 = vpop.f32.mrb[0].mxu0
  %v377 = vadd.f32 %v217, %v376
  %v378 = vpop.f32.mrb[0].mxu0
  %379 = vmatprep.mubr.f32.mxu0 0.0
  %380 = vmatmul.mubr.f32.gmra.mrb[0].mxu0 %v33
  %v381 = vpop.f32.mrb[0].mxu0
  %v382 = vadd.f32 %v222, %v381
  %v383 = vpop.f32.mrb[0].mxu0
  %384 = vmatprep.mubr.f32.mxu0 0.0
  %385 = vmatmul.mubr.f32.gmra.mrb[0].mxu0 %v34
  %v386 = vpop.f32.mrb[0].mxu0
  %v387 = vadd.f32 %v227, %v386
  %v388 = vpop.f32.mrb[0].mxu0
  %389 = vmatprep.mubr.f32.mxu0 0.0
  %390 = vmatmul.mubr.f32.gmra.mrb[0].mxu0 %v35
  %v391 = vpop.f32.mrb[0].mxu0
  %v392 = vadd.f32 %v232, %v391
  %v393 = vpop.f32.mrb[0].mxu0
  %394 = vmatprep.mubr.f32.mxu0 0.0
  %395 = vmatmul.mubr.f32.gmra.mrb[0].mxu0 %v36
  %v396 = vpop.f32.mrb[0].mxu0
  %v397 = vadd.f32 %v237, %v396
  %v398 = vpop.f32.mrb[0].mxu0
  %399 = vmatprep.mubr.f32.mxu0 0.0
  %400 = vmatmul.mubr.f32.gmra.mrb[0].mxu0 %v37
  %v401 = vpop.f32.mrb[0].mxu0
  %v402 = vadd.f32 %v242, %v401
  %v403 = vpop.f32.mrb[0].mxu0
  %404 = vmatprep.mubr.f32.mxu0 0.0
  %405 = vmatmul.mubr.f32.gmra.mrb[0].mxu0 %v38
  %v406 = vpop.f32.mrb[0].mxu0
  %v407 = vadd.f32 %v247, %v406
  %v408 = vpop.f32.mrb[0].mxu0
  %409 = vdwg.mxu0
  %v410 = vld [vmem:[%s0 + $0x2] sm:$0xff]
  %v411 = vld [vmem:[%s0 + $0xa] sm:$0xff]
  %v412 = vld [vmem:[%s0 + $0x12] sm:$0xff]
  %v413 = vld [vmem:[%s0 + $0x1a] sm:$0xff]
  %v414 = vld [vmem:[%s0 + $0x22] sm:$0xff]
  %v415 = vld [vmem:[%s0 + $0x2a] sm:$0xff]
  %v416 = vld [vmem:[%s0 + $0x32] sm:$0xff]
  %v417 = vld [vmem:[%s0 + $0x3a] sm:$0xff]
  %v418 = vld [vmem:[%s0 + $0x42] sm:$0xff]
  %v419 = vld [vmem:[%s0 + $0x4a] sm:$0xff]
  %v420 = vld [vmem:[%s0 + $0x52] sm:$0xff]
  %v421 = vld [vmem:[%s0 + $0x5a] sm:$0xff]
  %v422 = vld [vmem:[%s0 + $0x62] sm:$0xff]
  %v423 = vld [vmem:[%s0 + $0x6a] sm:$0xff]
  %v424 = vld [vmem:[%s0 + $0x72] sm:$0xff]
  %v425 = vld [vmem:[%s0 + $0x7a] sm:$0xff]
  %v426 = vld [vmem:[%s0 + $0x82] sm:$0xff]
  %v427 = vld [vmem:[%s0 + $0x8a] sm:$0xff]
  %v428 = vld [vmem:[%s0 + $0x92] sm:$0xff]
  %v429 = vld [vmem:[%s2 + $0x100] sm:$0xff]
  %v430 = vld [vmem:[%s2 + $0x108] sm:$0xff]
  %v431 = vld [vmem:[%s2 + $0x110] sm:$0xff]
  %v432 = vld [vmem:[%s2 + $0x118] sm:$0xff]
  %v433 = vld [vmem:[%s2 + $0x120] sm:$0xff]
  %v434 = vld [vmem:[%s2 + $0x128] sm:$0xff]
  %v435 = vld [vmem:[%s2 + $0x130] sm:$0xff]
  %v436 = vld [vmem:[%s2 + $0x138] sm:$0xff]
  %v437 = vld [vmem:[%s2 + $0x140] sm:$0xff]
  %v438 = vld [vmem:[%s2 + $0x148] sm:$0xff]
  %v439 = vld [vmem:[%s2 + $0x150] sm:$0xff]
  %v440 = vld [vmem:[%s2 + $0x158] sm:$0xff]
  %v441 = vld [vmem:[%s2 + $0x160] sm:$0xff]
  %v442 = vld [vmem:[%s2 + $0x168] sm:$0xff]
  %v443 = vld [vmem:[%s2 + $0x170] sm:$0xff]
  %v444 = vld [vmem:[%s2 + $0x178] sm:$0xff]
  %445 = vmatprep.subr.mxu0 0.0
  %446 = vmatpush1.msra.mxu0 %v429
  %447 = vmatprep.subr.mxu0 0.0
  %448 = vmatpush1.msra.mxu0 %v430
  %449 = vmatprep.subr.mxu0 0.0
  %450 = vmatpush1.msra.mxu0 %v431
  %451 = vmatprep.subr.mxu0 0.0
  %452 = vmatpush1.msra.mxu0 %v432
  %453 = vmatprep.subr.mxu0 0.0
  %454 = vmatpush1.msra.mxu0 %v433
  %455 = vmatprep.subr.mxu0 0.0
  %456 = vmatpush1.msra.mxu0 %v434
  %457 = vmatprep.subr.mxu0 0.0
  %458 = vmatpush1.msra.mxu0 %v435
  %459 = vmatprep.subr.mxu0 0.0
  %460 = vmatpush1.msra.mxu0 %v436
  %461 = vmatprep.subr.mxu0 0.0
  %462 = vmatpush1.msra.mxu0 %v437
  %463 = vmatprep.subr.mxu0 0.0
  %464 = vmatpush1.msra.mxu0 %v438
  %465 = vmatprep.subr.mxu0 0.0
  %466 = vmatpush1.msra.mxu0 %v439
  %467 = vmatprep.subr.mxu0 0.0
  %468 = vmatpush1.msra.mxu0 %v440
  %469 = vmatprep.subr.mxu0 0.0
  %470 = vmatpush1.msra.mxu0 %v441
  %471 = vmatprep.subr.mxu0 0.0
  %472 = vmatpush1.msra.mxu0 %v442
  %473 = vmatprep.subr.mxu0 0.0
  %474 = vmatpush1.msra.mxu0 %v443
  %475 = vmatprep.subr.mxu0 0.0
  %476 = vmatpush1.msra.mxu0 %v444
  %477 = vmatprep.subr.mxu0 0.0
  %478 = vmatpush1.msra.mxu0 0.0
  %479 = vmatprep.subr.mxu0 0.0
  %480 = vmatpush1.msra.mxu0 0.0
  %481 = vmatprep.subr.mxu0 0.0
  %482 = vmatpush1.msra.mxu0 0.0
  %483 = vmatprep.subr.mxu0 0.0
  %484 = vmatpush1.msra.mxu0 0.0
  %485 = vmatprep.subr.mxu0 0.0
  %486 = vmatpush1.msra.mxu0 0.0
  %487 = vmatprep.subr.mxu0 0.0
  %488 = vmatpush1.msra.mxu0 0.0
  %489 = vmatprep.subr.mxu0 0.0
  %490 = vmatpush1.msra.mxu0 0.0
  %491 = vmatprep.subr.mxu0 0.0
  %492 = vmatpush1.msra.mxu0 0.0
  %493 = vmatprep.subr.mxu0 0.0
  %494 = vmatpush1.msra.mxu0 0.0
  %495 = vmatprep.subr.mxu0 0.0
  %496 = vmatpush1.msra.mxu0 0.0
  %497 = vmatprep.subr.mxu0 0.0
  %498 = vmatpush1.msra.mxu0 0.0
  %499 = vmatprep.subr.mxu0 0.0
  %500 = vmatpush1.msra.mxu0 0.0
  %501 = vmatprep.subr.mxu0 0.0
  %502 = vmatpush1.msra.mxu0 0.0
  %503 = vmatprep.subr.mxu0 0.0
  %504 = vmatpush1.msra.mxu0 0.0
  %505 = vmatprep.subr.mxu0 0.0
  %506 = vmatpush1.msra.mxu0 0.0
  %507 = vmatprep.subr.mxu0 0.0
  %508 = vmatpush1.msra.mxu0 0.0
  %509 = vmatprep.mubr.f32.mxu0 0.0
  %510 = vmatmul.mubr.f32.gmra.mrb[0].mxu0 %v410
  %v511 = vpop.f32.mrb[0].mxu0
  %v512 = vadd.f32 0.0, %v511
  %v513 = vpop.f32.mrb[0].mxu0
  %514 = vmatprep.mubr.f32.mxu0 0.0
  %515 = vmatmul.mubr.f32.gmra.mrb[0].mxu0 %v411
  %v516 = vpop.f32.mrb[0].mxu0
  %v517 = vadd.f32 0.0, %v516
  %v518 = vpop.f32.mrb[0].mxu0
  %519 = vmatprep.mubr.f32.mxu0 0.0
  %520 = vmatmul.mubr.f32.gmra.mrb[0].mxu0 %v412
  %v521 = vpop.f32.mrb[0].mxu0
  %v522 = vadd.f32 0.0, %v521
  %v523 = vpop.f32.mrb[0].mxu0
  %524 = vmatprep.mubr.f32.mxu0 0.0
  %525 = vmatmul.mubr.f32.gmra.mrb[0].mxu0 %v413
  %v526 = vpop.f32.mrb[0].mxu0
  %v527 = vadd.f32 0.0, %v526
  %v528 = vpop.f32.mrb[0].mxu0
  %529 = vmatprep.mubr.f32.mxu0 0.0
  %530 = vmatmul.mubr.f32.gmra.mrb[0].mxu0 %v414
  %v531 = vpop.f32.mrb[0].mxu0
  %v532 = vadd.f32 0.0, %v531
  %v533 = vpop.f32.mrb[0].mxu0
  %534 = vmatprep.mubr.f32.mxu0 0.0
  %535 = vmatmul.mubr.f32.gmra.mrb[0].mxu0 %v415
  %v536 = vpop.f32.mrb[0].mxu0
  %v537 = vadd.f32 0.0, %v536
  %v538 = vpop.f32.mrb[0].mxu0
  %539 = vmatprep.mubr.f32.mxu0 0.0
  %540 = vmatmul.mubr.f32.gmra.mrb[0].mxu0 %v416
  %v541 = vpop.f32.mrb[0].mxu0
  %v542 = vadd.f32 0.0, %v541
  %v543 = vpop.f32.mrb[0].mxu0
  %544 = vmatprep.mubr.f32.mxu0 0.0
  %545 = vmatmul.mubr.f32.gmra.mrb[0].mxu0 %v417
  %v546 = vpop.f32.mrb[0].mxu0
  %v547 = vadd.f32 0.0, %v546
  %v548 = vpop.f32.mrb[0].mxu0
  %549 = vmatprep.mubr.f32.mxu0 0.0
  %550 = vmatmul.mubr.f32.gmra.mrb[0].mxu0 %v418
  %v551 = vpop.f32.mrb[0].mxu0
  %v552 = vadd.f32 0.0, %v551
  %v553 = vpop.f32.mrb[0].mxu0
  %554 = vmatprep.mubr.f32.mxu0 0.0
  %555 = vmatmul.mubr.f32.gmra.mrb[0].mxu0 %v419
  %v556 = vpop.f32.mrb[0].mxu0
  %v557 = vadd.f32 0.0, %v556
  %v558 = vpop.f32.mrb[0].mxu0
  %559 = vmatprep.mubr.f32.mxu0 0.0
  %560 = vmatmul.mubr.f32.gmra.mrb[0].mxu0 %v420
  %v561 = vpop.f32.mrb[0].mxu0
  %v562 = vadd.f32 0.0, %v561
  %v563 = vpop.f32.mrb[0].mxu0
  %564 = vmatprep.mubr.f32.mxu0 0.0
  %565 = vmatmul.mubr.f32.gmra.mrb[0].mxu0 %v421
  %v566 = vpop.f32.mrb[0].mxu0
  %v567 = vadd.f32 0.0, %v566
  %v568 = vpop.f32.mrb[0].mxu0
  %569 = vmatprep.mubr.f32.mxu0 0.0
  %570 = vmatmul.mubr.f32.gmra.mrb[0].mxu0 %v422
  %v571 = vpop.f32.mrb[0].mxu0
  %v572 = vadd.f32 0.0, %v571
  %v573 = vpop.f32.mrb[0].mxu0
  %574 = vmatprep.mubr.f32.mxu0 0.0
  %575 = vmatmul.mubr.f32.gmra.mrb[0].mxu0 %v423
  %v576 = vpop.f32.mrb[0].mxu0
  %v577 = vadd.f32 0.0, %v576
  %v578 = vpop.f32.mrb[0].mxu0
  %579 = vmatprep.mubr.f32.mxu0 0.0
  %580 = vmatmul.mubr.f32.gmra.mrb[0].mxu0 %v424
  %v581 = vpop.f32.mrb[0].mxu0
  %v582 = vadd.f32 0.0, %v581
  %v583 = vpop.f32.mrb[0].mxu0
  %584 = vmatprep.mubr.f32.mxu0 0.0
  %585 = vmatmul.mubr.f32.gmra.mrb[0].mxu0 %v425
  %v586 = vpop.f32.mrb[0].mxu0
  %v587 = vadd.f32 0.0, %v586
  %v588 = vpop.f32.mrb[0].mxu0
  %589 = vmatprep.mubr.f32.mxu0 0.0
  %590 = vmatmul.mubr.f32.gmra.mrb[0].mxu0 %v426
  %v591 = vpop.f32.mrb[0].mxu0
  %v592 = vadd.f32 0.0, %v591
  %v593 = vpop.f32.mrb[0].mxu0
  %594 = vmatprep.mubr.f32.mxu0 0.0
  %595 = vmatmul.mubr.f32.gmra.mrb[0].mxu0 %v427
  %v596 = vpop.f32.mrb[0].mxu0
  %v597 = vadd.f32 0.0, %v596
  %v598 = vpop.f32.mrb[0].mxu0
  %599 = vmatprep.mubr.f32.mxu0 0.0
  %600 = vmatmul.mubr.f32.gmra.mrb[0].mxu0 %v428
  %v601 = vpop.f32.mrb[0].mxu0
  %v602 = vadd.f32 0.0, %v601
  %v603 = vpop.f32.mrb[0].mxu0
  %604 = vdwg.mxu0
  %v605 = vadd.f32 %v317, %v512
  %v606 = vadd.f32 %v322, %v517
  %v607 = vadd.f32 %v327, %v522
  %v608 = vadd.f32 %v332, %v527
  %v609 = vadd.f32 %v337, %v532
  %v610 = vadd.f32 %v342, %v537
  %v611 = vadd.f32 %v347, %v542
  %v612 = vadd.f32 %v352, %v547
  %v613 = vadd.f32 %v357, %v552
  %v614 = vadd.f32 %v362, %v557
  %v615 = vadd.f32 %v367, %v562
  %v616 = vadd.f32 %v372, %v567
  %v617 = vadd.f32 %v377, %v572
  %v618 = vadd.f32 %v382, %v577
  %v619 = vadd.f32 %v387, %v582
  %v620 = vadd.f32 %v392, %v587
  %v621 = vadd.f32 %v397, %v592
  %v622 = vadd.f32 %v402, %v597
  %v623 = vadd.f32 %v407, %v602
  %v624 = vld [vmem:[%s0 + $0x9] sm:$0xff]
  %v625 = vld [vmem:[%s0 + $0x11] sm:$0xff]
  %v626 = vld [vmem:[%s0 + $0x19] sm:$0xff]
  %v627 = vld [vmem:[%s0 + $0x21] sm:$0xff]
  %v628 = vld [vmem:[%s0 + $0x29] sm:$0xff]
  %v629 = vld [vmem:[%s0 + $0x31] sm:$0xff]
  %v630 = vld [vmem:[%s0 + $0x39] sm:$0xff]
  %v631 = vld [vmem:[%s0 + $0x41] sm:$0xff]
  %v632 = vld [vmem:[%s0 + $0x49] sm:$0xff]
  %v633 = vld [vmem:[%s0 + $0x51] sm:$0xff]
  %v634 = vld [vmem:[%s0 + $0x59] sm:$0xff]
  %v635 = vld [vmem:[%s0 + $0x61] sm:$0xff]
  %v636 = vld [vmem:[%s0 + $0x69] sm:$0xff]
  %v637 = vld [vmem:[%s0 + $0x71] sm:$0xff]
  %v638 = vld [vmem:[%s0 + $0x79] sm:$0xff]
  %v639 = vld [vmem:[%s0 + $0x81] sm:$0xff]
  %v640 = vld [vmem:[%s0 + $0x89] sm:$0xff]
  %v641 = vld [vmem:[%s0 + $0x91] sm:$0xff]
  %v642 = vld [vmem:[%s0 + $0x99] sm:$0xff]
  %v643 = vld [vmem:[%s2 + $0x180] sm:$0xff]
  %v644 = vld [vmem:[%s2 + $0x188] sm:$0xff]
  %v645 = vld [vmem:[%s2 + $0x190] sm:$0xff]
  %v646 = vld [vmem:[%s2 + $0x198] sm:$0xff]
  %v647 = vld [vmem:[%s2 + $0x1a0] sm:$0xff]
  %v648 = vld [vmem:[%s2 + $0x1a8] sm:$0xff]
  %v649 = vld [vmem:[%s2 + $0x1b0] sm:$0xff]
  %v650 = vld [vmem:[%s2 + $0x1b8] sm:$0xff]
  %v651 = vld [vmem:[%s2 + $0x1c0] sm:$0xff]
  %v652 = vld [vmem:[%s2 + $0x1c8] sm:$0xff]
  %v653 = vld [vmem:[%s2 + $0x1d0] sm:$0xff]
  %v654 = vld [vmem:[%s2 + $0x1d8] sm:$0xff]
  %v655 = vld [vmem:[%s2 + $0x1e0] sm:$0xff]
  %v656 = vld [vmem:[%s2 + $0x1e8] sm:$0xff]
  %v657 = vld [vmem:[%s2 + $0x1f0] sm:$0xff]
  %v658 = vld [vmem:[%s2 + $0x1f8] sm:$0xff]
  %659 = vmatprep.subr.mxu0 0.0
  %660 = vmatpush1.msra.mxu0 %v643
  %661 = vmatprep.subr.mxu0 0.0
  %662 = vmatpush1.msra.mxu0 %v644
  %663 = vmatprep.subr.mxu0 0.0
  %664 = vmatpush1.msra.mxu0 %v645
  %665 = vmatprep.subr.mxu0 0.0
  %666 = vmatpush1.msra.mxu0 %v646
  %667 = vmatprep.subr.mxu0 0.0
  %668 = vmatpush1.msra.mxu0 %v647
  %669 = vmatprep.subr.mxu0 0.0
  %670 = vmatpush1.msra.mxu0 %v648
  %671 = vmatprep.subr.mxu0 0.0
  %672 = vmatpush1.msra.mxu0 %v649
  %673 = vmatprep.subr.mxu0 0.0
  %674 = vmatpush1.msra.mxu0 %v650
  %675 = vmatprep.subr.mxu0 0.0
  %676 = vmatpush1.msra.mxu0 %v651
  %677 = vmatprep.subr.mxu0 0.0
  %678 = vmatpush1.msra.mxu0 %v652
  %679 = vmatprep.subr.mxu0 0.0
  %680 = vmatpush1.msra.mxu0 %v653
  %681 = vmatprep.subr.mxu0 0.0
  %682 = vmatpush1.msra.mxu0 %v654
  %683 = vmatprep.subr.mxu0 0.0
  %684 = vmatpush1.msra.mxu0 %v655
  %685 = vmatprep.subr.mxu0 0.0
  %686 = vmatpush1.msra.mxu0 %v656
  %687 = vmatprep.subr.mxu0 0.0
  %688 = vmatpush1.msra.mxu0 %v657
  %689 = vmatprep.subr.mxu0 0.0
  %690 = vmatpush1.msra.mxu0 %v658
  %691 = vmatprep.subr.mxu0 0.0
  %692 = vmatpush1.msra.mxu0 0.0
  %693 = vmatprep.subr.mxu0 0.0
  %694 = vmatpush1.msra.mxu0 0.0
  %695 = vmatprep.subr.mxu0 0.0
  %696 = vmatpush1.msra.mxu0 0.0
  %697 = vmatprep.subr.mxu0 0.0
  %698 = vmatpush1.msra.mxu0 0.0
  %699 = vmatprep.subr.mxu0 0.0
  %700 = vmatpush1.msra.mxu0 0.0
  %701 = vmatprep.subr.mxu0 0.0
  %702 = vmatpush1.msra.mxu0 0.0
  %703 = vmatprep.subr.mxu0 0.0
  %704 = vmatpush1.msra.mxu0 0.0
  %705 = vmatprep.subr.mxu0 0.0
  %706 = vmatpush1.msra.mxu0 0.0
  %707 = vmatprep.subr.mxu0 0.0
  %708 = vmatpush1.msra.mxu0 0.0
  %709 = vmatprep.subr.mxu0 0.0
  %710 = vmatpush1.msra.mxu0 0.0
  %711 = vmatprep.subr.mxu0 0.0
  %712 = vmatpush1.msra.mxu0 0.0
  %713 = vmatprep.subr.mxu0 0.0
  %714 = vmatpush1.msra.mxu0 0.0
  %715 = vmatprep.subr.mxu0 0.0
  %716 = vmatpush1.msra.mxu0 0.0
  %717 = vmatprep.subr.mxu0 0.0
  %718 = vmatpush1.msra.mxu0 0.0
  %719 = vmatprep.subr.mxu0 0.0
  %720 = vmatpush1.msra.mxu0 0.0
  %721 = vmatprep.subr.mxu0 0.0
  %722 = vmatpush1.msra.mxu0 0.0
  %723 = vmatprep.mubr.f32.mxu0 0.0
  %724 = vmatmul.mubr.f32.gmra.mrb[0].mxu0 %v624
  %v725 = vpop.f32.mrb[0].mxu0
  %v726 = vadd.f32 0.0, %v725
  %v727 = vpop.f32.mrb[0].mxu0
  %728 = vmatprep.mubr.f32.mxu0 0.0
  %729 = vmatmul.mubr.f32.gmra.mrb[0].mxu0 %v625
  %v730 = vpop.f32.mrb[0].mxu0
  %v731 = vadd.f32 0.0, %v730
  %v732 = vpop.f32.mrb[0].mxu0
  %733 = vmatprep.mubr.f32.mxu0 0.0
  %734 = vmatmul.mubr.f32.gmra.mrb[0].mxu0 %v626
  %v735 = vpop.f32.mrb[0].mxu0
  %v736 = vadd.f32 0.0, %v735
  %v737 = vpop.f32.mrb[0].mxu0
  %738 = vmatprep.mubr.f32.mxu0 0.0
  %739 = vmatmul.mubr.f32.gmra.mrb[0].mxu0 %v627
  %v740 = vpop.f32.mrb[0].mxu0
  %v741 = vadd.f32 0.0, %v740
  %v742 = vpop.f32.mrb[0].mxu0
  %743 = vmatprep.mubr.f32.mxu0 0.0
  %744 = vmatmul.mubr.f32.gmra.mrb[0].mxu0 %v628
  %v745 = vpop.f32.mrb[0].mxu0
  %v746 = vadd.f32 0.0, %v745
  %v747 = vpop.f32.mrb[0].mxu0
  %748 = vmatprep.mubr.f32.mxu0 0.0
  %749 = vmatmul.mubr.f32.gmra.mrb[0].mxu0 %v629
  %v750 = vpop.f32.mrb[0].mxu0
  %v751 = vadd.f32 0.0, %v750
  %v752 = vpop.f32.mrb[0].mxu0
  %753 = vmatprep.mubr.f32.mxu0 0.0
  %754 = vmatmul.mubr.f32.gmra.mrb[0].mxu0 %v630
  %v755 = vpop.f32.mrb[0].mxu0
  %v756 = vadd.f32 0.0, %v755
  %v757 = vpop.f32.mrb[0].mxu0
  %758 = vmatprep.mubr.f32.mxu0 0.0
  %759 = vmatmul.mubr.f32.gmra.mrb[0].mxu0 %v631
  %v760 = vpop.f32.mrb[0].mxu0
  %v761 = vadd.f32 0.0, %v760
  %v762 = vpop.f32.mrb[0].mxu0
  %763 = vmatprep.mubr.f32.mxu0 0.0
  %764 = vmatmul.mubr.f32.gmra.mrb[0].mxu0 %v632
  %v765 = vpop.f32.mrb[0].mxu0
  %v766 = vadd.f32 0.0, %v765
  %v767 = vpop.f32.mrb[0].mxu0
  %768 = vmatprep.mubr.f32.mxu0 0.0
  %769 = vmatmul.mubr.f32.gmra.mrb[0].mxu0 %v633
  %v770 = vpop.f32.mrb[0].mxu0
  %v771 = vadd.f32 0.0, %v770
  %v772 = vpop.f32.mrb[0].mxu0
  %773 = vmatprep.mubr.f32.mxu0 0.0
  %774 = vmatmul.mubr.f32.gmra.mrb[0].mxu0 %v634
  %v775 = vpop.f32.mrb[0].mxu0
  %v776 = vadd.f32 0.0, %v775
  %v777 = vpop.f32.mrb[0].mxu0
  %778 = vmatprep.mubr.f32.mxu0 0.0
  %779 = vmatmul.mubr.f32.gmra.mrb[0].mxu0 %v635
  %v780 = vpop.f32.mrb[0].mxu0
  %v781 = vadd.f32 0.0, %v780
  %v782 = vpop.f32.mrb[0].mxu0
  %783 = vmatprep.mubr.f32.mxu0 0.0
  %784 = vmatmul.mubr.f32.gmra.mrb[0].mxu0 %v636
  %v785 = vpop.f32.mrb[0].mxu0
  %v786 = vadd.f32 0.0, %v785
  %v787 = vpop.f32.mrb[0].mxu0
  %788 = vmatprep.mubr.f32.mxu0 0.0
  %789 = vmatmul.mubr.f32.gmra.mrb[0].mxu0 %v637
  %v790 = vpop.f32.mrb[0].mxu0
  %v791 = vadd.f32 0.0, %v790
  %v792 = vpop.f32.mrb[0].mxu0
  %793 = vmatprep.mubr.f32.mxu0 0.0
  %794 = vmatmul.mubr.f32.gmra.mrb[0].mxu0 %v638
  %v795 = vpop.f32.mrb[0].mxu0
  %v796 = vadd.f32 0.0, %v795
  %v797 = vpop.f32.mrb[0].mxu0
  %798 = vmatprep.mubr.f32.mxu0 0.0
  %799 = vmatmul.mubr.f32.gmra.mrb[0].mxu0 %v639
  %v800 = vpop.f32.mrb[0].mxu0
  %v801 = vadd.f32 0.0, %v800
  %v802 = vpop.f32.mrb[0].mxu0
  %803 = vmatprep.mubr.f32.mxu0 0.0
  %804 = vmatmul.mubr.f32.gmra.mrb[0].mxu0 %v640
  %v805 = vpop.f32.mrb[0].mxu0
  %v806 = vadd.f32 0.0, %v805
  %v807 = vpop.f32.mrb[0].mxu0
  %808 = vmatprep.mubr.f32.mxu0 0.0
  %809 = vmatmul.mubr.f32.gmra.mrb[0].mxu0 %v641
  %v810 = vpop.f32.mrb[0].mxu0
  %v811 = vadd.f32 0.0, %v810
  %v812 = vpop.f32.mrb[0].mxu0
  %813 = vmatprep.mubr.f32.mxu0 0.0
  %814 = vmatmul.mubr.f32.gmra.mrb[0].mxu0 %v642
  %v815 = vpop.f32.mrb[0].mxu0
  %v816 = vadd.f32 0.0, %v815
  %v817 = vpop.f32.mrb[0].mxu0
  %818 = vdwg.mxu0
  %v819 = vadd.f32 %v605, %v726
  %v820 = vadd.f32 %v606, %v731
  %v821 = vadd.f32 %v607, %v736
  %v822 = vadd.f32 %v608, %v741
  %v823 = vadd.f32 %v609, %v746
  %v824 = vadd.f32 %v610, %v751
  %v825 = vadd.f32 %v611, %v756
  %v826 = vadd.f32 %v612, %v761
  %v827 = vadd.f32 %v613, %v766
  %v828 = vadd.f32 %v614, %v771
  %v829 = vadd.f32 %v615, %v776
  %v830 = vadd.f32 %v616, %v781
  %v831 = vadd.f32 %v617, %v786
  %v832 = vadd.f32 %v618, %v791
  %v833 = vadd.f32 %v619, %v796
  %v834 = vadd.f32 %v620, %v801
  %v835 = vadd.f32 %v621, %v806
  %v836 = vadd.f32 %v622, %v811
  %v837 = vadd.f32 %v623, %v816
  %v838 = vld [vmem:[%s0 + $0xa] sm:$0xff]
  %v839 = vld [vmem:[%s0 + $0x12] sm:$0xff]
  %v840 = vld [vmem:[%s0 + $0x1a] sm:$0xff]
  %v841 = vld [vmem:[%s0 + $0x22] sm:$0xff]
  %v842 = vld [vmem:[%s0 + $0x2a] sm:$0xff]
  %v843 = vld [vmem:[%s0 + $0x32] sm:$0xff]
  %v844 = vld [vmem:[%s0 + $0x3a] sm:$0xff]
  %v845 = vld [vmem:[%s0 + $0x42] sm:$0xff]
  %v846 = vld [vmem:[%s0 + $0x4a] sm:$0xff]
  %v847 = vld [vmem:[%s0 + $0x52] sm:$0xff]
  %v848 = vld [vmem:[%s0 + $0x5a] sm:$0xff]
  %v849 = vld [vmem:[%s0 + $0x62] sm:$0xff]
  %v850 = vld [vmem:[%s0 + $0x6a] sm:$0xff]
  %v851 = vld [vmem:[%s0 + $0x72] sm:$0xff]
  %v852 = vld [vmem:[%s0 + $0x7a] sm:$0xff]
  %v853 = vld [vmem:[%s0 + $0x82] sm:$0xff]
  %v854 = vld [vmem:[%s0 + $0x8a] sm:$0xff]
  %v855 = vld [vmem:[%s0 + $0x92] sm:$0xff]
  %v856 = vld [vmem:[%s0 + $0x9a] sm:$0xff]
  %v857 = vld [vmem:[%s2 + $0x200] sm:$0xff]
  %v858 = vld [vmem:[%s2 + $0x208] sm:$0xff]
  %v859 = vld [vmem:[%s2 + $0x210] sm:$0xff]
  %v860 = vld [vmem:[%s2 + $0x218] sm:$0xff]
  %v861 = vld [vmem:[%s2 + $0x220] sm:$0xff]
  %v862 = vld [vmem:[%s2 + $0x228] sm:$0xff]
  %v863 = vld [vmem:[%s2 + $0x230] sm:$0xff]
  %v864 = vld [vmem:[%s2 + $0x238] sm:$0xff]
  %v865 = vld [vmem:[%s2 + $0x240] sm:$0xff]
  %v866 = vld [vmem:[%s2 + $0x248] sm:$0xff]
  %v867 = vld [vmem:[%s2 + $0x250] sm:$0xff]
  %v868 = vld [vmem:[%s2 + $0x258] sm:$0xff]
  %v869 = vld [vmem:[%s2 + $0x260] sm:$0xff]
  %v870 = vld [vmem:[%s2 + $0x268] sm:$0xff]
  %v871 = vld [vmem:[%s2 + $0x270] sm:$0xff]
  %v872 = vld [vmem:[%s2 + $0x278] sm:$0xff]
  %873 = vmatprep.subr.mxu0 0.0
  %874 = vmatpush1.msra.mxu0 %v857
  %875 = vmatprep.subr.mxu0 0.0
  %876 = vmatpush1.msra.mxu0 %v858
  %877 = vmatprep.subr.mxu0 0.0
  %878 = vmatpush1.msra.mxu0 %v859
  %879 = vmatprep.subr.mxu0 0.0
  %880 = vmatpush1.msra.mxu0 %v860
  %881 = vmatprep.subr.mxu0 0.0
  %882 = vmatpush1.msra.mxu0 %v861
  %883 = vmatprep.subr.mxu0 0.0
  %884 = vmatpush1.msra.mxu0 %v862
  %885 = vmatprep.subr.mxu0 0.0
  %886 = vmatpush1.msra.mxu0 %v863
  %887 = vmatprep.subr.mxu0 0.0
  %888 = vmatpush1.msra.mxu0 %v864
  %889 = vmatprep.subr.mxu0 0.0
  %890 = vmatpush1.msra.mxu0 %v865
  %891 = vmatprep.subr.mxu0 0.0
  %892 = vmatpush1.msra.mxu0 %v866
  %893 = vmatprep.subr.mxu0 0.0
  %894 = vmatpush1.msra.mxu0 %v867
  %895 = vmatprep.subr.mxu0 0.0
  %896 = vmatpush1.msra.mxu0 %v868
  %897 = vmatprep.subr.mxu0 0.0
  %898 = vmatpush1.msra.mxu0 %v869
  %899 = vmatprep.subr.mxu0 0.0
  %900 = vmatpush1.msra.mxu0 %v870
  %901 = vmatprep.subr.mxu0 0.0
  %902 = vmatpush1.msra.mxu0 %v871
  %903 = vmatprep.subr.mxu0 0.0
  %904 = vmatpush1.msra.mxu0 %v872
  %905 = vmatprep.subr.mxu0 0.0
  %906 = vmatpush1.msra.mxu0 0.0
  %907 = vmatprep.subr.mxu0 0.0
  %908 = vmatpush1.msra.mxu0 0.0
  %909 = vmatprep.subr.mxu0 0.0
  %910 = vmatpush1.msra.mxu0 0.0
  %911 = vmatprep.subr.mxu0 0.0
  %912 = vmatpush1.msra.mxu0 0.0
  %913 = vmatprep.subr.mxu0 0.0
  %914 = vmatpush1.msra.mxu0 0.0
  %915 = vmatprep.subr.mxu0 0.0
  %916 = vmatpush1.msra.mxu0 0.0
  %917 = vmatprep.subr.mxu0 0.0
  %918 = vmatpush1.msra.mxu0 0.0
  %919 = vmatprep.subr.mxu0 0.0
  %920 = vmatpush1.msra.mxu0 0.0
  %921 = vmatprep.subr.mxu0 0.0
  %922 = vmatpush1.msra.mxu0 0.0
  %923 = vmatprep.subr.mxu0 0.0
  %924 = vmatpush1.msra.mxu0 0.0
  %925 = vmatprep.subr.mxu0 0.0
  %926 = vmatpush1.msra.mxu0 0.0
  %927 = vmatprep.subr.mxu0 0.0
  %928 = vmatpush1.msra.mxu0 0.0
  %929 = vmatprep.subr.mxu0 0.0
  %930 = vmatpush1.msra.mxu0 0.0
  %931 = vmatprep.subr.mxu0 0.0
  %932 = vmatpush1.msra.mxu0 0.0
  %933 = vmatprep.subr.mxu0 0.0
  %934 = vmatpush1.msra.mxu0 0.0
  %935 = vmatprep.subr.mxu0 0.0
  %936 = vmatpush1.msra.mxu0 0.0
  %937 = vmatprep.mubr.f32.mxu0 0.0
  %938 = vmatmul.mubr.f32.gmra.mrb[0].mxu0 %v838
  %v939 = vpop.f32.mrb[0].mxu0
  %v940 = vadd.f32 0.0, %v939
  %v941 = vpop.f32.mrb[0].mxu0
  %942 = vmatprep.mubr.f32.mxu0 0.0
  %943 = vmatmul.mubr.f32.gmra.mrb[0].mxu0 %v839
  %v944 = vpop.f32.mrb[0].mxu0
  %v945 = vadd.f32 0.0, %v944
  %v946 = vpop.f32.mrb[0].mxu0
  %947 = vmatprep.mubr.f32.mxu0 0.0
  %948 = vmatmul.mubr.f32.gmra.mrb[0].mxu0 %v840
  %v949 = vpop.f32.mrb[0].mxu0
  %v950 = vadd.f32 0.0, %v949
  %v951 = vpop.f32.mrb[0].mxu0
  %952 = vmatprep.mubr.f32.mxu0 0.0
  %953 = vmatmul.mubr.f32.gmra.mrb[0].mxu0 %v841
  %v954 = vpop.f32.mrb[0].mxu0
  %v955 = vadd.f32 0.0, %v954
  %v956 = vpop.f32.mrb[0].mxu0
  %957 = vmatprep.mubr.f32.mxu0 0.0
  %958 = vmatmul.mubr.f32.gmra.mrb[0].mxu0 %v842
  %v959 = vpop.f32.mrb[0].mxu0
  %v960 = vadd.f32 0.0, %v959
  %v961 = vpop.f32.mrb[0].mxu0
  %962 = vmatprep.mubr.f32.mxu0 0.0
  %963 = vmatmul.mubr.f32.gmra.mrb[0].mxu0 %v843
  %v964 = vpop.f32.mrb[0].mxu0
  %v965 = vadd.f32 0.0, %v964
  %v966 = vpop.f32.mrb[0].mxu0
  %967 = vmatprep.mubr.f32.mxu0 0.0
  %968 = vmatmul.mubr.f32.gmra.mrb[0].mxu0 %v844
  %v969 = vpop.f32.mrb[0].mxu0
  %v970 = vadd.f32 0.0, %v969
  %v971 = vpop.f32.mrb[0].mxu0
  %972 = vmatprep.mubr.f32.mxu0 0.0
  %973 = vmatmul.mubr.f32.gmra.mrb[0].mxu0 %v845
  %v974 = vpop.f32.mrb[0].mxu0
  %v975 = vadd.f32 0.0, %v974
  %v976 = vpop.f32.mrb[0].mxu0
  %977 = vmatprep.mubr.f32.mxu0 0.0
  %978 = vmatmul.mubr.f32.gmra.mrb[0].mxu0 %v846
  %v979 = vpop.f32.mrb[0].mxu0
  %v980 = vadd.f32 0.0, %v979
  %v981 = vpop.f32.mrb[0].mxu0
  %982 = vmatprep.mubr.f32.mxu0 0.0
  %983 = vmatmul.mubr.f32.gmra.mrb[0].mxu0 %v847
  %v984 = vpop.f32.mrb[0].mxu0
  %v985 = vadd.f32 0.0, %v984
  %v986 = vpop.f32.mrb[0].mxu0
  %987 = vmatprep.mubr.f32.mxu0 0.0
  %988 = vmatmul.mubr.f32.gmra.mrb[0].mxu0 %v848
  %v989 = vpop.f32.mrb[0].mxu0
  %v990 = vadd.f32 0.0, %v989
  %v991 = vpop.f32.mrb[0].mxu0
  %992 = vmatprep.mubr.f32.mxu0 0.0
  %993 = vmatmul.mubr.f32.gmra.mrb[0].mxu0 %v849
  %v994 = vpop.f32.mrb[0].mxu0
  %v995 = vadd.f32 0.0, %v994
  %v996 = vpop.f32.mrb[0].mxu0
  %997 = vmatprep.mubr.f32.mxu0 0.0
  %998 = vmatmul.mubr.f32.gmra.mrb[0].mxu0 %v850
  %v999 = vpop.f32.mrb[0].mxu0
  %v1000 = vadd.f32 0.0, %v999
  %v1001 = vpop.f32.mrb[0].mxu0
  %1002 = vmatprep.mubr.f32.mxu0 0.0
  %1003 = vmatmul.mubr.f32.gmra.mrb[0].mxu0 %v851
  %v1004 = vpop.f32.mrb[0].mxu0
  %v1005 = vadd.f32 0.0, %v1004
  %v1006 = vpop.f32.mrb[0].mxu0
  %1007 = vmatprep.mubr.f32.mxu0 0.0
  %1008 = vmatmul.mubr.f32.gmra.mrb[0].mxu0 %v852
  %v1009 = vpop.f32.mrb[0].mxu0
  %v1010 = vadd.f32 0.0, %v1009
  %v1011 = vpop.f32.mrb[0].mxu0
  %1012 = vmatprep.mubr.f32.mxu0 0.0
  %1013 = vmatmul.mubr.f32.gmra.mrb[0].mxu0 %v853
  %v1014 = vpop.f32.mrb[0].mxu0
  %v1015 = vadd.f32 0.0, %v1014
  %v1016 = vpop.f32.mrb[0].mxu0
  %1017 = vmatprep.mubr.f32.mxu0 0.0
  %1018 = vmatmul.mubr.f32.gmra.mrb[0].mxu0 %v854
  %v1019 = vpop.f32.mrb[0].mxu0
  %v1020 = vadd.f32 0.0, %v1019
  %v1021 = vpop.f32.mrb[0].mxu0
  %1022 = vmatprep.mubr.f32.mxu0 0.0
  %1023 = vmatmul.mubr.f32.gmra.mrb[0].mxu0 %v855
  %v1024 = vpop.f32.mrb[0].mxu0
  %v1025 = vadd.f32 0.0, %v1024
  %v1026 = vpop.f32.mrb[0].mxu0
  %1027 = vmatprep.mubr.f32.mxu0 0.0
  %1028 = vmatmul.mubr.f32.gmra.mrb[0].mxu0 %v856
  %v1029 = vpop.f32.mrb[0].mxu0
  %v1030 = vadd.f32 0.0, %v1029
  %v1031 = vpop.f32.mrb[0].mxu0
  %1032 = vdwg.mxu0
  %v1033 = vadd.f32 %v819, %v940
  %v1034 = vadd.f32 %v820, %v945
  %v1035 = vadd.f32 %v821, %v950
  %v1036 = vadd.f32 %v822, %v955
  %v1037 = vadd.f32 %v823, %v960
  %v1038 = vadd.f32 %v824, %v965
  %v1039 = vadd.f32 %v825, %v970
  %v1040 = vadd.f32 %v826, %v975
  %v1041 = vadd.f32 %v827, %v980
  %v1042 = vadd.f32 %v828, %v985
  %v1043 = vadd.f32 %v829, %v990
  %v1044 = vadd.f32 %v830, %v995
  %v1045 = vadd.f32 %v831, %v1000
  %v1046 = vadd.f32 %v832, %v1005
  %v1047 = vadd.f32 %v833, %v1010
  %v1048 = vadd.f32 %v834, %v1015
  %v1049 = vadd.f32 %v835, %v1020
  %v1050 = vadd.f32 %v836, %v1025
  %v1051 = vadd.f32 %v837, %v1030
  %v1052 = vld [vmem:[%s0 + $0xb] sm:$0xff]
  %v1053 = vld [vmem:[%s0 + $0x13] sm:$0xff]
  %v1054 = vld [vmem:[%s0 + $0x1b] sm:$0xff]
  %v1055 = vld [vmem:[%s0 + $0x23] sm:$0xff]
  %v1056 = vld [vmem:[%s0 + $0x2b] sm:$0xff]
  %v1057 = vld [vmem:[%s0 + $0x33] sm:$0xff]
  %v1058 = vld [vmem:[%s0 + $0x3b] sm:$0xff]
  %v1059 = vld [vmem:[%s0 + $0x43] sm:$0xff]
  %v1060 = vld [vmem:[%s0 + $0x4b] sm:$0xff]
  %v1061 = vld [vmem:[%s0 + $0x53] sm:$0xff]
  %v1062 = vld [vmem:[%s0 + $0x5b] sm:$0xff]
  %v1063 = vld [vmem:[%s0 + $0x63] sm:$0xff]
  %v1064 = vld [vmem:[%s0 + $0x6b] sm:$0xff]
  %v1065 = vld [vmem:[%s0 + $0x73] sm:$0xff]
  %v1066 = vld [vmem:[%s0 + $0x7b] sm:$0xff]
  %v1067 = vld [vmem:[%s0 + $0x83] sm:$0xff]
  %v1068 = vld [vmem:[%s0 + $0x8b] sm:$0xff]
  %v1069 = vld [vmem:[%s0 + $0x93] sm:$0xff]
  %v1070 = vld [vmem:[%s0 + $0x9b] sm:$0xff]
  %v1071 = vld [vmem:[%s2 + $0x280] sm:$0xff]
  %v1072 = vld [vmem:[%s2 + $0x288] sm:$0xff]
  %v1073 = vld [vmem:[%s2 + $0x290] sm:$0xff]
  %v1074 = vld [vmem:[%s2 + $0x298] sm:$0xff]
  %v1075 = vld [vmem:[%s2 + $0x2a0] sm:$0xff]
  %v1076 = vld [vmem:[%s2 + $0x2a8] sm:$0xff]
  %v1077 = vld [vmem:[%s2 + $0x2b0] sm:$0xff]
  %v1078 = vld [vmem:[%s2 + $0x2b8] sm:$0xff]
  %v1079 = vld [vmem:[%s2 + $0x2c0] sm:$0xff]
  %v1080 = vld [vmem:[%s2 + $0x2c8] sm:$0xff]
  %v1081 = vld [vmem:[%s2 + $0x2d0] sm:$0xff]
  %v1082 = vld [vmem:[%s2 + $0x2d8] sm:$0xff]
  %v1083 = vld [vmem:[%s2 + $0x2e0] sm:$0xff]
  %v1084 = vld [vmem:[%s2 + $0x2e8] sm:$0xff]
  %v1085 = vld [vmem:[%s2 + $0x2f0] sm:$0xff]
  %v1086 = vld [vmem:[%s2 + $0x2f8] sm:$0xff]
  %1087 = vmatprep.subr.mxu0 0.0
  %1088 = vmatpush1.msra.mxu0 %v1071
  %1089 = vmatprep.subr.mxu0 0.0
  %1090 = vmatpush1.msra.mxu0 %v1072
  %1091 = vmatprep.subr.mxu0 0.0
  %1092 = vmatpush1.msra.mxu0 %v1073
  %1093 = vmatprep.subr.mxu0 0.0
  %1094 = vmatpush1.msra.mxu0 %v1074
  %1095 = vmatprep.subr.mxu0 0.0
  %1096 = vmatpush1.msra.mxu0 %v1075
  %1097 = vmatprep.subr.mxu0 0.0
  %1098 = vmatpush1.msra.mxu0 %v1076
  %1099 = vmatprep.subr.mxu0 0.0
  %1100 = vmatpush1.msra.mxu0 %v1077
  %1101 = vmatprep.subr.mxu0 0.0
  %1102 = vmatpush1.msra.mxu0 %v1078
  %1103 = vmatprep.subr.mxu0 0.0
  %1104 = vmatpush1.msra.mxu0 %v1079
  %1105 = vmatprep.subr.mxu0 0.0
  %1106 = vmatpush1.msra.mxu0 %v1080
  %1107 = vmatprep.subr.mxu0 0.0
  %1108 = vmatpush1.msra.mxu0 %v1081
  %1109 = vmatprep.subr.mxu0 0.0
  %1110 = vmatpush1.msra.mxu0 %v1082
  %1111 = vmatprep.subr.mxu0 0.0
  %1112 = vmatpush1.msra.mxu0 %v1083
  %1113 = vmatprep.subr.mxu0 0.0
  %1114 = vmatpush1.msra.mxu0 %v1084
  %1115 = vmatprep.subr.mxu0 0.0
  %1116 = vmatpush1.msra.mxu0 %v1085
  %1117 = vmatprep.subr.mxu0 0.0
  %1118 = vmatpush1.msra.mxu0 %v1086
  %1119 = vmatprep.subr.mxu0 0.0
  %1120 = vmatpush1.msra.mxu0 0.0
  %1121 = vmatprep.subr.mxu0 0.0
  %1122 = vmatpush1.msra.mxu0 0.0
  %1123 = vmatprep.subr.mxu0 0.0
  %1124 = vmatpush1.msra.mxu0 0.0
  %1125 = vmatprep.subr.mxu0 0.0
  %1126 = vmatpush1.msra.mxu0 0.0
  %1127 = vmatprep.subr.mxu0 0.0
  %1128 = vmatpush1.msra.mxu0 0.0
  %1129 = vmatprep.subr.mxu0 0.0
  %1130 = vmatpush1.msra.mxu0 0.0
  %1131 = vmatprep.subr.mxu0 0.0
  %1132 = vmatpush1.msra.mxu0 0.0
  %1133 = vmatprep.subr.mxu0 0.0
  %1134 = vmatpush1.msra.mxu0 0.0
  %1135 = vmatprep.subr.mxu0 0.0
  %1136 = vmatpush1.msra.mxu0 0.0
  %1137 = vmatprep.subr.mxu0 0.0
  %1138 = vmatpush1.msra.mxu0 0.0
  %1139 = vmatprep.subr.mxu0 0.0
  %1140 = vmatpush1.msra.mxu0 0.0
  %1141 = vmatprep.subr.mxu0 0.0
  %1142 = vmatpush1.msra.mxu0 0.0
  %1143 = vmatprep.subr.mxu0 0.0
  %1144 = vmatpush1.msra.mxu0 0.0
  %1145 = vmatprep.subr.mxu0 0.0
  %1146 = vmatpush1.msra.mxu0 0.0
  %1147 = vmatprep.subr.mxu0 0.0
  %1148 = vmatpush1.msra.mxu0 0.0
  %1149 = vmatprep.subr.mxu0 0.0
  %1150 = vmatpush1.msra.mxu0 0.0
  %1151 = vmatprep.mubr.f32.mxu0 0.0
  %1152 = vmatmul.mubr.f32.gmra.mrb[0].mxu0 %v1052
  %v1153 = vpop.f32.mrb[0].mxu0
  %v1154 = vadd.f32 0.0, %v1153
  %v1155 = vpop.f32.mrb[0].mxu0
  %1156 = vmatprep.mubr.f32.mxu0 0.0
  %1157 = vmatmul.mubr.f32.gmra.mrb[0].mxu0 %v1053
  %v1158 = vpop.f32.mrb[0].mxu0
  %v1159 = vadd.f32 0.0, %v1158
  %v1160 = vpop.f32.mrb[0].mxu0
  %1161 = vmatprep.mubr.f32.mxu0 0.0
  %1162 = vmatmul.mubr.f32.gmra.mrb[0].mxu0 %v1054
  %v1163 = vpop.f32.mrb[0].mxu0
  %v1164 = vadd.f32 0.0, %v1163
  %v1165 = vpop.f32.mrb[0].mxu0
  %1166 = vmatprep.mubr.f32.mxu0 0.0
  %1167 = vmatmul.mubr.f32.gmra.mrb[0].mxu0 %v1055
  %v1168 = vpop.f32.mrb[0].mxu0
  %v1169 = vadd.f32 0.0, %v1168
  %v1170 = vpop.f32.mrb[0].mxu0
  %1171 = vmatprep.mubr.f32.mxu0 0.0
  %1172 = vmatmul.mubr.f32.gmra.mrb[0].mxu0 %v1056
  %v1173 = vpop.f32.mrb[0].mxu0
  %v1174 = vadd.f32 0.0, %v1173
  %v1175 = vpop.f32.mrb[0].mxu0
  %1176 = vmatprep.mubr.f32.mxu0 0.0
  %1177 = vmatmul.mubr.f32.gmra.mrb[0].mxu0 %v1057
  %v1178 = vpop.f32.mrb[0].mxu0
  %v1179 = vadd.f32 0.0, %v1178
  %v1180 = vpop.f32.mrb[0].mxu0
  %1181 = vmatprep.mubr.f32.mxu0 0.0
  %1182 = vmatmul.mubr.f32.gmra.mrb[0].mxu0 %v1058
  %v1183 = vpop.f32.mrb[0].mxu0
  %v1184 = vadd.f32 0.0, %v1183
  %v1185 = vpop.f32.mrb[0].mxu0
  %1186 = vmatprep.mubr.f32.mxu0 0.0
  %1187 = vmatmul.mubr.f32.gmra.mrb[0].mxu0 %v1059
  %v1188 = vpop.f32.mrb[0].mxu0
  %v1189 = vadd.f32 0.0, %v1188
  %v1190 = vpop.f32.mrb[0].mxu0
  %1191 = vmatprep.mubr.f32.mxu0 0.0
  %1192 = vmatmul.mubr.f32.gmra.mrb[0].mxu0 %v1060
  %v1193 = vpop.f32.mrb[0].mxu0
  %v1194 = vadd.f32 0.0, %v1193
  %v1195 = vpop.f32.mrb[0].mxu0
  %1196 = vmatprep.mubr.f32.mxu0 0.0
  %1197 = vmatmul.mubr.f32.gmra.mrb[0].mxu0 %v1061
  %v1198 = vpop.f32.mrb[0].mxu0
  %v1199 = vadd.f32 0.0, %v1198
  %v1200 = vpop.f32.mrb[0].mxu0
  %1201 = vmatprep.mubr.f32.mxu0 0.0
  %1202 = vmatmul.mubr.f32.gmra.mrb[0].mxu0 %v1062
  %v1203 = vpop.f32.mrb[0].mxu0
  %v1204 = vadd.f32 0.0, %v1203
  %v1205 = vpop.f32.mrb[0].mxu0
  %1206 = vmatprep.mubr.f32.mxu0 0.0
  %1207 = vmatmul.mubr.f32.gmra.mrb[0].mxu0 %v1063
  %v1208 = vpop.f32.mrb[0].mxu0
  %v1209 = vadd.f32 0.0, %v1208
  %v1210 = vpop.f32.mrb[0].mxu0
  %1211 = vmatprep.mubr.f32.mxu0 0.0
  %1212 = vmatmul.mubr.f32.gmra.mrb[0].mxu0 %v1064
  %v1213 = vpop.f32.mrb[0].mxu0
  %v1214 = vadd.f32 0.0, %v1213
  %v1215 = vpop.f32.mrb[0].mxu0
  %1216 = vmatprep.mubr.f32.mxu0 0.0
  %1217 = vmatmul.mubr.f32.gmra.mrb[0].mxu0 %v1065
  %v1218 = vpop.f32.mrb[0].mxu0
  %v1219 = vadd.f32 0.0, %v1218
  %v1220 = vpop.f32.mrb[0].mxu0
  %1221 = vmatprep.mubr.f32.mxu0 0.0
  %1222 = vmatmul.mubr.f32.gmra.mrb[0].mxu0 %v1066
  %v1223 = vpop.f32.mrb[0].mxu0
  %v1224 = vadd.f32 0.0, %v1223
  %v1225 = vpop.f32.mrb[0].mxu0
  %1226 = vmatprep.mubr.f32.mxu0 0.0
  %1227 = vmatmul.mubr.f32.gmra.mrb[0].mxu0 %v1067
  %v1228 = vpop.f32.mrb[0].mxu0
  %v1229 = vadd.f32 0.0, %v1228
  %v1230 = vpop.f32.mrb[0].mxu0
  %1231 = vmatprep.mubr.f32.mxu0 0.0
  %1232 = vmatmul.mubr.f32.gmra.mrb[0].mxu0 %v1068
  %v1233 = vpop.f32.mrb[0].mxu0
  %v1234 = vadd.f32 0.0, %v1233
  %v1235 = vpop.f32.mrb[0].mxu0
  %1236 = vmatprep.mubr.f32.mxu0 0.0
  %1237 = vmatmul.mubr.f32.gmra.mrb[0].mxu0 %v1069
  %v1238 = vpop.f32.mrb[0].mxu0
  %v1239 = vadd.f32 0.0, %v1238
  %v1240 = vpop.f32.mrb[0].mxu0
  %1241 = vmatprep.mubr.f32.mxu0 0.0
  %1242 = vmatmul.mubr.f32.gmra.mrb[0].mxu0 %v1070
  %v1243 = vpop.f32.mrb[0].mxu0
  %v1244 = vadd.f32 0.0, %v1243
  %v1245 = vpop.f32.mrb[0].mxu0
  %1246 = vdwg.mxu0
  %v1247 = vadd.f32 %v1033, %v1154
  %v1248 = vadd.f32 %v1034, %v1159
  %v1249 = vadd.f32 %v1035, %v1164
  %v1250 = vadd.f32 %v1036, %v1169
  %v1251 = vadd.f32 %v1037, %v1174
  %v1252 = vadd.f32 %v1038, %v1179
  %v1253 = vadd.f32 %v1039, %v1184
  %v1254 = vadd.f32 %v1040, %v1189
  %v1255 = vadd.f32 %v1041, %v1194
  %v1256 = vadd.f32 %v1042, %v1199
  %v1257 = vadd.f32 %v1043, %v1204
  %v1258 = vadd.f32 %v1044, %v1209
  %v1259 = vadd.f32 %v1045, %v1214
  %v1260 = vadd.f32 %v1046, %v1219
  %v1261 = vadd.f32 %v1047, %v1224
  %v1262 = vadd.f32 %v1048, %v1229
  %v1263 = vadd.f32 %v1049, %v1234
  %v1264 = vadd.f32 %v1050, %v1239
  %v1265 = vadd.f32 %v1051, %v1244
  %v1266 = vld [vmem:[%s0 + $0x12] sm:$0xff]
  %v1267 = vld [vmem:[%s0 + $0x1a] sm:$0xff]
  %v1268 = vld [vmem:[%s0 + $0x22] sm:$0xff]
  %v1269 = vld [vmem:[%s0 + $0x2a] sm:$0xff]
  %v1270 = vld [vmem:[%s0 + $0x32] sm:$0xff]
  %v1271 = vld [vmem:[%s0 + $0x3a] sm:$0xff]
  %v1272 = vld [vmem:[%s0 + $0x42] sm:$0xff]
  %v1273 = vld [vmem:[%s0 + $0x4a] sm:$0xff]
  %v1274 = vld [vmem:[%s0 + $0x52] sm:$0xff]
  %v1275 = vld [vmem:[%s0 + $0x5a] sm:$0xff]
  %v1276 = vld [vmem:[%s0 + $0x62] sm:$0xff]
  %v1277 = vld [vmem:[%s0 + $0x6a] sm:$0xff]
  %v1278 = vld [vmem:[%s0 + $0x72] sm:$0xff]
  %v1279 = vld [vmem:[%s0 + $0x7a] sm:$0xff]
  %v1280 = vld [vmem:[%s0 + $0x82] sm:$0xff]
  %v1281 = vld [vmem:[%s0 + $0x8a] sm:$0xff]
  %v1282 = vld [vmem:[%s0 + $0x92] sm:$0xff]
  %v1283 = vld [vmem:[%s0 + $0x9a] sm:$0xff]
  %v1284 = vld [vmem:[%s0 + $0xa2] sm:$0xff]
  %v1285 = vld [vmem:[%s2 + $0x300] sm:$0xff]
  %v1286 = vld [vmem:[%s2 + $0x308] sm:$0xff]
  %v1287 = vld [vmem:[%s2 + $0x310] sm:$0xff]
  %v1288 = vld [vmem:[%s2 + $0x318] sm:$0xff]
  %v1289 = vld [vmem:[%s2 + $0x320] sm:$0xff]
  %v1290 = vld [vmem:[%s2 + $0x328] sm:$0xff]
  %v1291 = vld [vmem:[%s2 + $0x330] sm:$0xff]
  %v1292 = vld [vmem:[%s2 + $0x338] sm:$0xff]
  %v1293 = vld [vmem:[%s2 + $0x340] sm:$0xff]
  %v1294 = vld [vmem:[%s2 + $0x348] sm:$0xff]
  %v1295 = vld [vmem:[%s2 + $0x350] sm:$0xff]
  %v1296 = vld [vmem:[%s2 + $0x358] sm:$0xff]
  %v1297 = vld [vmem:[%s2 + $0x360] sm:$0xff]
  %v1298 = vld [vmem:[%s2 + $0x368] sm:$0xff]
  %v1299 = vld [vmem:[%s2 + $0x370] sm:$0xff]
  %v1300 = vld [vmem:[%s2 + $0x378] sm:$0xff]
  %1301 = vmatprep.subr.mxu0 0.0
  %1302 = vmatpush1.msra.mxu0 %v1285
  %1303 = vmatprep.subr.mxu0 0.0
  %1304 = vmatpush1.msra.mxu0 %v1286
  %1305 = vmatprep.subr.mxu0 0.0
  %1306 = vmatpush1.msra.mxu0 %v1287
  %1307 = vmatprep.subr.mxu0 0.0
  %1308 = vmatpush1.msra.mxu0 %v1288
  %1309 = vmatprep.subr.mxu0 0.0
  %1310 = vmatpush1.msra.mxu0 %v1289
  %1311 = vmatprep.subr.mxu0 0.0
  %1312 = vmatpush1.msra.mxu0 %v1290
  %1313 = vmatprep.subr.mxu0 0.0
  %1314 = vmatpush1.msra.mxu0 %v1291
  %1315 = vmatprep.subr.mxu0 0.0
  %1316 = vmatpush1.msra.mxu0 %v1292
  %1317 = vmatprep.subr.mxu0 0.0
  %1318 = vmatpush1.msra.mxu0 %v1293
  %1319 = vmatprep.subr.mxu0 0.0
  %1320 = vmatpush1.msra.mxu0 %v1294
  %1321 = vmatprep.subr.mxu0 0.0
  %1322 = vmatpush1.msra.mxu0 %v1295
  %1323 = vmatprep.subr.mxu0 0.0
  %1324 = vmatpush1.msra.mxu0 %v1296
  %1325 = vmatprep.subr.mxu0 0.0
  %1326 = vmatpush1.msra.mxu0 %v1297
  %1327 = vmatprep.subr.mxu0 0.0
  %1328 = vmatpush1.msra.mxu0 %v1298
  %1329 = vmatprep.subr.mxu0 0.0
  %1330 = vmatpush1.msra.mxu0 %v1299
  %1331 = vmatprep.subr.mxu0 0.0
  %1332 = vmatpush1.msra.mxu0 %v1300
  %1333 = vmatprep.subr.mxu0 0.0
  %1334 = vmatpush1.msra.mxu0 0.0
  %1335 = vmatprep.subr.mxu0 0.0
  %1336 = vmatpush1.msra.mxu0 0.0
  %1337 = vmatprep.subr.mxu0 0.0
  %1338 = vmatpush1.msra.mxu0 0.0
  %1339 = vmatprep.subr.mxu0 0.0
  %1340 = vmatpush1.msra.mxu0 0.0
  %1341 = vmatprep.subr.mxu0 0.0
  %1342 = vmatpush1.msra.mxu0 0.0
  %1343 = vmatprep.subr.mxu0 0.0
  %1344 = vmatpush1.msra.mxu0 0.0
  %1345 = vmatprep.subr.mxu0 0.0
  %1346 = vmatpush1.msra.mxu0 0.0
  %1347 = vmatprep.subr.mxu0 0.0
  %1348 = vmatpush1.msra.mxu0 0.0
  %1349 = vmatprep.subr.mxu0 0.0
  %1350 = vmatpush1.msra.mxu0 0.0
  %1351 = vmatprep.subr.mxu0 0.0
  %1352 = vmatpush1.msra.mxu0 0.0
  %1353 = vmatprep.subr.mxu0 0.0
  %1354 = vmatpush1.msra.mxu0 0.0
  %1355 = vmatprep.subr.mxu0 0.0
  %1356 = vmatpush1.msra.mxu0 0.0
  %1357 = vmatprep.subr.mxu0 0.0
  %1358 = vmatpush1.msra.mxu0 0.0
  %1359 = vmatprep.subr.mxu0 0.0
  %1360 = vmatpush1.msra.mxu0 0.0
  %1361 = vmatprep.subr.mxu0 0.0
  %1362 = vmatpush1.msra.mxu0 0.0
  %1363 = vmatprep.subr.mxu0 0.0
  %1364 = vmatpush1.msra.mxu0 0.0
  %1365 = vmatprep.mubr.f32.mxu0 0.0
  %1366 = vmatmul.mubr.f32.gmra.mrb[0].mxu0 %v1266
  %v1367 = vpop.f32.mrb[0].mxu0
  %v1368 = vadd.f32 0.0, %v1367
  %v1369 = vpop.f32.mrb[0].mxu0
  %1370 = vmatprep.mubr.f32.mxu0 0.0
  %1371 = vmatmul.mubr.f32.gmra.mrb[0].mxu0 %v1267
  %v1372 = vpop.f32.mrb[0].mxu0
  %v1373 = vadd.f32 0.0, %v1372
  %v1374 = vpop.f32.mrb[0].mxu0
  %1375 = vmatprep.mubr.f32.mxu0 0.0
  %1376 = vmatmul.mubr.f32.gmra.mrb[0].mxu0 %v1268
  %v1377 = vpop.f32.mrb[0].mxu0
  %v1378 = vadd.f32 0.0, %v1377
  %v1379 = vpop.f32.mrb[0].mxu0
  %1380 = vmatprep.mubr.f32.mxu0 0.0
  %1381 = vmatmul.mubr.f32.gmra.mrb[0].mxu0 %v1269
  %v1382 = vpop.f32.mrb[0].mxu0
  %v1383 = vadd.f32 0.0, %v1382
  %v1384 = vpop.f32.mrb[0].mxu0
  %1385 = vmatprep.mubr.f32.mxu0 0.0
  %1386 = vmatmul.mubr.f32.gmra.mrb[0].mxu0 %v1270
  %v1387 = vpop.f32.mrb[0].mxu0
  %v1388 = vadd.f32 0.0, %v1387
  %v1389 = vpop.f32.mrb[0].mxu0
  %1390 = vmatprep.mubr.f32.mxu0 0.0
  %1391 = vmatmul.mubr.f32.gmra.mrb[0].mxu0 %v1271
  %v1392 = vpop.f32.mrb[0].mxu0
  %v1393 = vadd.f32 0.0, %v1392
  %v1394 = vpop.f32.mrb[0].mxu0
  %1395 = vmatprep.mubr.f32.mxu0 0.0
  %1396 = vmatmul.mubr.f32.gmra.mrb[0].mxu0 %v1272
  %v1397 = vpop.f32.mrb[0].mxu0
  %v1398 = vadd.f32 0.0, %v1397
  %v1399 = vpop.f32.mrb[0].mxu0
  %1400 = vmatprep.mubr.f32.mxu0 0.0
  %1401 = vmatmul.mubr.f32.gmra.mrb[0].mxu0 %v1273
  %v1402 = vpop.f32.mrb[0].mxu0
  %v1403 = vadd.f32 0.0, %v1402
  %v1404 = vpop.f32.mrb[0].mxu0
  %1405 = vmatprep.mubr.f32.mxu0 0.0
  %1406 = vmatmul.mubr.f32.gmra.mrb[0].mxu0 %v1274
  %v1407 = vpop.f32.mrb[0].mxu0
  %v1408 = vadd.f32 0.0, %v1407
  %v1409 = vpop.f32.mrb[0].mxu0
  %1410 = vmatprep.mubr.f32.mxu0 0.0
  %1411 = vmatmul.mubr.f32.gmra.mrb[0].mxu0 %v1275
  %v1412 = vpop.f32.mrb[0].mxu0
  %v1413 = vadd.f32 0.0, %v1412
  %v1414 = vpop.f32.mrb[0].mxu0
  %1415 = vmatprep.mubr.f32.mxu0 0.0
  %1416 = vmatmul.mubr.f32.gmra.mrb[0].mxu0 %v1276
  %v1417 = vpop.f32.mrb[0].mxu0
  %v1418 = vadd.f32 0.0, %v1417
  %v1419 = vpop.f32.mrb[0].mxu0
  %1420 = vmatprep.mubr.f32.mxu0 0.0
  %1421 = vmatmul.mubr.f32.gmra.mrb[0].mxu0 %v1277
  %v1422 = vpop.f32.mrb[0].mxu0
  %v1423 = vadd.f32 0.0, %v1422
  %v1424 = vpop.f32.mrb[0].mxu0
  %1425 = vmatprep.mubr.f32.mxu0 0.0
  %1426 = vmatmul.mubr.f32.gmra.mrb[0].mxu0 %v1278
  %v1427 = vpop.f32.mrb[0].mxu0
  %v1428 = vadd.f32 0.0, %v1427
  %v1429 = vpop.f32.mrb[0].mxu0
  %1430 = vmatprep.mubr.f32.mxu0 0.0
  %1431 = vmatmul.mubr.f32.gmra.mrb[0].mxu0 %v1279
  %v1432 = vpop.f32.mrb[0].mxu0
  %v1433 = vadd.f32 0.0, %v1432
  %v1434 = vpop.f32.mrb[0].mxu0
  %1435 = vmatprep.mubr.f32.mxu0 0.0
  %1436 = vmatmul.mubr.f32.gmra.mrb[0].mxu0 %v1280
  %v1437 = vpop.f32.mrb[0].mxu0
  %v1438 = vadd.f32 0.0, %v1437
  %v1439 = vpop.f32.mrb[0].mxu0
  %1440 = vmatprep.mubr.f32.mxu0 0.0
  %1441 = vmatmul.mubr.f32.gmra.mrb[0].mxu0 %v1281
  %v1442 = vpop.f32.mrb[0].mxu0
  %v1443 = vadd.f32 0.0, %v1442
  %v1444 = vpop.f32.mrb[0].mxu0
  %1445 = vmatprep.mubr.f32.mxu0 0.0
  %1446 = vmatmul.mubr.f32.gmra.mrb[0].mxu0 %v1282
  %v1447 = vpop.f32.mrb[0].mxu0
  %v1448 = vadd.f32 0.0, %v1447
  %v1449 = vpop.f32.mrb[0].mxu0
  %1450 = vmatprep.mubr.f32.mxu0 0.0
  %1451 = vmatmul.mubr.f32.gmra.mrb[0].mxu0 %v1283
  %v1452 = vpop.f32.mrb[0].mxu0
  %v1453 = vadd.f32 0.0, %v1452
  %v1454 = vpop.f32.mrb[0].mxu0
  %1455 = vmatprep.mubr.f32.mxu0 0.0
  %1456 = vmatmul.mubr.f32.gmra.mrb[0].mxu0 %v1284
  %v1457 = vpop.f32.mrb[0].mxu0
  %v1458 = vadd.f32 0.0, %v1457
  %v1459 = vpop.f32.mrb[0].mxu0
  %1460 = vdwg.mxu0
  %v1461 = vadd.f32 %v1247, %v1368
  %v1462 = vadd.f32 %v1248, %v1373
  %v1463 = vadd.f32 %v1249, %v1378
  %v1464 = vadd.f32 %v1250, %v1383
  %v1465 = vadd.f32 %v1251, %v1388
  %v1466 = vadd.f32 %v1252, %v1393
  %v1467 = vadd.f32 %v1253, %v1398
  %v1468 = vadd.f32 %v1254, %v1403
  %v1469 = vadd.f32 %v1255, %v1408
  %v1470 = vadd.f32 %v1256, %v1413
  %v1471 = vadd.f32 %v1257, %v1418
  %v1472 = vadd.f32 %v1258, %v1423
  %v1473 = vadd.f32 %v1259, %v1428
  %v1474 = vadd.f32 %v1260, %v1433
  %v1475 = vadd.f32 %v1261, %v1438
  %v1476 = vadd.f32 %v1262, %v1443
  %v1477 = vadd.f32 %v1263, %v1448
  %v1478 = vadd.f32 %v1264, %v1453
  %v1479 = vadd.f32 %v1265, %v1458
  %v1480 = vld [vmem:[%s0 + $0x13] sm:$0xff]
  %v1481 = vld [vmem:[%s0 + $0x1b] sm:$0xff]
  %v1482 = vld [vmem:[%s0 + $0x23] sm:$0xff]
  %v1483 = vld [vmem:[%s0 + $0x2b] sm:$0xff]
  %v1484 = vld [vmem:[%s0 + $0x33] sm:$0xff]
  %v1485 = vld [vmem:[%s0 + $0x3b] sm:$0xff]
  %v1486 = vld [vmem:[%s0 + $0x43] sm:$0xff]
  %v1487 = vld [vmem:[%s0 + $0x4b] sm:$0xff]
  %v1488 = vld [vmem:[%s0 + $0x53] sm:$0xff]
  %v1489 = vld [vmem:[%s0 + $0x5b] sm:$0xff]
  %v1490 = vld [vmem:[%s0 + $0x63] sm:$0xff]
  %v1491 = vld [vmem:[%s0 + $0x6b] sm:$0xff]
  %v1492 = vld [vmem:[%s0 + $0x73] sm:$0xff]
  %v1493 = vld [vmem:[%s0 + $0x7b] sm:$0xff]
  %v1494 = vld [vmem:[%s0 + $0x83] sm:$0xff]
  %v1495 = vld [vmem:[%s0 + $0x8b] sm:$0xff]
  %v1496 = vld [vmem:[%s0 + $0x93] sm:$0xff]
  %v1497 = vld [vmem:[%s0 + $0x9b] sm:$0xff]
  %v1498 = vld [vmem:[%s0 + $0xa3] sm:$0xff]
  %v1499 = vld [vmem:[%s2 + $0x380] sm:$0xff]
  %v1500 = vld [vmem:[%s2 + $0x388] sm:$0xff]
  %v1501 = vld [vmem:[%s2 + $0x390] sm:$0xff]
  %v1502 = vld [vmem:[%s2 + $0x398] sm:$0xff]
  %v1503 = vld [vmem:[%s2 + $0x3a0] sm:$0xff]
  %v1504 = vld [vmem:[%s2 + $0x3a8] sm:$0xff]
  %v1505 = vld [vmem:[%s2 + $0x3b0] sm:$0xff]
  %v1506 = vld [vmem:[%s2 + $0x3b8] sm:$0xff]
  %v1507 = vld [vmem:[%s2 + $0x3c0] sm:$0xff]
  %v1508 = vld [vmem:[%s2 + $0x3c8] sm:$0xff]
  %v1509 = vld [vmem:[%s2 + $0x3d0] sm:$0xff]
  %v1510 = vld [vmem:[%s2 + $0x3d8] sm:$0xff]
  %v1511 = vld [vmem:[%s2 + $0x3e0] sm:$0xff]
  %v1512 = vld [vmem:[%s2 + $0x3e8] sm:$0xff]
  %v1513 = vld [vmem:[%s2 + $0x3f0] sm:$0xff]
  %v1514 = vld [vmem:[%s2 + $0x3f8] sm:$0xff]
  %1515 = vmatprep.subr.mxu0 0.0
  %1516 = vmatpush1.msra.mxu0 %v1499
  %1517 = vmatprep.subr.mxu0 0.0
  %1518 = vmatpush1.msra.mxu0 %v1500
  %1519 = vmatprep.subr.mxu0 0.0
  %1520 = vmatpush1.msra.mxu0 %v1501
  %1521 = vmatprep.subr.mxu0 0.0
  %1522 = vmatpush1.msra.mxu0 %v1502
  %1523 = vmatprep.subr.mxu0 0.0
  %1524 = vmatpush1.msra.mxu0 %v1503
  %1525 = vmatprep.subr.mxu0 0.0
  %1526 = vmatpush1.msra.mxu0 %v1504
  %1527 = vmatprep.subr.mxu0 0.0
  %1528 = vmatpush1.msra.mxu0 %v1505
  %1529 = vmatprep.subr.mxu0 0.0
  %1530 = vmatpush1.msra.mxu0 %v1506
  %1531 = vmatprep.subr.mxu0 0.0
  %1532 = vmatpush1.msra.mxu0 %v1507
  %1533 = vmatprep.subr.mxu0 0.0
  %1534 = vmatpush1.msra.mxu0 %v1508
  %1535 = vmatprep.subr.mxu0 0.0
  %1536 = vmatpush1.msra.mxu0 %v1509
  %1537 = vmatprep.subr.mxu0 0.0
  %1538 = vmatpush1.msra.mxu0 %v1510
  %1539 = vmatprep.subr.mxu0 0.0
  %1540 = vmatpush1.msra.mxu0 %v1511
  %1541 = vmatprep.subr.mxu0 0.0
  %1542 = vmatpush1.msra.mxu0 %v1512
  %1543 = vmatprep.subr.mxu0 0.0
  %1544 = vmatpush1.msra.mxu0 %v1513
  %1545 = vmatprep.subr.mxu0 0.0
  %1546 = vmatpush1.msra.mxu0 %v1514
  %1547 = vmatprep.subr.mxu0 0.0
  %1548 = vmatpush1.msra.mxu0 0.0
  %1549 = vmatprep.subr.mxu0 0.0
  %1550 = vmatpush1.msra.mxu0 0.0
  %1551 = vmatprep.subr.mxu0 0.0
  %1552 = vmatpush1.msra.mxu0 0.0
  %1553 = vmatprep.subr.mxu0 0.0
  %1554 = vmatpush1.msra.mxu0 0.0
  %1555 = vmatprep.subr.mxu0 0.0
  %1556 = vmatpush1.msra.mxu0 0.0
  %1557 = vmatprep.subr.mxu0 0.0
  %1558 = vmatpush1.msra.mxu0 0.0
  %1559 = vmatprep.subr.mxu0 0.0
  %1560 = vmatpush1.msra.mxu0 0.0
  %1561 = vmatprep.subr.mxu0 0.0
  %1562 = vmatpush1.msra.mxu0 0.0
  %1563 = vmatprep.subr.mxu0 0.0
  %1564 = vmatpush1.msra.mxu0 0.0
  %1565 = vmatprep.subr.mxu0 0.0
  %1566 = vmatpush1.msra.mxu0 0.0
  %1567 = vmatprep.subr.mxu0 0.0
  %1568 = vmatpush1.msra.mxu0 0.0
  %1569 = vmatprep.subr.mxu0 0.0
  %1570 = vmatpush1.msra.mxu0 0.0
  %1571 = vmatprep.subr.mxu0 0.0
  %1572 = vmatpush1.msra.mxu0 0.0
  %1573 = vmatprep.subr.mxu0 0.0
  %1574 = vmatpush1.msra.mxu0 0.0
  %1575 = vmatprep.subr.mxu0 0.0
  %1576 = vmatpush1.msra.mxu0 0.0
  %1577 = vmatprep.subr.mxu0 0.0
  %1578 = vmatpush1.msra.mxu0 0.0
  %1579 = vmatprep.mubr.f32.mxu0 0.0
  %1580 = vmatmul.mubr.f32.gmra.mrb[0].mxu0 %v1480
  %v1581 = vpop.f32.mrb[0].mxu0
  %v1582 = vadd.f32 0.0, %v1581
  %v1583 = vpop.f32.mrb[0].mxu0
  %1584 = vmatprep.mubr.f32.mxu0 0.0
  %1585 = vmatmul.mubr.f32.gmra.mrb[0].mxu0 %v1481
  %v1586 = vpop.f32.mrb[0].mxu0
  %v1587 = vadd.f32 0.0, %v1586
  %v1588 = vpop.f32.mrb[0].mxu0
  %1589 = vmatprep.mubr.f32.mxu0 0.0
  %1590 = vmatmul.mubr.f32.gmra.mrb[0].mxu0 %v1482
  %v1591 = vpop.f32.mrb[0].mxu0
  %v1592 = vadd.f32 0.0, %v1591
  %v1593 = vpop.f32.mrb[0].mxu0
  %1594 = vmatprep.mubr.f32.mxu0 0.0
  %1595 = vmatmul.mubr.f32.gmra.mrb[0].mxu0 %v1483
  %v1596 = vpop.f32.mrb[0].mxu0
  %v1597 = vadd.f32 0.0, %v1596
  %v1598 = vpop.f32.mrb[0].mxu0
  %1599 = vmatprep.mubr.f32.mxu0 0.0
  %1600 = vmatmul.mubr.f32.gmra.mrb[0].mxu0 %v1484
  %v1601 = vpop.f32.mrb[0].mxu0
  %v1602 = vadd.f32 0.0, %v1601
  %v1603 = vpop.f32.mrb[0].mxu0
  %1604 = vmatprep.mubr.f32.mxu0 0.0
  %1605 = vmatmul.mubr.f32.gmra.mrb[0].mxu0 %v1485
  %v1606 = vpop.f32.mrb[0].mxu0
  %v1607 = vadd.f32 0.0, %v1606
  %v1608 = vpop.f32.mrb[0].mxu0
  %1609 = vmatprep.mubr.f32.mxu0 0.0
  %1610 = vmatmul.mubr.f32.gmra.mrb[0].mxu0 %v1486
  %v1611 = vpop.f32.mrb[0].mxu0
  %v1612 = vadd.f32 0.0, %v1611
  %v1613 = vpop.f32.mrb[0].mxu0
  %1614 = vmatprep.mubr.f32.mxu0 0.0
  %1615 = vmatmul.mubr.f32.gmra.mrb[0].mxu0 %v1487
  %v1616 = vpop.f32.mrb[0].mxu0
  %v1617 = vadd.f32 0.0, %v1616
  %v1618 = vpop.f32.mrb[0].mxu0
  %1619 = vmatprep.mubr.f32.mxu0 0.0
  %1620 = vmatmul.mubr.f32.gmra.mrb[0].mxu0 %v1488
  %v1621 = vpop.f32.mrb[0].mxu0
  %v1622 = vadd.f32 0.0, %v1621
  %v1623 = vpop.f32.mrb[0].mxu0
  %1624 = vmatprep.mubr.f32.mxu0 0.0
  %1625 = vmatmul.mubr.f32.gmra.mrb[0].mxu0 %v1489
  %v1626 = vpop.f32.mrb[0].mxu0
  %v1627 = vadd.f32 0.0, %v1626
  %v1628 = vpop.f32.mrb[0].mxu0
  %1629 = vmatprep.mubr.f32.mxu0 0.0
  %1630 = vmatmul.mubr.f32.gmra.mrb[0].mxu0 %v1490
  %v1631 = vpop.f32.mrb[0].mxu0
  %v1632 = vadd.f32 0.0, %v1631
  %v1633 = vpop.f32.mrb[0].mxu0
  %1634 = vmatprep.mubr.f32.mxu0 0.0
  %1635 = vmatmul.mubr.f32.gmra.mrb[0].mxu0 %v1491
  %v1636 = vpop.f32.mrb[0].mxu0
  %v1637 = vadd.f32 0.0, %v1636
  %v1638 = vpop.f32.mrb[0].mxu0
  %1639 = vmatprep.mubr.f32.mxu0 0.0
  %1640 = vmatmul.mubr.f32.gmra.mrb[0].mxu0 %v1492
  %v1641 = vpop.f32.mrb[0].mxu0
  %v1642 = vadd.f32 0.0, %v1641
  %v1643 = vpop.f32.mrb[0].mxu0
  %1644 = vmatprep.mubr.f32.mxu0 0.0
  %1645 = vmatmul.mubr.f32.gmra.mrb[0].mxu0 %v1493
  %v1646 = vpop.f32.mrb[0].mxu0
  %v1647 = vadd.f32 0.0, %v1646
  %v1648 = vpop.f32.mrb[0].mxu0
  %1649 = vmatprep.mubr.f32.mxu0 0.0
  %1650 = vmatmul.mubr.f32.gmra.mrb[0].mxu0 %v1494
  %v1651 = vpop.f32.mrb[0].mxu0
  %v1652 = vadd.f32 0.0, %v1651
  %v1653 = vpop.f32.mrb[0].mxu0
  %1654 = vmatprep.mubr.f32.mxu0 0.0
  %1655 = vmatmul.mubr.f32.gmra.mrb[0].mxu0 %v1495
  %v1656 = vpop.f32.mrb[0].mxu0
  %v1657 = vadd.f32 0.0, %v1656
  %v1658 = vpop.f32.mrb[0].mxu0
  %1659 = vmatprep.mubr.f32.mxu0 0.0
  %1660 = vmatmul.mubr.f32.gmra.mrb[0].mxu0 %v1496
  %v1661 = vpop.f32.mrb[0].mxu0
  %v1662 = vadd.f32 0.0, %v1661
  %v1663 = vpop.f32.mrb[0].mxu0
  %1664 = vmatprep.mubr.f32.mxu0 0.0
  %1665 = vmatmul.mubr.f32.gmra.mrb[0].mxu0 %v1497
  %v1666 = vpop.f32.mrb[0].mxu0
  %v1667 = vadd.f32 0.0, %v1666
  %v1668 = vpop.f32.mrb[0].mxu0
  %1669 = vmatprep.mubr.f32.mxu0 0.0
  %1670 = vmatmul.mubr.f32.gmra.mrb[0].mxu0 %v1498
  %v1671 = vpop.f32.mrb[0].mxu0
  %v1672 = vadd.f32 0.0, %v1671
  %v1673 = vpop.f32.mrb[0].mxu0
  %1674 = vdwg.mxu0
  %v1675 = vadd.f32 %v1461, %v1582
  %v1676 = vadd.f32 %v1462, %v1587
  %v1677 = vadd.f32 %v1463, %v1592
  %v1678 = vadd.f32 %v1464, %v1597
  %v1679 = vadd.f32 %v1465, %v1602
  %v1680 = vadd.f32 %v1466, %v1607
  %v1681 = vadd.f32 %v1467, %v1612
  %v1682 = vadd.f32 %v1468, %v1617
  %v1683 = vadd.f32 %v1469, %v1622
  %v1684 = vadd.f32 %v1470, %v1627
  %v1685 = vadd.f32 %v1471, %v1632
  %v1686 = vadd.f32 %v1472, %v1637
  %v1687 = vadd.f32 %v1473, %v1642
  %v1688 = vadd.f32 %v1474, %v1647
  %v1689 = vadd.f32 %v1475, %v1652
  %v1690 = vadd.f32 %v1476, %v1657
  %v1691 = vadd.f32 %v1477, %v1662
  %v1692 = vadd.f32 %v1478, %v1667
  %v1693 = vadd.f32 %v1479, %v1672
  %v1694 = vld [vmem:[%s0 + $0x14] sm:$0xff]
  %v1695 = vld [vmem:[%s0 + $0x1c] sm:$0xff]
  %v1696 = vld [vmem:[%s0 + $0x24] sm:$0xff]
  %v1697 = vld [vmem:[%s0 + $0x2c] sm:$0xff]
  %v1698 = vld [vmem:[%s0 + $0x34] sm:$0xff]
  %v1699 = vld [vmem:[%s0 + $0x3c] sm:$0xff]
  %v1700 = vld [vmem:[%s0 + $0x44] sm:$0xff]
  %v1701 = vld [vmem:[%s0 + $0x4c] sm:$0xff]
  %v1702 = vld [vmem:[%s0 + $0x54] sm:$0xff]
  %v1703 = vld [vmem:[%s0 + $0x5c] sm:$0xff]
  %v1704 = vld [vmem:[%s0 + $0x64] sm:$0xff]
  %v1705 = vld [vmem:[%s0 + $0x6c] sm:$0xff]
  %v1706 = vld [vmem:[%s0 + $0x74] sm:$0xff]
  %v1707 = vld [vmem:[%s0 + $0x7c] sm:$0xff]
  %v1708 = vld [vmem:[%s0 + $0x84] sm:$0xff]
  %v1709 = vld [vmem:[%s0 + $0x8c] sm:$0xff]
  %v1710 = vld [vmem:[%s0 + $0x94] sm:$0xff]
  %v1711 = vld [vmem:[%s0 + $0x9c] sm:$0xff]
  %v1712 = vld [vmem:[%s0 + $0xa4] sm:$0xff]
  %v1713 = vld [vmem:[%s2 + $0x400] sm:$0xff]
  %v1714 = vld [vmem:[%s2 + $0x408] sm:$0xff]
  %v1715 = vld [vmem:[%s2 + $0x410] sm:$0xff]
  %v1716 = vld [vmem:[%s2 + $0x418] sm:$0xff]
  %v1717 = vld [vmem:[%s2 + $0x420] sm:$0xff]
  %v1718 = vld [vmem:[%s2 + $0x428] sm:$0xff]
  %v1719 = vld [vmem:[%s2 + $0x430] sm:$0xff]
  %v1720 = vld [vmem:[%s2 + $0x438] sm:$0xff]
  %v1721 = vld [vmem:[%s2 + $0x440] sm:$0xff]
  %v1722 = vld [vmem:[%s2 + $0x448] sm:$0xff]
  %v1723 = vld [vmem:[%s2 + $0x450] sm:$0xff]
  %v1724 = vld [vmem:[%s2 + $0x458] sm:$0xff]
  %v1725 = vld [vmem:[%s2 + $0x460] sm:$0xff]
  %v1726 = vld [vmem:[%s2 + $0x468] sm:$0xff]
  %v1727 = vld [vmem:[%s2 + $0x470] sm:$0xff]
  %v1728 = vld [vmem:[%s2 + $0x478] sm:$0xff]
  %1729 = vmatprep.subr.mxu0 0.0
  %1730 = vmatpush1.msra.mxu0 %v1713
  %1731 = vmatprep.subr.mxu0 0.0
  %1732 = vmatpush1.msra.mxu0 %v1714
  %1733 = vmatprep.subr.mxu0 0.0
  %1734 = vmatpush1.msra.mxu0 %v1715
  %1735 = vmatprep.subr.mxu0 0.0
  %1736 = vmatpush1.msra.mxu0 %v1716
  %1737 = vmatprep.subr.mxu0 0.0
  %1738 = vmatpush1.msra.mxu0 %v1717
  %1739 = vmatprep.subr.mxu0 0.0
  %1740 = vmatpush1.msra.mxu0 %v1718
  %1741 = vmatprep.subr.mxu0 0.0
  %1742 = vmatpush1.msra.mxu0 %v1719
  %1743 = vmatprep.subr.mxu0 0.0
  %1744 = vmatpush1.msra.mxu0 %v1720
  %1745 = vmatprep.subr.mxu0 0.0
  %1746 = vmatpush1.msra.mxu0 %v1721
  %1747 = vmatprep.subr.mxu0 0.0
  %1748 = vmatpush1.msra.mxu0 %v1722
  %1749 = vmatprep.subr.mxu0 0.0
  %1750 = vmatpush1.msra.mxu0 %v1723
  %1751 = vmatprep.subr.mxu0 0.0
  %1752 = vmatpush1.msra.mxu0 %v1724
  %1753 = vmatprep.subr.mxu0 0.0
  %1754 = vmatpush1.msra.mxu0 %v1725
  %1755 = vmatprep.subr.mxu0 0.0
  %1756 = vmatpush1.msra.mxu0 %v1726
  %1757 = vmatprep.subr.mxu0 0.0
  %1758 = vmatpush1.msra.mxu0 %v1727
  %1759 = vmatprep.subr.mxu0 0.0
  %1760 = vmatpush1.msra.mxu0 %v1728
  %1761 = vmatprep.subr.mxu0 0.0
  %1762 = vmatpush1.msra.mxu0 0.0
  %1763 = vmatprep.subr.mxu0 0.0
  %1764 = vmatpush1.msra.mxu0 0.0
  %1765 = vmatprep.subr.mxu0 0.0
  %1766 = vmatpush1.msra.mxu0 0.0
  %1767 = vmatprep.subr.mxu0 0.0
  %1768 = vmatpush1.msra.mxu0 0.0
  %1769 = vmatprep.subr.mxu0 0.0
  %1770 = vmatpush1.msra.mxu0 0.0
  %1771 = vmatprep.subr.mxu0 0.0
  %1772 = vmatpush1.msra.mxu0 0.0
  %1773 = vmatprep.subr.mxu0 0.0
  %1774 = vmatpush1.msra.mxu0 0.0
  %1775 = vmatprep.subr.mxu0 0.0
  %1776 = vmatpush1.msra.mxu0 0.0
  %1777 = vmatprep.subr.mxu0 0.0
  %1778 = vmatpush1.msra.mxu0 0.0
  %1779 = vmatprep.subr.mxu0 0.0
  %1780 = vmatpush1.msra.mxu0 0.0
  %1781 = vmatprep.subr.mxu0 0.0
  %1782 = vmatpush1.msra.mxu0 0.0
  %1783 = vmatprep.subr.mxu0 0.0
  %1784 = vmatpush1.msra.mxu0 0.0
  %1785 = vmatprep.subr.mxu0 0.0
  %1786 = vmatpush1.msra.mxu0 0.0
  %1787 = vmatprep.subr.mxu0 0.0
  %1788 = vmatpush1.msra.mxu0 0.0
  %1789 = vmatprep.subr.mxu0 0.0
  %1790 = vmatpush1.msra.mxu0 0.0
  %1791 = vmatprep.subr.mxu0 0.0
  %1792 = vmatpush1.msra.mxu0 0.0
  %1793 = vmatprep.mubr.f32.mxu0 0.0
  %1794 = vmatmul.mubr.f32.gmra.mrb[0].mxu0 %v1694
  %v1795 = vpop.f32.mrb[0].mxu0
  %v1796 = vadd.f32 0.0, %v1795
  %v1797 = vpop.f32.mrb[0].mxu0
  %1798 = vmatprep.mubr.f32.mxu0 0.0
  %1799 = vmatmul.mubr.f32.gmra.mrb[0].mxu0 %v1695
  %v1800 = vpop.f32.mrb[0].mxu0
  %v1801 = vadd.f32 0.0, %v1800
  %v1802 = vpop.f32.mrb[0].mxu0
  %1803 = vmatprep.mubr.f32.mxu0 0.0
  %1804 = vmatmul.mubr.f32.gmra.mrb[0].mxu0 %v1696
  %v1805 = vpop.f32.mrb[0].mxu0
  %v1806 = vadd.f32 0.0, %v1805
  %v1807 = vpop.f32.mrb[0].mxu0
  %1808 = vmatprep.mubr.f32.mxu0 0.0
  %1809 = vmatmul.mubr.f32.gmra.mrb[0].mxu0 %v1697
  %v1810 = vpop.f32.mrb[0].mxu0
  %v1811 = vadd.f32 0.0, %v1810
  %v1812 = vpop.f32.mrb[0].mxu0
  %1813 = vmatprep.mubr.f32.mxu0 0.0
  %1814 = vmatmul.mubr.f32.gmra.mrb[0].mxu0 %v1698
  %v1815 = vpop.f32.mrb[0].mxu0
  %v1816 = vadd.f32 0.0, %v1815
  %v1817 = vpop.f32.mrb[0].mxu0
  %1818 = vmatprep.mubr.f32.mxu0 0.0
  %1819 = vmatmul.mubr.f32.gmra.mrb[0].mxu0 %v1699
  %v1820 = vpop.f32.mrb[0].mxu0
  %v1821 = vadd.f32 0.0, %v1820
  %v1822 = vpop.f32.mrb[0].mxu0
  %1823 = vmatprep.mubr.f32.mxu0 0.0
  %1824 = vmatmul.mubr.f32.gmra.mrb[0].mxu0 %v1700
  %v1825 = vpop.f32.mrb[0].mxu0
  %v1826 = vadd.f32 0.0, %v1825
  %v1827 = vpop.f32.mrb[0].mxu0
  %1828 = vmatprep.mubr.f32.mxu0 0.0
  %1829 = vmatmul.mubr.f32.gmra.mrb[0].mxu0 %v1701
  %v1830 = vpop.f32.mrb[0].mxu0
  %v1831 = vadd.f32 0.0, %v1830
  %v1832 = vpop.f32.mrb[0].mxu0
  %1833 = vmatprep.mubr.f32.mxu0 0.0
  %1834 = vmatmul.mubr.f32.gmra.mrb[0].mxu0 %v1702
  %v1835 = vpop.f32.mrb[0].mxu0
  %v1836 = vadd.f32 0.0, %v1835
  %v1837 = vpop.f32.mrb[0].mxu0
  %1838 = vmatprep.mubr.f32.mxu0 0.0
  %1839 = vmatmul.mubr.f32.gmra.mrb[0].mxu0 %v1703
  %v1840 = vpop.f32.mrb[0].mxu0
  %v1841 = vadd.f32 0.0, %v1840
  %v1842 = vpop.f32.mrb[0].mxu0
  %1843 = vmatprep.mubr.f32.mxu0 0.0
  %1844 = vmatmul.mubr.f32.gmra.mrb[0].mxu0 %v1704
  %v1845 = vpop.f32.mrb[0].mxu0
  %v1846 = vadd.f32 0.0, %v1845
  %v1847 = vpop.f32.mrb[0].mxu0
  %1848 = vmatprep.mubr.f32.mxu0 0.0
  %1849 = vmatmul.mubr.f32.gmra.mrb[0].mxu0 %v1705
  %v1850 = vpop.f32.mrb[0].mxu0
  %v1851 = vadd.f32 0.0, %v1850
  %v1852 = vpop.f32.mrb[0].mxu0
  %1853 = vmatprep.mubr.f32.mxu0 0.0
  %1854 = vmatmul.mubr.f32.gmra.mrb[0].mxu0 %v1706
  %v1855 = vpop.f32.mrb[0].mxu0
  %v1856 = vadd.f32 0.0, %v1855
  %v1857 = vpop.f32.mrb[0].mxu0
  %1858 = vmatprep.mubr.f32.mxu0 0.0
  %1859 = vmatmul.mubr.f32.gmra.mrb[0].mxu0 %v1707
  %v1860 = vpop.f32.mrb[0].mxu0
  %v1861 = vadd.f32 0.0, %v1860
  %v1862 = vpop.f32.mrb[0].mxu0
  %1863 = vmatprep.mubr.f32.mxu0 0.0
  %1864 = vmatmul.mubr.f32.gmra.mrb[0].mxu0 %v1708
  %v1865 = vpop.f32.mrb[0].mxu0
  %v1866 = vadd.f32 0.0, %v1865
  %v1867 = vpop.f32.mrb[0].mxu0
  %1868 = vmatprep.mubr.f32.mxu0 0.0
  %1869 = vmatmul.mubr.f32.gmra.mrb[0].mxu0 %v1709
  %v1870 = vpop.f32.mrb[0].mxu0
  %v1871 = vadd.f32 0.0, %v1870
  %v1872 = vpop.f32.mrb[0].mxu0
  %1873 = vmatprep.mubr.f32.mxu0 0.0
  %1874 = vmatmul.mubr.f32.gmra.mrb[0].mxu0 %v1710
  %v1875 = vpop.f32.mrb[0].mxu0
  %v1876 = vadd.f32 0.0, %v1875
  %v1877 = vpop.f32.mrb[0].mxu0
  %1878 = vmatprep.mubr.f32.mxu0 0.0
  %1879 = vmatmul.mubr.f32.gmra.mrb[0].mxu0 %v1711
  %v1880 = vpop.f32.mrb[0].mxu0
  %v1881 = vadd.f32 0.0, %v1880
  %v1882 = vpop.f32.mrb[0].mxu0
  %1883 = vmatprep.mubr.f32.mxu0 0.0
  %1884 = vmatmul.mubr.f32.gmra.mrb[0].mxu0 %v1712
  %v1885 = vpop.f32.mrb[0].mxu0
  %v1886 = vadd.f32 0.0, %v1885
  %v1887 = vpop.f32.mrb[0].mxu0
  %1888 = vdwg.mxu0
  %v1889 = vadd.f32 %v1675, %v1796
  %v1890 = vadd.f32 %v1676, %v1801
  %v1891 = vadd.f32 %v1677, %v1806
  %v1892 = vadd.f32 %v1678, %v1811
  %v1893 = vadd.f32 %v1679, %v1816
  %v1894 = vadd.f32 %v1680, %v1821
  %v1895 = vadd.f32 %v1681, %v1826
  %v1896 = vadd.f32 %v1682, %v1831
  %v1897 = vadd.f32 %v1683, %v1836
  %v1898 = vadd.f32 %v1684, %v1841
  %v1899 = vadd.f32 %v1685, %v1846
  %v1900 = vadd.f32 %v1686, %v1851
  %v1901 = vadd.f32 %v1687, %v1856
  %v1902 = vadd.f32 %v1688, %v1861
  %v1903 = vadd.f32 %v1689, %v1866
  %v1904 = vadd.f32 %v1690, %v1871
  %v1905 = vadd.f32 %v1691, %v1876
  %v1906 = vadd.f32 %v1692, %v1881
  %v1907 = vadd.f32 %v1693, %v1886
  %v1908 = vld [vmem:[%s4] sm:$0x1]
  %v1909 = vlaneseq
  %v1910 = vshrl.u32 %v1909, 7
  %v1911 = vsub.s32 0, %v1910
  %v1912 = vrot.slane %v1908, %v1911
  %v1913 = vadd.f32 %v1889, %v1912
  %v1914 = vadd.f32 %v1890, %v1912
  %v1915 = vadd.f32 %v1891, %v1912
  %v1916 = vadd.f32 %v1892, %v1912
  %v1917 = vadd.f32 %v1893, %v1912
  %v1918 = vadd.f32 %v1894, %v1912
  %v1919 = vadd.f32 %v1895, %v1912
  %v1920 = vadd.f32 %v1896, %v1912
  %v1921 = vadd.f32 %v1897, %v1912
  %v1922 = vadd.f32 %v1898, %v1912
  %v1923 = vadd.f32 %v1899, %v1912
  %v1924 = vadd.f32 %v1900, %v1912
  %v1925 = vadd.f32 %v1901, %v1912
  %v1926 = vadd.f32 %v1902, %v1912
  %v1927 = vadd.f32 %v1903, %v1912
  %v1928 = vadd.f32 %v1904, %v1912
  %v1929 = vadd.f32 %v1905, %v1912
  %v1930 = vadd.f32 %v1906, %v1912
  %v1931 = vadd.f32 %v1907, %v1912
  %v1932 = vmax.f32 %v1913, 0.0
  %v1933 = vmax.f32 %v1914, 0.0
  %v1934 = vmax.f32 %v1915, 0.0
  %v1935 = vmax.f32 %v1916, 0.0
  %v1936 = vmax.f32 %v1917, 0.0
  %v1937 = vmax.f32 %v1918, 0.0
  %v1938 = vmax.f32 %v1919, 0.0
  %v1939 = vmax.f32 %v1920, 0.0
  %v1940 = vmax.f32 %v1921, 0.0
  %v1941 = vmax.f32 %v1922, 0.0
  %v1942 = vmax.f32 %v1923, 0.0
  %v1943 = vmax.f32 %v1924, 0.0
  %v1944 = vmax.f32 %v1925, 0.0
  %v1945 = vmax.f32 %v1926, 0.0
  %v1946 = vmax.f32 %v1927, 0.0
  %v1947 = vmax.f32 %v1928, 0.0
  %v1948 = vmax.f32 %v1929, 0.0
  %v1949 = vmax.f32 %v1930, 0.0
  %v1950 = vmax.f32 %v1931, 0.0
  %1951 = vst [vmem:[#allocation2] sm:$0xff] 0.0
  %1952 = vst [vmem:[#allocation2 + $0x8] sm:$0x3] 0.0
  %v1953 = vld [vmem:[%s1 + $0xa] sm:$0xff]
  %v1954 = vld [vmem:[%s1 + $0x12] sm:$0xff]
  %v1955 = vld [vmem:[%s1 + $0x1a] sm:$0xff]
  %v1956 = vld [vmem:[%s1 + $0x22] sm:$0xff]
  %v1957 = vld [vmem:[%s1 + $0x2a] sm:$0xff]
  %v1958 = vld [vmem:[%s1 + $0x32] sm:$0xff]
  %v1959 = vld [vmem:[%s1 + $0x3a] sm:$0xff]
  %v1960 = vld [vmem:[%s1 + $0x42] sm:$0xff]
  %v1961 = vld [vmem:[%s1 + $0x4a] sm:$0xff]
  %v1962 = vld [vmem:[%s1 + $0x52] sm:$0xff]
  %v1963 = vld [vmem:[%s1 + $0x5a] sm:$0xff]
  %v1964 = vld [vmem:[%s1 + $0x62] sm:$0xff]
  %v1965 = vld [vmem:[%s1 + $0x6a] sm:$0xff]
  %v1966 = vld [vmem:[%s1 + $0x72] sm:$0xff]
  %v1967 = vld [vmem:[%s1 + $0x7a] sm:$0xff]
  %v1968 = vld [vmem:[%s1 + $0x82] sm:$0xff]
  %v1969 = vld [vmem:[%s1 + $0x8a] sm:$0xff]
  %v1970 = vld [vmem:[%s1 + $0x92] sm:$0xff]
  %v1971 = vld [vmem:[%s1 + $0x9a] sm:$0xff]
  %1973 = vset.pattern.permute.xlu0 0
  %1974 = vperm.xlu0 %1973, %v1953
  %v1975 = vpop.permute.xlu0 %1974
  %1978 = vset.pattern.permute.xlu0 0
  %1979 = vperm.xlu0 %1978, %v1954
  %v1980 = vpop.permute.xlu0 %1979
  %1983 = vset.pattern.permute.xlu0 0
  %1984 = vperm.xlu0 %1983, %v1955
  %v1985 = vpop.permute.xlu0 %1984
  %1988 = vset.pattern.permute.xlu0 0
  %1989 = vperm.xlu0 %1988, %v1956
  %v1990 = vpop.permute.xlu0 %1989
  %1993 = vset.pattern.permute.xlu0 0
  %1994 = vperm.xlu0 %1993, %v1957
  %v1995 = vpop.permute.xlu0 %1994
  %1998 = vset.pattern.permute.xlu0 0
  %1999 = vperm.xlu0 %1998, %v1958
  %v2000 = vpop.permute.xlu0 %1999
  %2003 = vset.pattern.permute.xlu0 0
  %2004 = vperm.xlu0 %2003, %v1959
  %v2005 = vpop.permute.xlu0 %2004
  %2008 = vset.pattern.permute.xlu0 0
  %2009 = vperm.xlu0 %2008, %v1960
  %v2010 = vpop.permute.xlu0 %2009
  %2013 = vset.pattern.permute.xlu0 0
  %2014 = vperm.xlu0 %2013, %v1961
  %v2015 = vpop.permute.xlu0 %2014
  %2018 = vset.pattern.permute.xlu0 0
  %2019 = vperm.xlu0 %2018, %v1962
  %v2020 = vpop.permute.xlu0 %2019
  %2023 = vset.pattern.permute.xlu0 0
  %2024 = vperm.xlu0 %2023, %v1963
  %v2025 = vpop.permute.xlu0 %2024
  %2028 = vset.pattern.permute.xlu0 0
  %2029 = vperm.xlu0 %2028, %v1964
  %v2030 = vpop.permute.xlu0 %2029
  %2033 = vset.pattern.permute.xlu0 0
  %2034 = vperm.xlu0 %2033, %v1965
  %v2035 = vpop.permute.xlu0 %2034
  %2038 = vset.pattern.permute.xlu0 0
  %2039 = vperm.xlu0 %2038, %v1966
  %v2040 = vpop.permute.xlu0 %2039
  %2043 = vset.pattern.permute.xlu0 0
  %2044 = vperm.xlu0 %2043, %v1967
  %v2045 = vpop.permute.xlu0 %2044
  %2048 = vset.pattern.permute.xlu0 0
  %2049 = vperm.xlu0 %2048, %v1968
  %v2050 = vpop.permute.xlu0 %2049
  %2053 = vset.pattern.permute.xlu0 0
  %2054 = vperm.xlu0 %2053, %v1969
  %v2055 = vpop.permute.xlu0 %2054
  %2058 = vset.pattern.permute.xlu0 0
  %2059 = vperm.xlu0 %2058, %v1970
  %v2060 = vpop.permute.xlu0 %2059
  %2063 = vset.pattern.permute.xlu0 0
  %2064 = vperm.xlu0 %2063, %v1971
  %v2065 = vpop.permute.xlu0 %2064
  %v2067 = vmul.f32 %v1932, %v1975
  %v2068 = vmul.f32 %v1933, %v1980
  %v2069 = vmul.f32 %v1934, %v1985
  %v2070 = vmul.f32 %v1935, %v1990
  %v2071 = vmul.f32 %v1936, %v1995
  %v2072 = vmul.f32 %v1937, %v2000
  %v2073 = vmul.f32 %v1938, %v2005
  %v2074 = vmul.f32 %v1939, %v2010
  %v2075 = vmul.f32 %v1940, %v2015
  %v2076 = vmul.f32 %v1941, %v2020
  %v2077 = vmul.f32 %v1942, %v2025
  %v2078 = vmul.f32 %v1943, %v2030
  %v2079 = vmul.f32 %v1944, %v2035
  %v2080 = vmul.f32 %v1945, %v2040
  %v2081 = vmul.f32 %v1946, %v2045
  %v2082 = vmul.f32 %v1947, %v2050
  %v2083 = vmul.f32 %v1948, %v2055
  %v2084 = vmul.f32 %v1949, %v2060
  %v2085 = vmul.f32 %v1950, %v2065
  %2086 = vst [vmem:[#allocation2 + $0xa] sm:$0xff] %v2067
  %2087 = vst [vmem:[#allocation2 + $0x12] sm:$0xff] %v2068
  %2088 = vst [vmem:[#allocation2 + $0x1a] sm:$0xff] %v2069
  %2089 = vst [vmem:[#allocation2 + $0x22] sm:$0xff] %v2070
  %2090 = vst [vmem:[#allocation2 + $0x2a] sm:$0xff] %v2071
  %2091 = vst [vmem:[#allocation2 + $0x32] sm:$0xff] %v2072
  %2092 = vst [vmem:[#allocation2 + $0x3a] sm:$0xff] %v2073
  %2093 = vst [vmem:[#allocation2 + $0x42] sm:$0xff] %v2074
  %2094 = vst [vmem:[#allocation2 + $0x4a] sm:$0xff] %v2075
  %2095 = vst [vmem:[#allocation2 + $0x52] sm:$0xff] %v2076
  %2096 = vst [vmem:[#allocation2 + $0x5a] sm:$0xff] %v2077
  %2097 = vst [vmem:[#allocation2 + $0x62] sm:$0xff] %v2078
  %2098 = vst [vmem:[#allocation2 + $0x6a] sm:$0xff] %v2079
  %2099 = vst [vmem:[#allocation2 + $0x72] sm:$0xff] %v2080
  %2100 = vst [vmem:[#allocation2 + $0x7a] sm:$0xff] %v2081
  %2101 = vst [vmem:[#allocation2 + $0x82] sm:$0xff] %v2082
  %2102 = vst [vmem:[#allocation2 + $0x8a] sm:$0xff] %v2083
  %2103 = vst [vmem:[#allocation2 + $0x92] sm:$0xff] %v2084
  %2104 = vst [vmem:[#allocation2 + $0x9a] sm:$0xff] %v2085
  %2105 = vst [vmem:[#allocation2 + $0xa2] sm:$0xff] 0.0
  %2106 = vst [vmem:[#allocation2 + $0xaa] sm:$0x3f] 0.0
  %v2107 = vld [vmem:[#allocation2] sm:$0xff]
  %v2108 = vld [vmem:[#allocation2 + $0x8] sm:$0xff]
  %v2109 = vld [vmem:[#allocation2 + $0x10] sm:$0xff]
  %v2110 = vld [vmem:[#allocation2 + $0x18] sm:$0xff]
  %v2111 = vld [vmem:[#allocation2 + $0x20] sm:$0xff]
  %v2112 = vld [vmem:[#allocation2 + $0x28] sm:$0xff]
  %v2113 = vld [vmem:[#allocation2 + $0x30] sm:$0xff]
  %v2114 = vld [vmem:[#allocation2 + $0x38] sm:$0xff]
  %v2115 = vld [vmem:[#allocation2 + $0x40] sm:$0xff]
  %v2116 = vld [vmem:[#allocation2 + $0x48] sm:$0xff]
  %v2117 = vld [vmem:[#allocation2 + $0x50] sm:$0xff]
  %v2118 = vld [vmem:[#allocation2 + $0x58] sm:$0xff]
  %v2119 = vld [vmem:[#allocation2 + $0x60] sm:$0xff]
  %v2120 = vld [vmem:[#allocation2 + $0x68] sm:$0xff]
  %v2121 = vld [vmem:[#allocation2 + $0x70] sm:$0xff]
  %v2122 = vld [vmem:[#allocation2 + $0x78] sm:$0xff]
  %v2123 = vld [vmem:[#allocation2 + $0x80] sm:$0xff]
  %v2124 = vld [vmem:[#allocation2 + $0x88] sm:$0xff]
  %v2125 = vld [vmem:[#allocation2 + $0x90] sm:$0xff]
  %v2126 = vld [vmem:[%s3] sm:$0xff]
  %v2127 = vld [vmem:[%s3 + $0x8] sm:$0xff]
  %v2128 = vld [vmem:[%s3 + $0x10] sm:$0xff]
  %v2129 = vld [vmem:[%s3 + $0x18] sm:$0xff]
  %v2130 = vld [vmem:[%s3 + $0x20] sm:$0xff]
  %v2131 = vld [vmem:[%s3 + $0x28] sm:$0xff]
  %v2132 = vld [vmem:[%s3 + $0x30] sm:$0xff]
  %v2133 = vld [vmem:[%s3 + $0x38] sm:$0xff]
  %v2134 = vld [vmem:[%s3 + $0x40] sm:$0xff]
  %v2135 = vld [vmem:[%s3 + $0x48] sm:$0xff]
  %v2136 = vld [vmem:[%s3 + $0x50] sm:$0xff]
  %v2137 = vld [vmem:[%s3 + $0x58] sm:$0xff]
  %v2138 = vld [vmem:[%s3 + $0x60] sm:$0xff]
  %v2139 = vld [vmem:[%s3 + $0x68] sm:$0xff]
  %v2140 = vld [vmem:[%s3 + $0x70] sm:$0xff]
  %v2141 = vld [vmem:[%s3 + $0x78] sm:$0xff]
  %v2142 = vld [vmem:[#allocation2 + $0x1] sm:$0xff]
  %v2143 = vld [vmem:[#allocation2 + $0x9] sm:$0xff]
  %v2144 = vld [vmem:[#allocation2 + $0x11] sm:$0xff]
  %v2145 = vld [vmem:[#allocation2 + $0x19] sm:$0xff]
  %v2146 = vld [vmem:[#allocation2 + $0x21] sm:$0xff]
  %v2147 = vld [vmem:[#allocation2 + $0x29] sm:$0xff]
  %v2148 = vld [vmem:[#allocation2 + $0x31] sm:$0xff]
  %v2149 = vld [vmem:[#allocation2 + $0x39] sm:$0xff]
  %v2150 = vld [vmem:[#allocation2 + $0x41] sm:$0xff]
  %v2151 = vld [vmem:[#allocation2 + $0x49] sm:$0xff]
  %v2152 = vld [vmem:[#allocation2 + $0x51] sm:$0xff]
  %v2153 = vld [vmem:[#allocation2 + $0x59] sm:$0xff]
  %v2154 = vld [vmem:[#allocation2 + $0x61] sm:$0xff]
  %v2155 = vld [vmem:[#allocation2 + $0x69] sm:$0xff]
  %v2156 = vld [vmem:[#allocation2 + $0x71] sm:$0xff]
  %v2157 = vld [vmem:[#allocation2 + $0x79] sm:$0xff]
  %v2158 = vld [vmem:[#allocation2 + $0x81] sm:$0xff]
  %v2159 = vld [vmem:[#allocation2 + $0x89] sm:$0xff]
  %v2160 = vld [vmem:[#allocation2 + $0x91] sm:$0xff]
  %v2161 = vld [vmem:[%s3 + $0x80] sm:$0xff]
  %v2162 = vld [vmem:[%s3 + $0x88] sm:$0xff]
  %v2163 = vld [vmem:[%s3 + $0x90] sm:$0xff]
  %v2164 = vld [vmem:[%s3 + $0x98] sm:$0xff]
  %v2165 = vld [vmem:[%s3 + $0xa0] sm:$0xff]
  %v2166 = vld [vmem:[%s3 + $0xa8] sm:$0xff]
  %v2167 = vld [vmem:[%s3 + $0xb0] sm:$0xff]
  %v2168 = vld [vmem:[%s3 + $0xb8] sm:$0xff]
  %v2169 = vld [vmem:[%s3 + $0xc0] sm:$0xff]
  %v2170 = vld [vmem:[%s3 + $0xc8] sm:$0xff]
  %v2171 = vld [vmem:[%s3 + $0xd0] sm:$0xff]
  %v2172 = vld [vmem:[%s3 + $0xd8] sm:$0xff]
  %v2173 = vld [vmem:[%s3 + $0xe0] sm:$0xff]
  %v2174 = vld [vmem:[%s3 + $0xe8] sm:$0xff]
  %v2175 = vld [vmem:[%s3 + $0xf0] sm:$0xff]
  %v2176 = vld [vmem:[%s3 + $0xf8] sm:$0xff]
  %2177 = vmatprep.subr.mxu0 0.0
  %2178 = vmatpush1.msra.mxu0 %v2161
  %2179 = vmatprep.subr.mxu0 0.0
  %2180 = vmatpush1.msra.mxu0 %v2162
  %2181 = vmatprep.subr.mxu0 0.0
  %2182 = vmatpush1.msra.mxu0 %v2163
  %2183 = vmatprep.subr.mxu0 0.0
  %2184 = vmatpush1.msra.mxu0 %v2164
  %2185 = vmatprep.subr.mxu0 0.0
  %2186 = vmatpush1.msra.mxu0 %v2165
  %2187 = vmatprep.subr.mxu0 0.0
  %2188 = vmatpush1.msra.mxu0 %v2166
  %2189 = vmatprep.subr.mxu0 0.0
  %2190 = vmatpush1.msra.mxu0 %v2167
  %2191 = vmatprep.subr.mxu0 0.0
  %2192 = vmatpush1.msra.mxu0 %v2168
  %2193 = vmatprep.subr.mxu0 0.0
  %2194 = vmatpush1.msra.mxu0 %v2169
  %2195 = vmatprep.subr.mxu0 0.0
  %2196 = vmatpush1.msra.mxu0 %v2170
  %2197 = vmatprep.subr.mxu0 0.0
  %2198 = vmatpush1.msra.mxu0 %v2171
  %2199 = vmatprep.subr.mxu0 0.0
  %2200 = vmatpush1.msra.mxu0 %v2172
  %2201 = vmatprep.subr.mxu0 0.0
  %2202 = vmatpush1.msra.mxu0 %v2173
  %2203 = vmatprep.subr.mxu0 0.0
  %2204 = vmatpush1.msra.mxu0 %v2174
  %2205 = vmatprep.subr.mxu0 0.0
  %2206 = vmatpush1.msra.mxu0 %v2175
  %2207 = vmatprep.subr.mxu0 0.0
  %2208 = vmatpush1.msra.mxu0 %v2176
  %2209 = vmatprep.subr.mxu0 0.0
  %2210 = vmatpush1.msra.mxu0 0.0
  %2211 = vmatprep.subr.mxu0 0.0
  %2212 = vmatpush1.msra.mxu0 0.0
  %2213 = vmatprep.subr.mxu0 0.0
  %2214 = vmatpush1.msra.mxu0 0.0
  %2215 = vmatprep.subr.mxu0 0.0
  %2216 = vmatpush1.msra.mxu0 0.0
  %2217 = vmatprep.subr.mxu0 0.0
  %2218 = vmatpush1.msra.mxu0 0.0
  %2219 = vmatprep.subr.mxu0 0.0
  %2220 = vmatpush1.msra.mxu0 0.0
  %2221 = vmatprep.subr.mxu0 0.0
  %2222 = vmatpush1.msra.mxu0 0.0
  %2223 = vmatprep.subr.mxu0 0.0
  %2224 = vmatpush1.msra.mxu0 0.0
  %2225 = vmatprep.subr.mxu0 0.0
  %2226 = vmatpush1.msra.mxu0 0.0
  %2227 = vmatprep.subr.mxu0 0.0
  %2228 = vmatpush1.msra.mxu0 0.0
  %2229 = vmatprep.subr.mxu0 0.0
  %2230 = vmatpush1.msra.mxu0 0.0
  %2231 = vmatprep.subr.mxu0 0.0
  %2232 = vmatpush1.msra.mxu0 0.0
  %2233 = vmatprep.subr.mxu0 0.0
  %2234 = vmatpush1.msra.mxu0 0.0
  %2235 = vmatprep.subr.mxu0 0.0
  %2236 = vmatpush1.msra.mxu0 0.0
  %2237 = vmatprep.subr.mxu0 0.0
  %2238 = vmatpush1.msra.mxu0 0.0
  %2239 = vmatprep.subr.mxu0 0.0
  %2240 = vmatpush1.msra.mxu0 0.0
  %2241 = vmatprep.mubr.f32.mxu0 0.0
  %2242 = vmatmul.mubr.f32.gmra.mrb[0].mxu0 %v2142
  %v2243 = vpop.f32.mrb[0].mxu0
  %v2244 = vadd.f32 0.0, %v2243
  %v2245 = vpop.f32.mrb[0].mxu0
  %2246 = vmatprep.mubr.f32.mxu0 0.0
  %2247 = vmatmul.mubr.f32.gmra.mrb[0].mxu0 %v2143
  %v2248 = vpop.f32.mrb[0].mxu0
  %v2249 = vadd.f32 0.0, %v2248
  %v2250 = vpop.f32.mrb[0].mxu0
  %2251 = vmatprep.mubr.f32.mxu0 0.0
  %2252 = vmatmul.mubr.f32.gmra.mrb[0].mxu0 %v2144
  %v2253 = vpop.f32.mrb[0].mxu0
  %v2254 = vadd.f32 0.0, %v2253
  %v2255 = vpop.f32.mrb[0].mxu0
  %2256 = vmatprep.mubr.f32.mxu0 0.0
  %2257 = vmatmul.mubr.f32.gmra.mrb[0].mxu0 %v2145
  %v2258 = vpop.f32.mrb[0].mxu0
  %v2259 = vadd.f32 0.0, %v2258
  %v2260 = vpop.f32.mrb[0].mxu0
  %2261 = vmatprep.mubr.f32.mxu0 0.0
  %2262 = vmatmul.mubr.f32.gmra.mrb[0].mxu0 %v2146
  %v2263 = vpop.f32.mrb[0].mxu0
  %v2264 = vadd.f32 0.0, %v2263
  %v2265 = vpop.f32.mrb[0].mxu0
  %2266 = vmatprep.mubr.f32.mxu0 0.0
  %2267 = vmatmul.mubr.f32.gmra.mrb[0].mxu0 %v2147
  %v2268 = vpop.f32.mrb[0].mxu0
  %v2269 = vadd.f32 0.0, %v2268
  %v2270 = vpop.f32.mrb[0].mxu0
  %2271 = vmatprep.mubr.f32.mxu0 0.0
  %2272 = vmatmul.mubr.f32.gmra.mrb[0].mxu0 %v2148
  %v2273 = vpop.f32.mrb[0].mxu0
  %v2274 = vadd.f32 0.0, %v2273
  %v2275 = vpop.f32.mrb[0].mxu0
  %2276 = vmatprep.mubr.f32.mxu0 0.0
  %2277 = vmatmul.mubr.f32.gmra.mrb[0].mxu0 %v2149
  %v2278 = vpop.f32.mrb[0].mxu0
  %v2279 = vadd.f32 0.0, %v2278
  %v2280 = vpop.f32.mrb[0].mxu0
  %2281 = vmatprep.mubr.f32.mxu0 0.0
  %2282 = vmatmul.mubr.f32.gmra.mrb[0].mxu0 %v2150
  %v2283 = vpop.f32.mrb[0].mxu0
  %v2284 = vadd.f32 0.0, %v2283
  %v2285 = vpop.f32.mrb[0].mxu0
  %2286 = vmatprep.mubr.f32.mxu0 0.0
  %2287 = vmatmul.mubr.f32.gmra.mrb[0].mxu0 %v2151
  %v2288 = vpop.f32.mrb[0].mxu0
  %v2289 = vadd.f32 0.0, %v2288
  %v2290 = vpop.f32.mrb[0].mxu0
  %2291 = vmatprep.mubr.f32.mxu0 0.0
  %2292 = vmatmul.mubr.f32.gmra.mrb[0].mxu0 %v2152
  %v2293 = vpop.f32.mrb[0].mxu0
  %v2294 = vadd.f32 0.0, %v2293
  %v2295 = vpop.f32.mrb[0].mxu0
  %2296 = vmatprep.mubr.f32.mxu0 0.0
  %2297 = vmatmul.mubr.f32.gmra.mrb[0].mxu0 %v2153
  %v2298 = vpop.f32.mrb[0].mxu0
  %v2299 = vadd.f32 0.0, %v2298
  %v2300 = vpop.f32.mrb[0].mxu0
  %2301 = vmatprep.mubr.f32.mxu0 0.0
  %2302 = vmatmul.mubr.f32.gmra.mrb[0].mxu0 %v2154
  %v2303 = vpop.f32.mrb[0].mxu0
  %v2304 = vadd.f32 0.0, %v2303
  %v2305 = vpop.f32.mrb[0].mxu0
  %2306 = vmatprep.mubr.f32.mxu0 0.0
  %2307 = vmatmul.mubr.f32.gmra.mrb[0].mxu0 %v2155
  %v2308 = vpop.f32.mrb[0].mxu0
  %v2309 = vadd.f32 0.0, %v2308
  %v2310 = vpop.f32.mrb[0].mxu0
  %2311 = vmatprep.mubr.f32.mxu0 0.0
  %2312 = vmatmul.mubr.f32.gmra.mrb[0].mxu0 %v2156
  %v2313 = vpop.f32.mrb[0].mxu0
  %v2314 = vadd.f32 0.0, %v2313
  %v2315 = vpop.f32.mrb[0].mxu0
  %2316 = vmatprep.mubr.f32.mxu0 0.0
  %2317 = vmatmul.mubr.f32.gmra.mrb[0].mxu0 %v2157
  %v2318 = vpop.f32.mrb[0].mxu0
  %v2319 = vadd.f32 0.0, %v2318
  %v2320 = vpop.f32.mrb[0].mxu0
  %2321 = vmatprep.mubr.f32.mxu0 0.0
  %2322 = vmatmul.mubr.f32.gmra.mrb[0].mxu0 %v2158
  %v2323 = vpop.f32.mrb[0].mxu0
  %v2324 = vadd.f32 0.0, %v2323
  %v2325 = vpop.f32.mrb[0].mxu0
  %2326 = vmatprep.mubr.f32.mxu0 0.0
  %2327 = vmatmul.mubr.f32.gmra.mrb[0].mxu0 %v2159
  %v2328 = vpop.f32.mrb[0].mxu0
  %v2329 = vadd.f32 0.0, %v2328
  %v2330 = vpop.f32.mrb[0].mxu0
  %2331 = vmatprep.mubr.f32.mxu0 0.0
  %2332 = vmatmul.mubr.f32.gmra.mrb[0].mxu0 %v2160
  %v2333 = vpop.f32.mrb[0].mxu0
  %v2334 = vadd.f32 0.0, %v2333
  %v2335 = vpop.f32.mrb[0].mxu0
  %2336 = vdwg.mxu0
  %2337 = vmatprep.subr.mxu0 0.0
  %2338 = vmatpush1.msra.mxu0 %v2126
  %2339 = vmatprep.subr.mxu0 0.0
  %2340 = vmatpush1.msra.mxu0 %v2127
  %2341 = vmatprep.subr.mxu0 0.0
  %2342 = vmatpush1.msra.mxu0 %v2128
  %2343 = vmatprep.subr.mxu0 0.0
  %2344 = vmatpush1.msra.mxu0 %v2129
  %2345 = vmatprep.subr.mxu0 0.0
  %2346 = vmatpush1.msra.mxu0 %v2130
  %2347 = vmatprep.subr.mxu0 0.0
  %2348 = vmatpush1.msra.mxu0 %v2131
  %2349 = vmatprep.subr.mxu0 0.0
  %2350 = vmatpush1.msra.mxu0 %v2132
  %2351 = vmatprep.subr.mxu0 0.0
  %2352 = vmatpush1.msra.mxu0 %v2133
  %2353 = vmatprep.subr.mxu0 0.0
  %2354 = vmatpush1.msra.mxu0 %v2134
  %2355 = vmatprep.subr.mxu0 0.0
  %2356 = vmatpush1.msra.mxu0 %v2135
  %2357 = vmatprep.subr.mxu0 0.0
  %2358 = vmatpush1.msra.mxu0 %v2136
  %2359 = vmatprep.subr.mxu0 0.0
  %2360 = vmatpush1.msra.mxu0 %v2137
  %2361 = vmatprep.subr.mxu0 0.0
  %2362 = vmatpush1.msra.mxu0 %v2138
  %2363 = vmatprep.subr.mxu0 0.0
  %2364 = vmatpush1.msra.mxu0 %v2139
  %2365 = vmatprep.subr.mxu0 0.0
  %2366 = vmatpush1.msra.mxu0 %v2140
  %2367 = vmatprep.subr.mxu0 0.0
  %2368 = vmatpush1.msra.mxu0 %v2141
  %2369 = vmatprep.subr.mxu0 0.0
  %2370 = vmatpush1.msra.mxu0 0.0
  %2371 = vmatprep.subr.mxu0 0.0
  %2372 = vmatpush1.msra.mxu0 0.0
  %2373 = vmatprep.subr.mxu0 0.0
  %2374 = vmatpush1.msra.mxu0 0.0
  %2375 = vmatprep.subr.mxu0 0.0
  %2376 = vmatpush1.msra.mxu0 0.0
  %2377 = vmatprep.subr.mxu0 0.0
  %2378 = vmatpush1.msra.mxu0 0.0
  %2379 = vmatprep.subr.mxu0 0.0
  %2380 = vmatpush1.msra.mxu0 0.0
  %2381 = vmatprep.subr.mxu0 0.0
  %2382 = vmatpush1.msra.mxu0 0.0
  %2383 = vmatprep.subr.mxu0 0.0
  %2384 = vmatpush1.msra.mxu0 0.0
  %2385 = vmatprep.subr.mxu0 0.0
  %2386 = vmatpush1.msra.mxu0 0.0
  %2387 = vmatprep.subr.mxu0 0.0
  %2388 = vmatpush1.msra.mxu0 0.0
  %2389 = vmatprep.subr.mxu0 0.0
  %2390 = vmatpush1.msra.mxu0 0.0
  %2391 = vmatprep.subr.mxu0 0.0
  %2392 = vmatpush1.msra.mxu0 0.0
  %2393 = vmatprep.subr.mxu0 0.0
  %2394 = vmatpush1.msra.mxu0 0.0
  %2395 = vmatprep.subr.mxu0 0.0
  %2396 = vmatpush1.msra.mxu0 0.0
  %2397 = vmatprep.subr.mxu0 0.0
  %2398 = vmatpush1.msra.mxu0 0.0
  %2399 = vmatprep.subr.mxu0 0.0
  %2400 = vmatpush1.msra.mxu0 0.0
  %2401 = vmatprep.mubr.f32.mxu0 0.0
  %2402 = vmatmul.mubr.f32.gmra.mrb[0].mxu0 %v2107
  %v2403 = vpop.f32.mrb[0].mxu0
  %v2404 = vadd.f32 %v2244, %v2403
  %v2405 = vpop.f32.mrb[0].mxu0
  %2406 = vmatprep.mubr.f32.mxu0 0.0
  %2407 = vmatmul.mubr.f32.gmra.mrb[0].mxu0 %v2108
  %v2408 = vpop.f32.mrb[0].mxu0
  %v2409 = vadd.f32 %v2249, %v2408
  %v2410 = vpop.f32.mrb[0].mxu0
  %2411 = vmatprep.mubr.f32.mxu0 0.0
  %2412 = vmatmul.mubr.f32.gmra.mrb[0].mxu0 %v2109
  %v2413 = vpop.f32.mrb[0].mxu0
  %v2414 = vadd.f32 %v2254, %v2413
  %v2415 = vpop.f32.mrb[0].mxu0
  %2416 = vmatprep.mubr.f32.mxu0 0.0
  %2417 = vmatmul.mubr.f32.gmra.mrb[0].mxu0 %v2110
  %v2418 = vpop.f32.mrb[0].mxu0
  %v2419 = vadd.f32 %v2259, %v2418
  %v2420 = vpop.f32.mrb[0].mxu0
  %2421 = vmatprep.mubr.f32.mxu0 0.0
  %2422 = vmatmul.mubr.f32.gmra.mrb[0].mxu0 %v2111
  %v2423 = vpop.f32.mrb[0].mxu0
  %v2424 = vadd.f32 %v2264, %v2423
  %v2425 = vpop.f32.mrb[0].mxu0
  %2426 = vmatprep.mubr.f32.mxu0 0.0
  %2427 = vmatmul.mubr.f32.gmra.mrb[0].mxu0 %v2112
  %v2428 = vpop.f32.mrb[0].mxu0
  %v2429 = vadd.f32 %v2269, %v2428
  %v2430 = vpop.f32.mrb[0].mxu0
  %2431 = vmatprep.mubr.f32.mxu0 0.0
  %2432 = vmatmul.mubr.f32.gmra.mrb[0].mxu0 %v2113
  %v2433 = vpop.f32.mrb[0].mxu0
  %v2434 = vadd.f32 %v2274, %v2433
  %v2435 = vpop.f32.mrb[0].mxu0
  %2436 = vmatprep.mubr.f32.mxu0 0.0
  %2437 = vmatmul.mubr.f32.gmra.mrb[0].mxu0 %v2114
  %v2438 = vpop.f32.mrb[0].mxu0
  %v2439 = vadd.f32 %v2279, %v2438
  %v2440 = vpop.f32.mrb[0].mxu0
  %2441 = vmatprep.mubr.f32.mxu0 0.0
  %2442 = vmatmul.mubr.f32.gmra.mrb[0].mxu0 %v2115
  %v2443 = vpop.f32.mrb[0].mxu0
  %v2444 = vadd.f32 %v2284, %v2443
  %v2445 = vpop.f32.mrb[0].mxu0
  %2446 = vmatprep.mubr.f32.mxu0 0.0
  %2447 = vmatmul.mubr.f32.gmra.mrb[0].mxu0 %v2116
  %v2448 = vpop.f32.mrb[0].mxu0
  %v2449 = vadd.f32 %v2289, %v2448
  %v2450 = vpop.f32.mrb[0].mxu0
  %2451 = vmatprep.mubr.f32.mxu0 0.0
  %2452 = vmatmul.mubr.f32.gmra.mrb[0].mxu0 %v2117
  %v2453 = vpop.f32.mrb[0].mxu0
  %v2454 = vadd.f32 %v2294, %v2453
  %v2455 = vpop.f32.mrb[0].mxu0
  %2456 = vmatprep.mubr.f32.mxu0 0.0
  %2457 = vmatmul.mubr.f32.gmra.mrb[0].mxu0 %v2118
  %v2458 = vpop.f32.mrb[0].mxu0
  %v2459 = vadd.f32 %v2299, %v2458
  %v2460 = vpop.f32.mrb[0].mxu0
  %2461 = vmatprep.mubr.f32.mxu0 0.0
  %2462 = vmatmul.mubr.f32.gmra.mrb[0].mxu0 %v2119
  %v2463 = vpop.f32.mrb[0].mxu0
  %v2464 = vadd.f32 %v2304, %v2463
  %v2465 = vpop.f32.mrb[0].mxu0
  %2466 = vmatprep.mubr.f32.mxu0 0.0
  %2467 = vmatmul.mubr.f32.gmra.mrb[0].mxu0 %v2120
  %v2468 = vpop.f32.mrb[0].mxu0
  %v2469 = vadd.f32 %v2309, %v2468
  %v2470 = vpop.f32.mrb[0].mxu0
  %2471 = vmatprep.mubr.f32.mxu0 0.0
  %2472 = vmatmul.mubr.f32.gmra.mrb[0].mxu0 %v2121
  %v2473 = vpop.f32.mrb[0].mxu0
  %v2474 = vadd.f32 %v2314, %v2473
  %v2475 = vpop.f32.mrb[0].mxu0
  %2476 = vmatprep.mubr.f32.mxu0 0.0
  %2477 = vmatmul.mubr.f32.gmra.mrb[0].mxu0 %v2122
  %v2478 = vpop.f32.mrb[0].mxu0
  %v2479 = vadd.f32 %v2319, %v2478
  %v2480 = vpop.f32.mrb[0].mxu0
  %2481 = vmatprep.mubr.f32.mxu0 0.0
  %2482 = vmatmul.mubr.f32.gmra.mrb[0].mxu0 %v2123
  %v2483 = vpop.f32.mrb[0].mxu0
  %v2484 = vadd.f32 %v2324, %v2483
  %v2485 = vpop.f32.mrb[0].mxu0
  %2486 = vmatprep.mubr.f32.mxu0 0.0
  %2487 = vmatmul.mubr.f32.gmra.mrb[0].mxu0 %v2124
  %v2488 = vpop.f32.mrb[0].mxu0
  %v2489 = vadd.f32 %v2329, %v2488
  %v2490 = vpop.f32.mrb[0].mxu0
  %2491 = vmatprep.mubr.f32.mxu0 0.0
  %2492 = vmatmul.mubr.f32.gmra.mrb[0].mxu0 %v2125
  %v2493 = vpop.f32.mrb[0].mxu0
  %v2494 = vadd.f32 %v2334, %v2493
  %v2495 = vpop.f32.mrb[0].mxu0
  %2496 = vdwg.mxu0
  %v2497 = vld [vmem:[#allocation2 + $0x2] sm:$0xff]
  %v2498 = vld [vmem:[#allocation2 + $0xa] sm:$0xff]
  %v2499 = vld [vmem:[#allocation2 + $0x12] sm:$0xff]
  %v2500 = vld [vmem:[#allocation2 + $0x1a] sm:$0xff]
  %v2501 = vld [vmem:[#allocation2 + $0x22] sm:$0xff]
  %v2502 = vld [vmem:[#allocation2 + $0x2a] sm:$0xff]
  %v2503 = vld [vmem:[#allocation2 + $0x32] sm:$0xff]
  %v2504 = vld [vmem:[#allocation2 + $0x3a] sm:$0xff]
  %v2505 = vld [vmem:[#allocation2 + $0x42] sm:$0xff]
  %v2506 = vld [vmem:[#allocation2 + $0x4a] sm:$0xff]
  %v2507 = vld [vmem:[#allocation2 + $0x52] sm:$0xff]
  %v2508 = vld [vmem:[#allocation2 + $0x5a] sm:$0xff]
  %v2509 = vld [vmem:[#allocation2 + $0x62] sm:$0xff]
  %v2510 = vld [vmem:[#allocation2 + $0x6a] sm:$0xff]
  %v2511 = vld [vmem:[#allocation2 + $0x72] sm:$0xff]
  %v2512 = vld [vmem:[#allocation2 + $0x7a] sm:$0xff]
  %v2513 = vld [vmem:[#allocation2 + $0x82] sm:$0xff]
  %v2514 = vld [vmem:[#allocation2 + $0x8a] sm:$0xff]
  %v2515 = vld [vmem:[#allocation2 + $0x92] sm:$0xff]
  %v2516 = vld [vmem:[%s3 + $0x100] sm:$0xff]
  %v2517 = vld [vmem:[%s3 + $0x108] sm:$0xff]
  %v2518 = vld [vmem:[%s3 + $0x110] sm:$0xff]
  %v2519 = vld [vmem:[%s3 + $0x118] sm:$0xff]
  %v2520 = vld [vmem:[%s3 + $0x120] sm:$0xff]
  %v2521 = vld [vmem:[%s3 + $0x128] sm:$0xff]
  %v2522 = vld [vmem:[%s3 + $0x130] sm:$0xff]
  %v2523 = vld [vmem:[%s3 + $0x138] sm:$0xff]
  %v2524 = vld [vmem:[%s3 + $0x140] sm:$0xff]
  %v2525 = vld [vmem:[%s3 + $0x148] sm:$0xff]
  %v2526 = vld [vmem:[%s3 + $0x150] sm:$0xff]
  %v2527 = vld [vmem:[%s3 + $0x158] sm:$0xff]
  %v2528 = vld [vmem:[%s3 + $0x160] sm:$0xff]
  %v2529 = vld [vmem:[%s3 + $0x168] sm:$0xff]
  %v2530 = vld [vmem:[%s3 + $0x170] sm:$0xff]
  %v2531 = vld [vmem:[%s3 + $0x178] sm:$0xff]
  %2532 = vmatprep.subr.mxu0 0.0
  %2533 = vmatpush1.msra.mxu0 %v2516
  %2534 = vmatprep.subr.mxu0 0.0
  %2535 = vmatpush1.msra.mxu0 %v2517
  %2536 = vmatprep.subr.mxu0 0.0
  %2537 = vmatpush1.msra.mxu0 %v2518
  %2538 = vmatprep.subr.mxu0 0.0
  %2539 = vmatpush1.msra.mxu0 %v2519
  %2540 = vmatprep.subr.mxu0 0.0
  %2541 = vmatpush1.msra.mxu0 %v2520
  %2542 = vmatprep.subr.mxu0 0.0
  %2543 = vmatpush1.msra.mxu0 %v2521
  %2544 = vmatprep.subr.mxu0 0.0
  %2545 = vmatpush1.msra.mxu0 %v2522
  %2546 = vmatprep.subr.mxu0 0.0
  %2547 = vmatpush1.msra.mxu0 %v2523
  %2548 = vmatprep.subr.mxu0 0.0
  %2549 = vmatpush1.msra.mxu0 %v2524
  %2550 = vmatprep.subr.mxu0 0.0
  %2551 = vmatpush1.msra.mxu0 %v2525
  %2552 = vmatprep.subr.mxu0 0.0
  %2553 = vmatpush1.msra.mxu0 %v2526
  %2554 = vmatprep.subr.mxu0 0.0
  %2555 = vmatpush1.msra.mxu0 %v2527
  %2556 = vmatprep.subr.mxu0 0.0
  %2557 = vmatpush1.msra.mxu0 %v2528
  %2558 = vmatprep.subr.mxu0 0.0
  %2559 = vmatpush1.msra.mxu0 %v2529
  %2560 = vmatprep.subr.mxu0 0.0
  %2561 = vmatpush1.msra.mxu0 %v2530
  %2562 = vmatprep.subr.mxu0 0.0
  %2563 = vmatpush1.msra.mxu0 %v2531
  %2564 = vmatprep.subr.mxu0 0.0
  %2565 = vmatpush1.msra.mxu0 0.0
  %2566 = vmatprep.subr.mxu0 0.0
  %2567 = vmatpush1.msra.mxu0 0.0
  %2568 = vmatprep.subr.mxu0 0.0
  %2569 = vmatpush1.msra.mxu0 0.0
  %2570 = vmatprep.subr.mxu0 0.0
  %2571 = vmatpush1.msra.mxu0 0.0
  %2572 = vmatprep.subr.mxu0 0.0
  %2573 = vmatpush1.msra.mxu0 0.0
  %2574 = vmatprep.subr.mxu0 0.0
  %2575 = vmatpush1.msra.mxu0 0.0
  %2576 = vmatprep.subr.mxu0 0.0
  %2577 = vmatpush1.msra.mxu0 0.0
  %2578 = vmatprep.subr.mxu0 0.0
  %2579 = vmatpush1.msra.mxu0 0.0
  %2580 = vmatprep.subr.mxu0 0.0
  %2581 = vmatpush1.msra.mxu0 0.0
  %2582 = vmatprep.subr.mxu0 0.0
  %2583 = vmatpush1.msra.mxu0 0.0
  %2584 = vmatprep.subr.mxu0 0.0
  %2585 = vmatpush1.msra.mxu0 0.0
  %2586 = vmatprep.subr.mxu0 0.0
  %2587 = vmatpush1.msra.mxu0 0.0
  %2588 = vmatprep.subr.mxu0 0.0
  %2589 = vmatpush1.msra.mxu0 0.0
  %2590 = vmatprep.subr.mxu0 0.0
  %2591 = vmatpush1.msra.mxu0 0.0
  %2592 = vmatprep.subr.mxu0 0.0
  %2593 = vmatpush1.msra.mxu0 0.0
  %2594 = vmatprep.subr.mxu0 0.0
  %2595 = vmatpush1.msra.mxu0 0.0
  %2596 = vmatprep.mubr.f32.mxu0 0.0
  %2597 = vmatmul.mubr.f32.gmra.mrb[0].mxu0 %v2497
  %v2598 = vpop.f32.mrb[0].mxu0
  %v2599 = vadd.f32 0.0, %v2598
  %v2600 = vpop.f32.mrb[0].mxu0
  %2601 = vmatprep.mubr.f32.mxu0 0.0
  %2602 = vmatmul.mubr.f32.gmra.mrb[0].mxu0 %v2498
  %v2603 = vpop.f32.mrb[0].mxu0
  %v2604 = vadd.f32 0.0, %v2603
  %v2605 = vpop.f32.mrb[0].mxu0
  %2606 = vmatprep.mubr.f32.mxu0 0.0
  %2607 = vmatmul.mubr.f32.gmra.mrb[0].mxu0 %v2499
  %v2608 = vpop.f32.mrb[0].mxu0
  %v2609 = vadd.f32 0.0, %v2608
  %v2610 = vpop.f32.mrb[0].mxu0
  %2611 = vmatprep.mubr.f32.mxu0 0.0
  %2612 = vmatmul.mubr.f32.gmra.mrb[0].mxu0 %v2500
  %v2613 = vpop.f32.mrb[0].mxu0
  %v2614 = vadd.f32 0.0, %v2613
  %v2615 = vpop.f32.mrb[0].mxu0
  %2616 = vmatprep.mubr.f32.mxu0 0.0
  %2617 = vmatmul.mubr.f32.gmra.mrb[0].mxu0 %v2501
  %v2618 = vpop.f32.mrb[0].mxu0
  %v2619 = vadd.f32 0.0, %v2618
  %v2620 = vpop.f32.mrb[0].mxu0
  %2621 = vmatprep.mubr.f32.mxu0 0.0
  %2622 = vmatmul.mubr.f32.gmra.mrb[0].mxu0 %v2502
  %v2623 = vpop.f32.mrb[0].mxu0
  %v2624 = vadd.f32 0.0, %v2623
  %v2625 = vpop.f32.mrb[0].mxu0
  %2626 = vmatprep.mubr.f32.mxu0 0.0
  %2627 = vmatmul.mubr.f32.gmra.mrb[0].mxu0 %v2503
  %v2628 = vpop.f32.mrb[0].mxu0
  %v2629 = vadd.f32 0.0, %v2628
  %v2630 = vpop.f32.mrb[0].mxu0
  %2631 = vmatprep.mubr.f32.mxu0 0.0
  %2632 = vmatmul.mubr.f32.gmra.mrb[0].mxu0 %v2504
  %v2633 = vpop.f32.mrb[0].mxu0
  %v2634 = vadd.f32 0.0, %v2633
  %v2635 = vpop.f32.mrb[0].mxu0
  %2636 = vmatprep.mubr.f32.mxu0 0.0
  %2637 = vmatmul.mubr.f32.gmra.mrb[0].mxu0 %v2505
  %v2638 = vpop.f32.mrb[0].mxu0
  %v2639 = vadd.f32 0.0, %v2638
  %v2640 = vpop.f32.mrb[0].mxu0
  %2641 = vmatprep.mubr.f32.mxu0 0.0
  %2642 = vmatmul.mubr.f32.gmra.mrb[0].mxu0 %v2506
  %v2643 = vpop.f32.mrb[0].mxu0
  %v2644 = vadd.f32 0.0, %v2643
  %v2645 = vpop.f32.mrb[0].mxu0
  %2646 = vmatprep.mubr.f32.mxu0 0.0
  %2647 = vmatmul.mubr.f32.gmra.mrb[0].mxu0 %v2507
  %v2648 = vpop.f32.mrb[0].mxu0
  %v2649 = vadd.f32 0.0, %v2648
  %v2650 = vpop.f32.mrb[0].mxu0
  %2651 = vmatprep.mubr.f32.mxu0 0.0
  %2652 = vmatmul.mubr.f32.gmra.mrb[0].mxu0 %v2508
  %v2653 = vpop.f32.mrb[0].mxu0
  %v2654 = vadd.f32 0.0, %v2653
  %v2655 = vpop.f32.mrb[0].mxu0
  %2656 = vmatprep.mubr.f32.mxu0 0.0
  %2657 = vmatmul.mubr.f32.gmra.mrb[0].mxu0 %v2509
  %v2658 = vpop.f32.mrb[0].mxu0
  %v2659 = vadd.f32 0.0, %v2658
  %v2660 = vpop.f32.mrb[0].mxu0
  %2661 = vmatprep.mubr.f32.mxu0 0.0
  %2662 = vmatmul.mubr.f32.gmra.mrb[0].mxu0 %v2510
  %v2663 = vpop.f32.mrb[0].mxu0
  %v2664 = vadd.f32 0.0, %v2663
  %v2665 = vpop.f32.mrb[0].mxu0
  %2666 = vmatprep.mubr.f32.mxu0 0.0
  %2667 = vmatmul.mubr.f32.gmra.mrb[0].mxu0 %v2511
  %v2668 = vpop.f32.mrb[0].mxu0
  %v2669 = vadd.f32 0.0, %v2668
  %v2670 = vpop.f32.mrb[0].mxu0
  %2671 = vmatprep.mubr.f32.mxu0 0.0
  %2672 = vmatmul.mubr.f32.gmra.mrb[0].mxu0 %v2512
  %v2673 = vpop.f32.mrb[0].mxu0
  %v2674 = vadd.f32 0.0, %v2673
  %v2675 = vpop.f32.mrb[0].mxu0
  %2676 = vmatprep.mubr.f32.mxu0 0.0
  %2677 = vmatmul.mubr.f32.gmra.mrb[0].mxu0 %v2513
  %v2678 = vpop.f32.mrb[0].mxu0
  %v2679 = vadd.f32 0.0, %v2678
  %v2680 = vpop.f32.mrb[0].mxu0
  %2681 = vmatprep.mubr.f32.mxu0 0.0
  %2682 = vmatmul.mubr.f32.gmra.mrb[0].mxu0 %v2514
  %v2683 = vpop.f32.mrb[0].mxu0
  %v2684 = vadd.f32 0.0, %v2683
  %v2685 = vpop.f32.mrb[0].mxu0
  %2686 = vmatprep.mubr.f32.mxu0 0.0
  %2687 = vmatmul.mubr.f32.gmra.mrb[0].mxu0 %v2515
  %v2688 = vpop.f32.mrb[0].mxu0
  %v2689 = vadd.f32 0.0, %v2688
  %v2690 = vpop.f32.mrb[0].mxu0
  %2691 = vdwg.mxu0
  %v2692 = vadd.f32 %v2404, %v2599
  %v2693 = vadd.f32 %v2409, %v2604
  %v2694 = vadd.f32 %v2414, %v2609
  %v2695 = vadd.f32 %v2419, %v2614
  %v2696 = vadd.f32 %v2424, %v2619
  %v2697 = vadd.f32 %v2429, %v2624
  %v2698 = vadd.f32 %v2434, %v2629
  %v2699 = vadd.f32 %v2439, %v2634
  %v2700 = vadd.f32 %v2444, %v2639
  %v2701 = vadd.f32 %v2449, %v2644
  %v2702 = vadd.f32 %v2454, %v2649
  %v2703 = vadd.f32 %v2459, %v2654
  %v2704 = vadd.f32 %v2464, %v2659
  %v2705 = vadd.f32 %v2469, %v2664
  %v2706 = vadd.f32 %v2474, %v2669
  %v2707 = vadd.f32 %v2479, %v2674
  %v2708 = vadd.f32 %v2484, %v2679
  %v2709 = vadd.f32 %v2489, %v2684
  %v2710 = vadd.f32 %v2494, %v2689
  %v2711 = vld [vmem:[#allocation2 + $0x9] sm:$0xff]
  %v2712 = vld [vmem:[#allocation2 + $0x11] sm:$0xff]
  %v2713 = vld [vmem:[#allocation2 + $0x19] sm:$0xff]
  %v2714 = vld [vmem:[#allocation2 + $0x21] sm:$0xff]
  %v2715 = vld [vmem:[#allocation2 + $0x29] sm:$0xff]
  %v2716 = vld [vmem:[#allocation2 + $0x31] sm:$0xff]
  %v2717 = vld [vmem:[#allocation2 + $0x39] sm:$0xff]
  %v2718 = vld [vmem:[#allocation2 + $0x41] sm:$0xff]
  %v2719 = vld [vmem:[#allocation2 + $0x49] sm:$0xff]
  %v2720 = vld [vmem:[#allocation2 + $0x51] sm:$0xff]
  %v2721 = vld [vmem:[#allocation2 + $0x59] sm:$0xff]
  %v2722 = vld [vmem:[#allocation2 + $0x61] sm:$0xff]
  %v2723 = vld [vmem:[#allocation2 + $0x69] sm:$0xff]
  %v2724 = vld [vmem:[#allocation2 + $0x71] sm:$0xff]
  %v2725 = vld [vmem:[#allocation2 + $0x79] sm:$0xff]
  %v2726 = vld [vmem:[#allocation2 + $0x81] sm:$0xff]
  %v2727 = vld [vmem:[#allocation2 + $0x89] sm:$0xff]
  %v2728 = vld [vmem:[#allocation2 + $0x91] sm:$0xff]
  %v2729 = vld [vmem:[#allocation2 + $0x99] sm:$0xff]
  %v2730 = vld [vmem:[%s3 + $0x180] sm:$0xff]
  %v2731 = vld [vmem:[%s3 + $0x188] sm:$0xff]
  %v2732 = vld [vmem:[%s3 + $0x190] sm:$0xff]
  %v2733 = vld [vmem:[%s3 + $0x198] sm:$0xff]
  %v2734 = vld [vmem:[%s3 + $0x1a0] sm:$0xff]
  %v2735 = vld [vmem:[%s3 + $0x1a8] sm:$0xff]
  %v2736 = vld [vmem:[%s3 + $0x1b0] sm:$0xff]
  %v2737 = vld [vmem:[%s3 + $0x1b8] sm:$0xff]
  %v2738 = vld [vmem:[%s3 + $0x1c0] sm:$0xff]
  %v2739 = vld [vmem:[%s3 + $0x1c8] sm:$0xff]
  %v2740 = vld [vmem:[%s3 + $0x1d0] sm:$0xff]
  %v2741 = vld [vmem:[%s3 + $0x1d8] sm:$0xff]
  %v2742 = vld [vmem:[%s3 + $0x1e0] sm:$0xff]
  %v2743 = vld [vmem:[%s3 + $0x1e8] sm:$0xff]
  %v2744 = vld [vmem:[%s3 + $0x1f0] sm:$0xff]
  %v2745 = vld [vmem:[%s3 + $0x1f8] sm:$0xff]
  %2746 = vmatprep.subr.mxu0 0.0
  %2747 = vmatpush1.msra.mxu0 %v2730
  %2748 = vmatprep.subr.mxu0 0.0
  %2749 = vmatpush1.msra.mxu0 %v2731
  %2750 = vmatprep.subr.mxu0 0.0
  %2751 = vmatpush1.msra.mxu0 %v2732
  %2752 = vmatprep.subr.mxu0 0.0
  %2753 = vmatpush1.msra.mxu0 %v2733
  %2754 = vmatprep.subr.mxu0 0.0
  %2755 = vmatpush1.msra.mxu0 %v2734
  %2756 = vmatprep.subr.mxu0 0.0
  %2757 = vmatpush1.msra.mxu0 %v2735
  %2758 = vmatprep.subr.mxu0 0.0
  %2759 = vmatpush1.msra.mxu0 %v2736
  %2760 = vmatprep.subr.mxu0 0.0
  %2761 = vmatpush1.msra.mxu0 %v2737
  %2762 = vmatprep.subr.mxu0 0.0
  %2763 = vmatpush1.msra.mxu0 %v2738
  %2764 = vmatprep.subr.mxu0 0.0
  %2765 = vmatpush1.msra.mxu0 %v2739
  %2766 = vmatprep.subr.mxu0 0.0
  %2767 = vmatpush1.msra.mxu0 %v2740
  %2768 = vmatprep.subr.mxu0 0.0
  %2769 = vmatpush1.msra.mxu0 %v2741
  %2770 = vmatprep.subr.mxu0 0.0
  %2771 = vmatpush1.msra.mxu0 %v2742
  %2772 = vmatprep.subr.mxu0 0.0
  %2773 = vmatpush1.msra.mxu0 %v2743
  %2774 = vmatprep.subr.mxu0 0.0
  %2775 = vmatpush1.msra.mxu0 %v2744
  %2776 = vmatprep.subr.mxu0 0.0
  %2777 = vmatpush1.msra.mxu0 %v2745
  %2778 = vmatprep.subr.mxu0 0.0
  %2779 = vmatpush1.msra.mxu0 0.0
  %2780 = vmatprep.subr.mxu0 0.0
  %2781 = vmatpush1.msra.mxu0 0.0
  %2782 = vmatprep.subr.mxu0 0.0
  %2783 = vmatpush1.msra.mxu0 0.0
  %2784 = vmatprep.subr.mxu0 0.0
  %2785 = vmatpush1.msra.mxu0 0.0
  %2786 = vmatprep.subr.mxu0 0.0
  %2787 = vmatpush1.msra.mxu0 0.0
  %2788 = vmatprep.subr.mxu0 0.0
  %2789 = vmatpush1.msra.mxu0 0.0
  %2790 = vmatprep.subr.mxu0 0.0
  %2791 = vmatpush1.msra.mxu0 0.0
  %2792 = vmatprep.subr.mxu0 0.0
  %2793 = vmatpush1.msra.mxu0 0.0
  %2794 = vmatprep.subr.mxu0 0.0
  %2795 = vmatpush1.msra.mxu0 0.0
  %2796 = vmatprep.subr.mxu0 0.0
  %2797 = vmatpush1.msra.mxu0 0.0
  %2798 = vmatprep.subr.mxu0 0.0
  %2799 = vmatpush1.msra.mxu0 0.0
  %2800 = vmatprep.subr.mxu0 0.0
  %2801 = vmatpush1.msra.mxu0 0.0
  %2802 = vmatprep.subr.mxu0 0.0
  %2803 = vmatpush1.msra.mxu0 0.0
  %2804 = vmatprep.subr.mxu0 0.0
  %2805 = vmatpush1.msra.mxu0 0.0
  %2806 = vmatprep.subr.mxu0 0.0
  %2807 = vmatpush1.msra.mxu0 0.0
  %2808 = vmatprep.subr.mxu0 0.0
  %2809 = vmatpush1.msra.mxu0 0.0
  %2810 = vmatprep.mubr.f32.mxu0 0.0
  %2811 = vmatmul.mubr.f32.gmra.mrb[0].mxu0 %v2711
  %v2812 = vpop.f32.mrb[0].mxu0
  %v2813 = vadd.f32 0.0, %v2812
  %v2814 = vpop.f32.mrb[0].mxu0
  %2815 = vmatprep.mubr.f32.mxu0 0.0
  %2816 = vmatmul.mubr.f32.gmra.mrb[0].mxu0 %v2712
  %v2817 = vpop.f32.mrb[0].mxu0
  %v2818 = vadd.f32 0.0, %v2817
  %v2819 = vpop.f32.mrb[0].mxu0
  %2820 = vmatprep.mubr.f32.mxu0 0.0
  %2821 = vmatmul.mubr.f32.gmra.mrb[0].mxu0 %v2713
  %v2822 = vpop.f32.mrb[0].mxu0
  %v2823 = vadd.f32 0.0, %v2822
  %v2824 = vpop.f32.mrb[0].mxu0
  %2825 = vmatprep.mubr.f32.mxu0 0.0
  %2826 = vmatmul.mubr.f32.gmra.mrb[0].mxu0 %v2714
  %v2827 = vpop.f32.mrb[0].mxu0
  %v2828 = vadd.f32 0.0, %v2827
  %v2829 = vpop.f32.mrb[0].mxu0
  %2830 = vmatprep.mubr.f32.mxu0 0.0
  %2831 = vmatmul.mubr.f32.gmra.mrb[0].mxu0 %v2715
  %v2832 = vpop.f32.mrb[0].mxu0
  %v2833 = vadd.f32 0.0, %v2832
  %v2834 = vpop.f32.mrb[0].mxu0
  %2835 = vmatprep.mubr.f32.mxu0 0.0
  %2836 = vmatmul.mubr.f32.gmra.mrb[0].mxu0 %v2716
  %v2837 = vpop.f32.mrb[0].mxu0
  %v2838 = vadd.f32 0.0, %v2837
  %v2839 = vpop.f32.mrb[0].mxu0
  %2840 = vmatprep.mubr.f32.mxu0 0.0
  %2841 = vmatmul.mubr.f32.gmra.mrb[0].mxu0 %v2717
  %v2842 = vpop.f32.mrb[0].mxu0
  %v2843 = vadd.f32 0.0, %v2842
  %v2844 = vpop.f32.mrb[0].mxu0
  %2845 = vmatprep.mubr.f32.mxu0 0.0
  %2846 = vmatmul.mubr.f32.gmra.mrb[0].mxu0 %v2718
  %v2847 = vpop.f32.mrb[0].mxu0
  %v2848 = vadd.f32 0.0, %v2847
  %v2849 = vpop.f32.mrb[0].mxu0
  %2850 = vmatprep.mubr.f32.mxu0 0.0
  %2851 = vmatmul.mubr.f32.gmra.mrb[0].mxu0 %v2719
  %v2852 = vpop.f32.mrb[0].mxu0
  %v2853 = vadd.f32 0.0, %v2852
  %v2854 = vpop.f32.mrb[0].mxu0
  %2855 = vmatprep.mubr.f32.mxu0 0.0
  %2856 = vmatmul.mubr.f32.gmra.mrb[0].mxu0 %v2720
  %v2857 = vpop.f32.mrb[0].mxu0
  %v2858 = vadd.f32 0.0, %v2857
  %v2859 = vpop.f32.mrb[0].mxu0
  %2860 = vmatprep.mubr.f32.mxu0 0.0
  %2861 = vmatmul.mubr.f32.gmra.mrb[0].mxu0 %v2721
  %v2862 = vpop.f32.mrb[0].mxu0
  %v2863 = vadd.f32 0.0, %v2862
  %v2864 = vpop.f32.mrb[0].mxu0
  %2865 = vmatprep.mubr.f32.mxu0 0.0
  %2866 = vmatmul.mubr.f32.gmra.mrb[0].mxu0 %v2722
  %v2867 = vpop.f32.mrb[0].mxu0
  %v2868 = vadd.f32 0.0, %v2867
  %v2869 = vpop.f32.mrb[0].mxu0
  %2870 = vmatprep.mubr.f32.mxu0 0.0
  %2871 = vmatmul.mubr.f32.gmra.mrb[0].mxu0 %v2723
  %v2872 = vpop.f32.mrb[0].mxu0
  %v2873 = vadd.f32 0.0, %v2872
  %v2874 = vpop.f32.mrb[0].mxu0
  %2875 = vmatprep.mubr.f32.mxu0 0.0
  %2876 = vmatmul.mubr.f32.gmra.mrb[0].mxu0 %v2724
  %v2877 = vpop.f32.mrb[0].mxu0
  %v2878 = vadd.f32 0.0, %v2877
  %v2879 = vpop.f32.mrb[0].mxu0
  %2880 = vmatprep.mubr.f32.mxu0 0.0
  %2881 = vmatmul.mubr.f32.gmra.mrb[0].mxu0 %v2725
  %v2882 = vpop.f32.mrb[0].mxu0
  %v2883 = vadd.f32 0.0, %v2882
  %v2884 = vpop.f32.mrb[0].mxu0
  %2885 = vmatprep.mubr.f32.mxu0 0.0
  %2886 = vmatmul.mubr.f32.gmra.mrb[0].mxu0 %v2726
  %v2887 = vpop.f32.mrb[0].mxu0
  %v2888 = vadd.f32 0.0, %v2887
  %v2889 = vpop.f32.mrb[0].mxu0
  %2890 = vmatprep.mubr.f32.mxu0 0.0
  %2891 = vmatmul.mubr.f32.gmra.mrb[0].mxu0 %v2727
  %v2892 = vpop.f32.mrb[0].mxu0
  %v2893 = vadd.f32 0.0, %v2892
  %v2894 = vpop.f32.mrb[0].mxu0
  %2895 = vmatprep.mubr.f32.mxu0 0.0
  %2896 = vmatmul.mubr.f32.gmra.mrb[0].mxu0 %v2728
  %v2897 = vpop.f32.mrb[0].mxu0
  %v2898 = vadd.f32 0.0, %v2897
  %v2899 = vpop.f32.mrb[0].mxu0
  %2900 = vmatprep.mubr.f32.mxu0 0.0
  %2901 = vmatmul.mubr.f32.gmra.mrb[0].mxu0 %v2729
  %v2902 = vpop.f32.mrb[0].mxu0
  %v2903 = vadd.f32 0.0, %v2902
  %v2904 = vpop.f32.mrb[0].mxu0
  %2905 = vdwg.mxu0
  %v2906 = vadd.f32 %v2692, %v2813
  %v2907 = vadd.f32 %v2693, %v2818
  %v2908 = vadd.f32 %v2694, %v2823
  %v2909 = vadd.f32 %v2695, %v2828
  %v2910 = vadd.f32 %v2696, %v2833
  %v2911 = vadd.f32 %v2697, %v2838
  %v2912 = vadd.f32 %v2698, %v2843
  %v2913 = vadd.f32 %v2699, %v2848
  %v2914 = vadd.f32 %v2700, %v2853
  %v2915 = vadd.f32 %v2701, %v2858
  %v2916 = vadd.f32 %v2702, %v2863
  %v2917 = vadd.f32 %v2703, %v2868
  %v2918 = vadd.f32 %v2704, %v2873
  %v2919 = vadd.f32 %v2705, %v2878
  %v2920 = vadd.f32 %v2706, %v2883
  %v2921 = vadd.f32 %v2707, %v2888
  %v2922 = vadd.f32 %v2708, %v2893
  %v2923 = vadd.f32 %v2709, %v2898
  %v2924 = vadd.f32 %v2710, %v2903
  %v2925 = vld [vmem:[#allocation2 + $0xa] sm:$0xff]
  %v2926 = vld [vmem:[#allocation2 + $0x12] sm:$0xff]
  %v2927 = vld [vmem:[#allocation2 + $0x1a] sm:$0xff]
  %v2928 = vld [vmem:[#allocation2 + $0x22] sm:$0xff]
  %v2929 = vld [vmem:[#allocation2 + $0x2a] sm:$0xff]
  %v2930 = vld [vmem:[#allocation2 + $0x32] sm:$0xff]
  %v2931 = vld [vmem:[#allocation2 + $0x3a] sm:$0xff]
  %v2932 = vld [vmem:[#allocation2 + $0x42] sm:$0xff]
  %v2933 = vld [vmem:[#allocation2 + $0x4a] sm:$0xff]
  %v2934 = vld [vmem:[#allocation2 + $0x52] sm:$0xff]
  %v2935 = vld [vmem:[#allocation2 + $0x5a] sm:$0xff]
  %v2936 = vld [vmem:[#allocation2 + $0x62] sm:$0xff]
  %v2937 = vld [vmem:[#allocation2 + $0x6a] sm:$0xff]
  %v2938 = vld [vmem:[#allocation2 + $0x72] sm:$0xff]
  %v2939 = vld [vmem:[#allocation2 + $0x7a] sm:$0xff]
  %v2940 = vld [vmem:[#allocation2 + $0x82] sm:$0xff]
  %v2941 = vld [vmem:[#allocation2 + $0x8a] sm:$0xff]
  %v2942 = vld [vmem:[#allocation2 + $0x92] sm:$0xff]
  %v2943 = vld [vmem:[#allocation2 + $0x9a] sm:$0xff]
  %v2944 = vld [vmem:[%s3 + $0x200] sm:$0xff]
  %v2945 = vld [vmem:[%s3 + $0x208] sm:$0xff]
  %v2946 = vld [vmem:[%s3 + $0x210] sm:$0xff]
  %v2947 = vld [vmem:[%s3 + $0x218] sm:$0xff]
  %v2948 = vld [vmem:[%s3 + $0x220] sm:$0xff]
  %v2949 = vld [vmem:[%s3 + $0x228] sm:$0xff]
  %v2950 = vld [vmem:[%s3 + $0x230] sm:$0xff]
  %v2951 = vld [vmem:[%s3 + $0x238] sm:$0xff]
  %v2952 = vld [vmem:[%s3 + $0x240] sm:$0xff]
  %v2953 = vld [vmem:[%s3 + $0x248] sm:$0xff]
  %v2954 = vld [vmem:[%s3 + $0x250] sm:$0xff]
  %v2955 = vld [vmem:[%s3 + $0x258] sm:$0xff]
  %v2956 = vld [vmem:[%s3 + $0x260] sm:$0xff]
  %v2957 = vld [vmem:[%s3 + $0x268] sm:$0xff]
  %v2958 = vld [vmem:[%s3 + $0x270] sm:$0xff]
  %v2959 = vld [vmem:[%s3 + $0x278] sm:$0xff]
  %2960 = vmatprep.subr.mxu0 0.0
  %2961 = vmatpush1.msra.mxu0 %v2944
  %2962 = vmatprep.subr.mxu0 0.0
  %2963 = vmatpush1.msra.mxu0 %v2945
  %2964 = vmatprep.subr.mxu0 0.0
  %2965 = vmatpush1.msra.mxu0 %v2946
  %2966 = vmatprep.subr.mxu0 0.0
  %2967 = vmatpush1.msra.mxu0 %v2947
  %2968 = vmatprep.subr.mxu0 0.0
  %2969 = vmatpush1.msra.mxu0 %v2948
  %2970 = vmatprep.subr.mxu0 0.0
  %2971 = vmatpush1.msra.mxu0 %v2949
  %2972 = vmatprep.subr.mxu0 0.0
  %2973 = vmatpush1.msra.mxu0 %v2950
  %2974 = vmatprep.subr.mxu0 0.0
  %2975 = vmatpush1.msra.mxu0 %v2951
  %2976 = vmatprep.subr.mxu0 0.0
  %2977 = vmatpush1.msra.mxu0 %v2952
  %2978 = vmatprep.subr.mxu0 0.0
  %2979 = vmatpush1.msra.mxu0 %v2953
  %2980 = vmatprep.subr.mxu0 0.0
  %2981 = vmatpush1.msra.mxu0 %v2954
  %2982 = vmatprep.subr.mxu0 0.0
  %2983 = vmatpush1.msra.mxu0 %v2955
  %2984 = vmatprep.subr.mxu0 0.0
  %2985 = vmatpush1.msra.mxu0 %v2956
  %2986 = vmatprep.subr.mxu0 0.0
  %2987 = vmatpush1.msra.mxu0 %v2957
  %2988 = vmatprep.subr.mxu0 0.0
  %2989 = vmatpush1.msra.mxu0 %v2958
  %2990 = vmatprep.subr.mxu0 0.0
  %2991 = vmatpush1.msra.mxu0 %v2959
  %2992 = vmatprep.subr.mxu0 0.0
  %2993 = vmatpush1.msra.mxu0 0.0
  %2994 = vmatprep.subr.mxu0 0.0
  %2995 = vmatpush1.msra.mxu0 0.0
  %2996 = vmatprep.subr.mxu0 0.0
  %2997 = vmatpush1.msra.mxu0 0.0
  %2998 = vmatprep.subr.mxu0 0.0
  %2999 = vmatpush1.msra.mxu0 0.0
  %3000 = vmatprep.subr.mxu0 0.0
  %3001 = vmatpush1.msra.mxu0 0.0
  %3002 = vmatprep.subr.mxu0 0.0
  %3003 = vmatpush1.msra.mxu0 0.0
  %3004 = vmatprep.subr.mxu0 0.0
  %3005 = vmatpush1.msra.mxu0 0.0
  %3006 = vmatprep.subr.mxu0 0.0
  %3007 = vmatpush1.msra.mxu0 0.0
  %3008 = vmatprep.subr.mxu0 0.0
  %3009 = vmatpush1.msra.mxu0 0.0
  %3010 = vmatprep.subr.mxu0 0.0
  %3011 = vmatpush1.msra.mxu0 0.0
  %3012 = vmatprep.subr.mxu0 0.0
  %3013 = vmatpush1.msra.mxu0 0.0
  %3014 = vmatprep.subr.mxu0 0.0
  %3015 = vmatpush1.msra.mxu0 0.0
  %3016 = vmatprep.subr.mxu0 0.0
  %3017 = vmatpush1.msra.mxu0 0.0
  %3018 = vmatprep.subr.mxu0 0.0
  %3019 = vmatpush1.msra.mxu0 0.0
  %3020 = vmatprep.subr.mxu0 0.0
  %3021 = vmatpush1.msra.mxu0 0.0
  %3022 = vmatprep.subr.mxu0 0.0
  %3023 = vmatpush1.msra.mxu0 0.0
  %3024 = vmatprep.mubr.f32.mxu0 0.0
  %3025 = vmatmul.mubr.f32.gmra.mrb[0].mxu0 %v2925
  %v3026 = vpop.f32.mrb[0].mxu0
  %v3027 = vadd.f32 0.0, %v3026
  %v3028 = vpop.f32.mrb[0].mxu0
  %3029 = vmatprep.mubr.f32.mxu0 0.0
  %3030 = vmatmul.mubr.f32.gmra.mrb[0].mxu0 %v2926
  %v3031 = vpop.f32.mrb[0].mxu0
  %v3032 = vadd.f32 0.0, %v3031
  %v3033 = vpop.f32.mrb[0].mxu0
  %3034 = vmatprep.mubr.f32.mxu0 0.0
  %3035 = vmatmul.mubr.f32.gmra.mrb[0].mxu0 %v2927
  %v3036 = vpop.f32.mrb[0].mxu0
  %v3037 = vadd.f32 0.0, %v3036
  %v3038 = vpop.f32.mrb[0].mxu0
  %3039 = vmatprep.mubr.f32.mxu0 0.0
  %3040 = vmatmul.mubr.f32.gmra.mrb[0].mxu0 %v2928
  %v3041 = vpop.f32.mrb[0].mxu0
  %v3042 = vadd.f32 0.0, %v3041
  %v3043 = vpop.f32.mrb[0].mxu0
  %3044 = vmatprep.mubr.f32.mxu0 0.0
  %3045 = vmatmul.mubr.f32.gmra.mrb[0].mxu0 %v2929
  %v3046 = vpop.f32.mrb[0].mxu0
  %v3047 = vadd.f32 0.0, %v3046
  %v3048 = vpop.f32.mrb[0].mxu0
  %3049 = vmatprep.mubr.f32.mxu0 0.0
  %3050 = vmatmul.mubr.f32.gmra.mrb[0].mxu0 %v2930
  %v3051 = vpop.f32.mrb[0].mxu0
  %v3052 = vadd.f32 0.0, %v3051
  %v3053 = vpop.f32.mrb[0].mxu0
  %3054 = vmatprep.mubr.f32.mxu0 0.0
  %3055 = vmatmul.mubr.f32.gmra.mrb[0].mxu0 %v2931
  %v3056 = vpop.f32.mrb[0].mxu0
  %v3057 = vadd.f32 0.0, %v3056
  %v3058 = vpop.f32.mrb[0].mxu0
  %3059 = vmatprep.mubr.f32.mxu0 0.0
  %3060 = vmatmul.mubr.f32.gmra.mrb[0].mxu0 %v2932
  %v3061 = vpop.f32.mrb[0].mxu0
  %v3062 = vadd.f32 0.0, %v3061
  %v3063 = vpop.f32.mrb[0].mxu0
  %3064 = vmatprep.mubr.f32.mxu0 0.0
  %3065 = vmatmul.mubr.f32.gmra.mrb[0].mxu0 %v2933
  %v3066 = vpop.f32.mrb[0].mxu0
  %v3067 = vadd.f32 0.0, %v3066
  %v3068 = vpop.f32.mrb[0].mxu0
  %3069 = vmatprep.mubr.f32.mxu0 0.0
  %3070 = vmatmul.mubr.f32.gmra.mrb[0].mxu0 %v2934
  %v3071 = vpop.f32.mrb[0].mxu0
  %v3072 = vadd.f32 0.0, %v3071
  %v3073 = vpop.f32.mrb[0].mxu0
  %3074 = vmatprep.mubr.f32.mxu0 0.0
  %3075 = vmatmul.mubr.f32.gmra.mrb[0].mxu0 %v2935
  %v3076 = vpop.f32.mrb[0].mxu0
  %v3077 = vadd.f32 0.0, %v3076
  %v3078 = vpop.f32.mrb[0].mxu0
  %3079 = vmatprep.mubr.f32.mxu0 0.0
  %3080 = vmatmul.mubr.f32.gmra.mrb[0].mxu0 %v2936
  %v3081 = vpop.f32.mrb[0].mxu0
  %v3082 = vadd.f32 0.0, %v3081
  %v3083 = vpop.f32.mrb[0].mxu0
  %3084 = vmatprep.mubr.f32.mxu0 0.0
  %3085 = vmatmul.mubr.f32.gmra.mrb[0].mxu0 %v2937
  %v3086 = vpop.f32.mrb[0].mxu0
  %v3087 = vadd.f32 0.0, %v3086
  %v3088 = vpop.f32.mrb[0].mxu0
  %3089 = vmatprep.mubr.f32.mxu0 0.0
  %3090 = vmatmul.mubr.f32.gmra.mrb[0].mxu0 %v2938
  %v3091 = vpop.f32.mrb[0].mxu0
  %v3092 = vadd.f32 0.0, %v3091
  %v3093 = vpop.f32.mrb[0].mxu0
  %3094 = vmatprep.mubr.f32.mxu0 0.0
  %3095 = vmatmul.mubr.f32.gmra.mrb[0].mxu0 %v2939
  %v3096 = vpop.f32.mrb[0].mxu0
  %v3097 = vadd.f32 0.0, %v3096
  %v3098 = vpop.f32.mrb[0].mxu0
  %3099 = vmatprep.mubr.f32.mxu0 0.0
  %3100 = vmatmul.mubr.f32.gmra.mrb[0].mxu0 %v2940
  %v3101 = vpop.f32.mrb[0].mxu0
  %v3102 = vadd.f32 0.0, %v3101
  %v3103 = vpop.f32.mrb[0].mxu0
  %3104 = vmatprep.mubr.f32.mxu0 0.0
  %3105 = vmatmul.mubr.f32.gmra.mrb[0].mxu0 %v2941
  %v3106 = vpop.f32.mrb[0].mxu0
  %v3107 = vadd.f32 0.0, %v3106
  %v3108 = vpop.f32.mrb[0].mxu0
  %3109 = vmatprep.mubr.f32.mxu0 0.0
  %3110 = vmatmul.mubr.f32.gmra.mrb[0].mxu0 %v2942
  %v3111 = vpop.f32.mrb[0].mxu0
  %v3112 = vadd.f32 0.0, %v3111
  %v3113 = vpop.f32.mrb[0].mxu0
  %3114 = vmatprep.mubr.f32.mxu0 0.0
  %3115 = vmatmul.mubr.f32.gmra.mrb[0].mxu0 %v2943
  %v3116 = vpop.f32.mrb[0].mxu0
  %v3117 = vadd.f32 0.0, %v3116
  %v3118 = vpop.f32.mrb[0].mxu0
  %3119 = vdwg.mxu0
  %v3120 = vadd.f32 %v2906, %v3027
  %v3121 = vadd.f32 %v2907, %v3032
  %v3122 = vadd.f32 %v2908, %v3037
  %v3123 = vadd.f32 %v2909, %v3042
  %v3124 = vadd.f32 %v2910, %v3047
  %v3125 = vadd.f32 %v2911, %v3052
  %v3126 = vadd.f32 %v2912, %v3057
  %v3127 = vadd.f32 %v2913, %v3062
  %v3128 = vadd.f32 %v2914, %v3067
  %v3129 = vadd.f32 %v2915, %v3072
  %v3130 = vadd.f32 %v2916, %v3077
  %v3131 = vadd.f32 %v2917, %v3082
  %v3132 = vadd.f32 %v2918, %v3087
  %v3133 = vadd.f32 %v2919, %v3092
  %v3134 = vadd.f32 %v2920, %v3097
  %v3135 = vadd.f32 %v2921, %v3102
  %v3136 = vadd.f32 %v2922, %v3107
  %v3137 = vadd.f32 %v2923, %v3112
  %v3138 = vadd.f32 %v2924, %v3117
  %v3139 = vld [vmem:[#allocation2 + $0xb] sm:$0xff]
  %v3140 = vld [vmem:[#allocation2 + $0x13] sm:$0xff]
  %v3141 = vld [vmem:[#allocation2 + $0x1b] sm:$0xff]
  %v3142 = vld [vmem:[#allocation2 + $0x23] sm:$0xff]
  %v3143 = vld [vmem:[#allocation2 + $0x2b] sm:$0xff]
  %v3144 = vld [vmem:[#allocation2 + $0x33] sm:$0xff]
  %v3145 = vld [vmem:[#allocation2 + $0x3b] sm:$0xff]
  %v3146 = vld [vmem:[#allocation2 + $0x43] sm:$0xff]
  %v3147 = vld [vmem:[#allocation2 + $0x4b] sm:$0xff]
  %v3148 = vld [vmem:[#allocation2 + $0x53] sm:$0xff]
  %v3149 = vld [vmem:[#allocation2 + $0x5b] sm:$0xff]
  %v3150 = vld [vmem:[#allocation2 + $0x63] sm:$0xff]
  %v3151 = vld [vmem:[#allocation2 + $0x6b] sm:$0xff]
  %v3152 = vld [vmem:[#allocation2 + $0x73] sm:$0xff]
  %v3153 = vld [vmem:[#allocation2 + $0x7b] sm:$0xff]
  %v3154 = vld [vmem:[#allocation2 + $0x83] sm:$0xff]
  %v3155 = vld [vmem:[#allocation2 + $0x8b] sm:$0xff]
  %v3156 = vld [vmem:[#allocation2 + $0x93] sm:$0xff]
  %v3157 = vld [vmem:[#allocation2 + $0x9b] sm:$0xff]
  %v3158 = vld [vmem:[%s3 + $0x280] sm:$0xff]
  %v3159 = vld [vmem:[%s3 + $0x288] sm:$0xff]
  %v3160 = vld [vmem:[%s3 + $0x290] sm:$0xff]
  %v3161 = vld [vmem:[%s3 + $0x298] sm:$0xff]
  %v3162 = vld [vmem:[%s3 + $0x2a0] sm:$0xff]
  %v3163 = vld [vmem:[%s3 + $0x2a8] sm:$0xff]
  %v3164 = vld [vmem:[%s3 + $0x2b0] sm:$0xff]
  %v3165 = vld [vmem:[%s3 + $0x2b8] sm:$0xff]
  %v3166 = vld [vmem:[%s3 + $0x2c0] sm:$0xff]
  %v3167 = vld [vmem:[%s3 + $0x2c8] sm:$0xff]
  %v3168 = vld [vmem:[%s3 + $0x2d0] sm:$0xff]
  %v3169 = vld [vmem:[%s3 + $0x2d8] sm:$0xff]
  %v3170 = vld [vmem:[%s3 + $0x2e0] sm:$0xff]
  %v3171 = vld [vmem:[%s3 + $0x2e8] sm:$0xff]
  %v3172 = vld [vmem:[%s3 + $0x2f0] sm:$0xff]
  %v3173 = vld [vmem:[%s3 + $0x2f8] sm:$0xff]
  %3174 = vmatprep.subr.mxu0 0.0
  %3175 = vmatpush1.msra.mxu0 %v3158
  %3176 = vmatprep.subr.mxu0 0.0
  %3177 = vmatpush1.msra.mxu0 %v3159
  %3178 = vmatprep.subr.mxu0 0.0
  %3179 = vmatpush1.msra.mxu0 %v3160
  %3180 = vmatprep.subr.mxu0 0.0
  %3181 = vmatpush1.msra.mxu0 %v3161
  %3182 = vmatprep.subr.mxu0 0.0
  %3183 = vmatpush1.msra.mxu0 %v3162
  %3184 = vmatprep.subr.mxu0 0.0
  %3185 = vmatpush1.msra.mxu0 %v3163
  %3186 = vmatprep.subr.mxu0 0.0
  %3187 = vmatpush1.msra.mxu0 %v3164
  %3188 = vmatprep.subr.mxu0 0.0
  %3189 = vmatpush1.msra.mxu0 %v3165
  %3190 = vmatprep.subr.mxu0 0.0
  %3191 = vmatpush1.msra.mxu0 %v3166
  %3192 = vmatprep.subr.mxu0 0.0
  %3193 = vmatpush1.msra.mxu0 %v3167
  %3194 = vmatprep.subr.mxu0 0.0
  %3195 = vmatpush1.msra.mxu0 %v3168
  %3196 = vmatprep.subr.mxu0 0.0
  %3197 = vmatpush1.msra.mxu0 %v3169
  %3198 = vmatprep.subr.mxu0 0.0
  %3199 = vmatpush1.msra.mxu0 %v3170
  %3200 = vmatprep.subr.mxu0 0.0
  %3201 = vmatpush1.msra.mxu0 %v3171
  %3202 = vmatprep.subr.mxu0 0.0
  %3203 = vmatpush1.msra.mxu0 %v3172
  %3204 = vmatprep.subr.mxu0 0.0
  %3205 = vmatpush1.msra.mxu0 %v3173
  %3206 = vmatprep.subr.mxu0 0.0
  %3207 = vmatpush1.msra.mxu0 0.0
  %3208 = vmatprep.subr.mxu0 0.0
  %3209 = vmatpush1.msra.mxu0 0.0
  %3210 = vmatprep.subr.mxu0 0.0
  %3211 = vmatpush1.msra.mxu0 0.0
  %3212 = vmatprep.subr.mxu0 0.0
  %3213 = vmatpush1.msra.mxu0 0.0
  %3214 = vmatprep.subr.mxu0 0.0
  %3215 = vmatpush1.msra.mxu0 0.0
  %3216 = vmatprep.subr.mxu0 0.0
  %3217 = vmatpush1.msra.mxu0 0.0
  %3218 = vmatprep.subr.mxu0 0.0
  %3219 = vmatpush1.msra.mxu0 0.0
  %3220 = vmatprep.subr.mxu0 0.0
  %3221 = vmatpush1.msra.mxu0 0.0
  %3222 = vmatprep.subr.mxu0 0.0
  %3223 = vmatpush1.msra.mxu0 0.0
  %3224 = vmatprep.subr.mxu0 0.0
  %3225 = vmatpush1.msra.mxu0 0.0
  %3226 = vmatprep.subr.mxu0 0.0
  %3227 = vmatpush1.msra.mxu0 0.0
  %3228 = vmatprep.subr.mxu0 0.0
  %3229 = vmatpush1.msra.mxu0 0.0
  %3230 = vmatprep.subr.mxu0 0.0
  %3231 = vmatpush1.msra.mxu0 0.0
  %3232 = vmatprep.subr.mxu0 0.0
  %3233 = vmatpush1.msra.mxu0 0.0
  %3234 = vmatprep.subr.mxu0 0.0
  %3235 = vmatpush1.msra.mxu0 0.0
  %3236 = vmatprep.subr.mxu0 0.0
  %3237 = vmatpush1.msra.mxu0 0.0
  %3238 = vmatprep.mubr.f32.mxu0 0.0
  %3239 = vmatmul.mubr.f32.gmra.mrb[0].mxu0 %v3139
  %v3240 = vpop.f32.mrb[0].mxu0
  %v3241 = vadd.f32 0.0, %v3240
  %v3242 = vpop.f32.mrb[0].mxu0
  %3243 = vmatprep.mubr.f32.mxu0 0.0
  %3244 = vmatmul.mubr.f32.gmra.mrb[0].mxu0 %v3140
  %v3245 = vpop.f32.mrb[0].mxu0
  %v3246 = vadd.f32 0.0, %v3245
  %v3247 = vpop.f32.mrb[0].mxu0
  %3248 = vmatprep.mubr.f32.mxu0 0.0
  %3249 = vmatmul.mubr.f32.gmra.mrb[0].mxu0 %v3141
  %v3250 = vpop.f32.mrb[0].mxu0
  %v3251 = vadd.f32 0.0, %v3250
  %v3252 = vpop.f32.mrb[0].mxu0
  %3253 = vmatprep.mubr.f32.mxu0 0.0
  %3254 = vmatmul.mubr.f32.gmra.mrb[0].mxu0 %v3142
  %v3255 = vpop.f32.mrb[0].mxu0
  %v3256 = vadd.f32 0.0, %v3255
  %v3257 = vpop.f32.mrb[0].mxu0
  %3258 = vmatprep.mubr.f32.mxu0 0.0
  %3259 = vmatmul.mubr.f32.gmra.mrb[0].mxu0 %v3143
  %v3260 = vpop.f32.mrb[0].mxu0
  %v3261 = vadd.f32 0.0, %v3260
  %v3262 = vpop.f32.mrb[0].mxu0
  %3263 = vmatprep.mubr.f32.mxu0 0.0
  %3264 = vmatmul.mubr.f32.gmra.mrb[0].mxu0 %v3144
  %v3265 = vpop.f32.mrb[0].mxu0
  %v3266 = vadd.f32 0.0, %v3265
  %v3267 = vpop.f32.mrb[0].mxu0
  %3268 = vmatprep.mubr.f32.mxu0 0.0
  %3269 = vmatmul.mubr.f32.gmra.mrb[0].mxu0 %v3145
  %v3270 = vpop.f32.mrb[0].mxu0
  %v3271 = vadd.f32 0.0, %v3270
  %v3272 = vpop.f32.mrb[0].mxu0
  %3273 = vmatprep.mubr.f32.mxu0 0.0
  %3274 = vmatmul.mubr.f32.gmra.mrb[0].mxu0 %v3146
  %v3275 = vpop.f32.mrb[0].mxu0
  %v3276 = vadd.f32 0.0, %v3275
  %v3277 = vpop.f32.mrb[0].mxu0
  %3278 = vmatprep.mubr.f32.mxu0 0.0
  %3279 = vmatmul.mubr.f32.gmra.mrb[0].mxu0 %v3147
  %v3280 = vpop.f32.mrb[0].mxu0
  %v3281 = vadd.f32 0.0, %v3280
  %v3282 = vpop.f32.mrb[0].mxu0
  %3283 = vmatprep.mubr.f32.mxu0 0.0
  %3284 = vmatmul.mubr.f32.gmra.mrb[0].mxu0 %v3148
  %v3285 = vpop.f32.mrb[0].mxu0
  %v3286 = vadd.f32 0.0, %v3285
  %v3287 = vpop.f32.mrb[0].mxu0
  %3288 = vmatprep.mubr.f32.mxu0 0.0
  %3289 = vmatmul.mubr.f32.gmra.mrb[0].mxu0 %v3149
  %v3290 = vpop.f32.mrb[0].mxu0
  %v3291 = vadd.f32 0.0, %v3290
  %v3292 = vpop.f32.mrb[0].mxu0
  %3293 = vmatprep.mubr.f32.mxu0 0.0
  %3294 = vmatmul.mubr.f32.gmra.mrb[0].mxu0 %v3150
  %v3295 = vpop.f32.mrb[0].mxu0
  %v3296 = vadd.f32 0.0, %v3295
  %v3297 = vpop.f32.mrb[0].mxu0
  %3298 = vmatprep.mubr.f32.mxu0 0.0
  %3299 = vmatmul.mubr.f32.gmra.mrb[0].mxu0 %v3151
  %v3300 = vpop.f32.mrb[0].mxu0
  %v3301 = vadd.f32 0.0, %v3300
  %v3302 = vpop.f32.mrb[0].mxu0
  %3303 = vmatprep.mubr.f32.mxu0 0.0
  %3304 = vmatmul.mubr.f32.gmra.mrb[0].mxu0 %v3152
  %v3305 = vpop.f32.mrb[0].mxu0
  %v3306 = vadd.f32 0.0, %v3305
  %v3307 = vpop.f32.mrb[0].mxu0
  %3308 = vmatprep.mubr.f32.mxu0 0.0
  %3309 = vmatmul.mubr.f32.gmra.mrb[0].mxu0 %v3153
  %v3310 = vpop.f32.mrb[0].mxu0
  %v3311 = vadd.f32 0.0, %v3310
  %v3312 = vpop.f32.mrb[0].mxu0
  %3313 = vmatprep.mubr.f32.mxu0 0.0
  %3314 = vmatmul.mubr.f32.gmra.mrb[0].mxu0 %v3154
  %v3315 = vpop.f32.mrb[0].mxu0
  %v3316 = vadd.f32 0.0, %v3315
  %v3317 = vpop.f32.mrb[0].mxu0
  %3318 = vmatprep.mubr.f32.mxu0 0.0
  %3319 = vmatmul.mubr.f32.gmra.mrb[0].mxu0 %v3155
  %v3320 = vpop.f32.mrb[0].mxu0
  %v3321 = vadd.f32 0.0, %v3320
  %v3322 = vpop.f32.mrb[0].mxu0
  %3323 = vmatprep.mubr.f32.mxu0 0.0
  %3324 = vmatmul.mubr.f32.gmra.mrb[0].mxu0 %v3156
  %v3325 = vpop.f32.mrb[0].mxu0
  %v3326 = vadd.f32 0.0, %v3325
  %v3327 = vpop.f32.mrb[0].mxu0
  %3328 = vmatprep.mubr.f32.mxu0 0.0
  %3329 = vmatmul.mubr.f32.gmra.mrb[0].mxu0 %v3157
  %v3330 = vpop.f32.mrb[0].mxu0
  %v3331 = vadd.f32 0.0, %v3330
  %v3332 = vpop.f32.mrb[0].mxu0
  %3333 = vdwg.mxu0
  %v3334 = vadd.f32 %v3120, %v3241
  %v3335 = vadd.f32 %v3121, %v3246
  %v3336 = vadd.f32 %v3122, %v3251
  %v3337 = vadd.f32 %v3123, %v3256
  %v3338 = vadd.f32 %v3124, %v3261
  %v3339 = vadd.f32 %v3125, %v3266
  %v3340 = vadd.f32 %v3126, %v3271
  %v3341 = vadd.f32 %v3127, %v3276
  %v3342 = vadd.f32 %v3128, %v3281
  %v3343 = vadd.f32 %v3129, %v3286
  %v3344 = vadd.f32 %v3130, %v3291
  %v3345 = vadd.f32 %v3131, %v3296
  %v3346 = vadd.f32 %v3132, %v3301
  %v3347 = vadd.f32 %v3133, %v3306
  %v3348 = vadd.f32 %v3134, %v3311
  %v3349 = vadd.f32 %v3135, %v3316
  %v3350 = vadd.f32 %v3136, %v3321
  %v3351 = vadd.f32 %v3137, %v3326
  %v3352 = vadd.f32 %v3138, %v3331
  %v3353 = vld [vmem:[#allocation2 + $0x12] sm:$0xff]
  %v3354 = vld [vmem:[#allocation2 + $0x1a] sm:$0xff]
  %v3355 = vld [vmem:[#allocation2 + $0x22] sm:$0xff]
  %v3356 = vld [vmem:[#allocation2 + $0x2a] sm:$0xff]
  %v3357 = vld [vmem:[#allocation2 + $0x32] sm:$0xff]
  %v3358 = vld [vmem:[#allocation2 + $0x3a] sm:$0xff]
  %v3359 = vld [vmem:[#allocation2 + $0x42] sm:$0xff]
  %v3360 = vld [vmem:[#allocation2 + $0x4a] sm:$0xff]
  %v3361 = vld [vmem:[#allocation2 + $0x52] sm:$0xff]
  %v3362 = vld [vmem:[#allocation2 + $0x5a] sm:$0xff]
  %v3363 = vld [vmem:[#allocation2 + $0x62] sm:$0xff]
  %v3364 = vld [vmem:[#allocation2 + $0x6a] sm:$0xff]
  %v3365 = vld [vmem:[#allocation2 + $0x72] sm:$0xff]
  %v3366 = vld [vmem:[#allocation2 + $0x7a] sm:$0xff]
  %v3367 = vld [vmem:[#allocation2 + $0x82] sm:$0xff]
  %v3368 = vld [vmem:[#allocation2 + $0x8a] sm:$0xff]
  %v3369 = vld [vmem:[#allocation2 + $0x92] sm:$0xff]
  %v3370 = vld [vmem:[#allocation2 + $0x9a] sm:$0xff]
  %v3371 = vld [vmem:[#allocation2 + $0xa2] sm:$0xff]
  %v3372 = vld [vmem:[%s3 + $0x300] sm:$0xff]
  %v3373 = vld [vmem:[%s3 + $0x308] sm:$0xff]
  %v3374 = vld [vmem:[%s3 + $0x310] sm:$0xff]
  %v3375 = vld [vmem:[%s3 + $0x318] sm:$0xff]
  %v3376 = vld [vmem:[%s3 + $0x320] sm:$0xff]
  %v3377 = vld [vmem:[%s3 + $0x328] sm:$0xff]
  %v3378 = vld [vmem:[%s3 + $0x330] sm:$0xff]
  %v3379 = vld [vmem:[%s3 + $0x338] sm:$0xff]
  %v3380 = vld [vmem:[%s3 + $0x340] sm:$0xff]
  %v3381 = vld [vmem:[%s3 + $0x348] sm:$0xff]
  %v3382 = vld [vmem:[%s3 + $0x350] sm:$0xff]
  %v3383 = vld [vmem:[%s3 + $0x358] sm:$0xff]
  %v3384 = vld [vmem:[%s3 + $0x360] sm:$0xff]
  %v3385 = vld [vmem:[%s3 + $0x368] sm:$0xff]
  %v3386 = vld [vmem:[%s3 + $0x370] sm:$0xff]
  %v3387 = vld [vmem:[%s3 + $0x378] sm:$0xff]
  %3388 = vmatprep.subr.mxu0 0.0
  %3389 = vmatpush1.msra.mxu0 %v3372
  %3390 = vmatprep.subr.mxu0 0.0
  %3391 = vmatpush1.msra.mxu0 %v3373
  %3392 = vmatprep.subr.mxu0 0.0
  %3393 = vmatpush1.msra.mxu0 %v3374
  %3394 = vmatprep.subr.mxu0 0.0
  %3395 = vmatpush1.msra.mxu0 %v3375
  %3396 = vmatprep.subr.mxu0 0.0
  %3397 = vmatpush1.msra.mxu0 %v3376
  %3398 = vmatprep.subr.mxu0 0.0
  %3399 = vmatpush1.msra.mxu0 %v3377
  %3400 = vmatprep.subr.mxu0 0.0
  %3401 = vmatpush1.msra.mxu0 %v3378
  %3402 = vmatprep.subr.mxu0 0.0
  %3403 = vmatpush1.msra.mxu0 %v3379
  %3404 = vmatprep.subr.mxu0 0.0
  %3405 = vmatpush1.msra.mxu0 %v3380
  %3406 = vmatprep.subr.mxu0 0.0
  %3407 = vmatpush1.msra.mxu0 %v3381
  %3408 = vmatprep.subr.mxu0 0.0
  %3409 = vmatpush1.msra.mxu0 %v3382
  %3410 = vmatprep.subr.mxu0 0.0
  %3411 = vmatpush1.msra.mxu0 %v3383
  %3412 = vmatprep.subr.mxu0 0.0
  %3413 = vmatpush1.msra.mxu0 %v3384
  %3414 = vmatprep.subr.mxu0 0.0
  %3415 = vmatpush1.msra.mxu0 %v3385
  %3416 = vmatprep.subr.mxu0 0.0
  %3417 = vmatpush1.msra.mxu0 %v3386
  %3418 = vmatprep.subr.mxu0 0.0
  %3419 = vmatpush1.msra.mxu0 %v3387
  %3420 = vmatprep.subr.mxu0 0.0
  %3421 = vmatpush1.msra.mxu0 0.0
  %3422 = vmatprep.subr.mxu0 0.0
  %3423 = vmatpush1.msra.mxu0 0.0
  %3424 = vmatprep.subr.mxu0 0.0
  %3425 = vmatpush1.msra.mxu0 0.0
  %3426 = vmatprep.subr.mxu0 0.0
  %3427 = vmatpush1.msra.mxu0 0.0
  %3428 = vmatprep.subr.mxu0 0.0
  %3429 = vmatpush1.msra.mxu0 0.0
  %3430 = vmatprep.subr.mxu0 0.0
  %3431 = vmatpush1.msra.mxu0 0.0
  %3432 = vmatprep.subr.mxu0 0.0
  %3433 = vmatpush1.msra.mxu0 0.0
  %3434 = vmatprep.subr.mxu0 0.0
  %3435 = vmatpush1.msra.mxu0 0.0
  %3436 = vmatprep.subr.mxu0 0.0
  %3437 = vmatpush1.msra.mxu0 0.0
  %3438 = vmatprep.subr.mxu0 0.0
  %3439 = vmatpush1.msra.mxu0 0.0
  %3440 = vmatprep.subr.mxu0 0.0
  %3441 = vmatpush1.msra.mxu0 0.0
  %3442 = vmatprep.subr.mxu0 0.0
  %3443 = vmatpush1.msra.mxu0 0.0
  %3444 = vmatprep.subr.mxu0 0.0
  %3445 = vmatpush1.msra.mxu0 0.0
  %3446 = vmatprep.subr.mxu0 0.0
  %3447 = vmatpush1.msra.mxu0 0.0
  %3448 = vmatprep.subr.mxu0 0.0
  %3449 = vmatpush1.msra.mxu0 0.0
  %3450 = vmatprep.subr.mxu0 0.0
  %3451 = vmatpush1.msra.mxu0 0.0
  %3452 = vmatprep.mubr.f32.mxu0 0.0
  %3453 = vmatmul.mubr.f32.gmra.mrb[0].mxu0 %v3353
  %v3454 = vpop.f32.mrb[0].mxu0
  %v3455 = vadd.f32 0.0, %v3454
  %v3456 = vpop.f32.mrb[0].mxu0
  %3457 = vmatprep.mubr.f32.mxu0 0.0
  %3458 = vmatmul.mubr.f32.gmra.mrb[0].mxu0 %v3354
  %v3459 = vpop.f32.mrb[0].mxu0
  %v3460 = vadd.f32 0.0, %v3459
  %v3461 = vpop.f32.mrb[0].mxu0
  %3462 = vmatprep.mubr.f32.mxu0 0.0
  %3463 = vmatmul.mubr.f32.gmra.mrb[0].mxu0 %v3355
  %v3464 = vpop.f32.mrb[0].mxu0
  %v3465 = vadd.f32 0.0, %v3464
  %v3466 = vpop.f32.mrb[0].mxu0
  %3467 = vmatprep.mubr.f32.mxu0 0.0
  %3468 = vmatmul.mubr.f32.gmra.mrb[0].mxu0 %v3356
  %v3469 = vpop.f32.mrb[0].mxu0
  %v3470 = vadd.f32 0.0, %v3469
  %v3471 = vpop.f32.mrb[0].mxu0
  %3472 = vmatprep.mubr.f32.mxu0 0.0
  %3473 = vmatmul.mubr.f32.gmra.mrb[0].mxu0 %v3357
  %v3474 = vpop.f32.mrb[0].mxu0
  %v3475 = vadd.f32 0.0, %v3474
  %v3476 = vpop.f32.mrb[0].mxu0
  %3477 = vmatprep.mubr.f32.mxu0 0.0
  %3478 = vmatmul.mubr.f32.gmra.mrb[0].mxu0 %v3358
  %v3479 = vpop.f32.mrb[0].mxu0
  %v3480 = vadd.f32 0.0, %v3479
  %v3481 = vpop.f32.mrb[0].mxu0
  %3482 = vmatprep.mubr.f32.mxu0 0.0
  %3483 = vmatmul.mubr.f32.gmra.mrb[0].mxu0 %v3359
  %v3484 = vpop.f32.mrb[0].mxu0
  %v3485 = vadd.f32 0.0, %v3484
  %v3486 = vpop.f32.mrb[0].mxu0
  %3487 = vmatprep.mubr.f32.mxu0 0.0
  %3488 = vmatmul.mubr.f32.gmra.mrb[0].mxu0 %v3360
  %v3489 = vpop.f32.mrb[0].mxu0
  %v3490 = vadd.f32 0.0, %v3489
  %v3491 = vpop.f32.mrb[0].mxu0
  %3492 = vmatprep.mubr.f32.mxu0 0.0
  %3493 = vmatmul.mubr.f32.gmra.mrb[0].mxu0 %v3361
  %v3494 = vpop.f32.mrb[0].mxu0
  %v3495 = vadd.f32 0.0, %v3494
  %v3496 = vpop.f32.mrb[0].mxu0
  %3497 = vmatprep.mubr.f32.mxu0 0.0
  %3498 = vmatmul.mubr.f32.gmra.mrb[0].mxu0 %v3362
  %v3499 = vpop.f32.mrb[0].mxu0
  %v3500 = vadd.f32 0.0, %v3499
  %v3501 = vpop.f32.mrb[0].mxu0
  %3502 = vmatprep.mubr.f32.mxu0 0.0
  %3503 = vmatmul.mubr.f32.gmra.mrb[0].mxu0 %v3363
  %v3504 = vpop.f32.mrb[0].mxu0
  %v3505 = vadd.f32 0.0, %v3504
  %v3506 = vpop.f32.mrb[0].mxu0
  %3507 = vmatprep.mubr.f32.mxu0 0.0
  %3508 = vmatmul.mubr.f32.gmra.mrb[0].mxu0 %v3364
  %v3509 = vpop.f32.mrb[0].mxu0
  %v3510 = vadd.f32 0.0, %v3509
  %v3511 = vpop.f32.mrb[0].mxu0
  %3512 = vmatprep.mubr.f32.mxu0 0.0
  %3513 = vmatmul.mubr.f32.gmra.mrb[0].mxu0 %v3365
  %v3514 = vpop.f32.mrb[0].mxu0
  %v3515 = vadd.f32 0.0, %v3514
  %v3516 = vpop.f32.mrb[0].mxu0
  %3517 = vmatprep.mubr.f32.mxu0 0.0
  %3518 = vmatmul.mubr.f32.gmra.mrb[0].mxu0 %v3366
  %v3519 = vpop.f32.mrb[0].mxu0
  %v3520 = vadd.f32 0.0, %v3519
  %v3521 = vpop.f32.mrb[0].mxu0
  %3522 = vmatprep.mubr.f32.mxu0 0.0
  %3523 = vmatmul.mubr.f32.gmra.mrb[0].mxu0 %v3367
  %v3524 = vpop.f32.mrb[0].mxu0
  %v3525 = vadd.f32 0.0, %v3524
  %v3526 = vpop.f32.mrb[0].mxu0
  %3527 = vmatprep.mubr.f32.mxu0 0.0
  %3528 = vmatmul.mubr.f32.gmra.mrb[0].mxu0 %v3368
  %v3529 = vpop.f32.mrb[0].mxu0
  %v3530 = vadd.f32 0.0, %v3529
  %v3531 = vpop.f32.mrb[0].mxu0
  %3532 = vmatprep.mubr.f32.mxu0 0.0
  %3533 = vmatmul.mubr.f32.gmra.mrb[0].mxu0 %v3369
  %v3534 = vpop.f32.mrb[0].mxu0
  %v3535 = vadd.f32 0.0, %v3534
  %v3536 = vpop.f32.mrb[0].mxu0
  %3537 = vmatprep.mubr.f32.mxu0 0.0
  %3538 = vmatmul.mubr.f32.gmra.mrb[0].mxu0 %v3370
  %v3539 = vpop.f32.mrb[0].mxu0
  %v3540 = vadd.f32 0.0, %v3539
  %v3541 = vpop.f32.mrb[0].mxu0
  %3542 = vmatprep.mubr.f32.mxu0 0.0
  %3543 = vmatmul.mubr.f32.gmra.mrb[0].mxu0 %v3371
  %v3544 = vpop.f32.mrb[0].mxu0
  %v3545 = vadd.f32 0.0, %v3544
  %v3546 = vpop.f32.mrb[0].mxu0
  %3547 = vdwg.mxu0
  %v3548 = vadd.f32 %v3334, %v3455
  %v3549 = vadd.f32 %v3335, %v3460
  %v3550 = vadd.f32 %v3336, %v3465
  %v3551 = vadd.f32 %v3337, %v3470
  %v3552 = vadd.f32 %v3338, %v3475
  %v3553 = vadd.f32 %v3339, %v3480
  %v3554 = vadd.f32 %v3340, %v3485
  %v3555 = vadd.f32 %v3341, %v3490
  %v3556 = vadd.f32 %v3342, %v3495
  %v3557 = vadd.f32 %v3343, %v3500
  %v3558 = vadd.f32 %v3344, %v3505
  %v3559 = vadd.f32 %v3345, %v3510
  %v3560 = vadd.f32 %v3346, %v3515
  %v3561 = vadd.f32 %v3347, %v3520
  %v3562 = vadd.f32 %v3348, %v3525
  %v3563 = vadd.f32 %v3349, %v3530
  %v3564 = vadd.f32 %v3350, %v3535
  %v3565 = vadd.f32 %v3351, %v3540
  %v3566 = vadd.f32 %v3352, %v3545
  %v3567 = vld [vmem:[#allocation2 + $0x13] sm:$0xff]
  %v3568 = vld [vmem:[#allocation2 + $0x1b] sm:$0xff]
  %v3569 = vld [vmem:[#allocation2 + $0x23] sm:$0xff]
  %v3570 = vld [vmem:[#allocation2 + $0x2b] sm:$0xff]
  %v3571 = vld [vmem:[#allocation2 + $0x33] sm:$0xff]
  %v3572 = vld [vmem:[#allocation2 + $0x3b] sm:$0xff]
  %v3573 = vld [vmem:[#allocation2 + $0x43] sm:$0xff]
  %v3574 = vld [vmem:[#allocation2 + $0x4b] sm:$0xff]
  %v3575 = vld [vmem:[#allocation2 + $0x53] sm:$0xff]
  %v3576 = vld [vmem:[#allocation2 + $0x5b] sm:$0xff]
  %v3577 = vld [vmem:[#allocation2 + $0x63] sm:$0xff]
  %v3578 = vld [vmem:[#allocation2 + $0x6b] sm:$0xff]
  %v3579 = vld [vmem:[#allocation2 + $0x73] sm:$0xff]
  %v3580 = vld [vmem:[#allocation2 + $0x7b] sm:$0xff]
  %v3581 = vld [vmem:[#allocation2 + $0x83] sm:$0xff]
  %v3582 = vld [vmem:[#allocation2 + $0x8b] sm:$0xff]
  %v3583 = vld [vmem:[#allocation2 + $0x93] sm:$0xff]
  %v3584 = vld [vmem:[#allocation2 + $0x9b] sm:$0xff]
  %v3585 = vld [vmem:[#allocation2 + $0xa3] sm:$0xff]
  %v3586 = vld [vmem:[%s3 + $0x380] sm:$0xff]
  %v3587 = vld [vmem:[%s3 + $0x388] sm:$0xff]
  %v3588 = vld [vmem:[%s3 + $0x390] sm:$0xff]
  %v3589 = vld [vmem:[%s3 + $0x398] sm:$0xff]
  %v3590 = vld [vmem:[%s3 + $0x3a0] sm:$0xff]
  %v3591 = vld [vmem:[%s3 + $0x3a8] sm:$0xff]
  %v3592 = vld [vmem:[%s3 + $0x3b0] sm:$0xff]
  %v3593 = vld [vmem:[%s3 + $0x3b8] sm:$0xff]
  %v3594 = vld [vmem:[%s3 + $0x3c0] sm:$0xff]
  %v3595 = vld [vmem:[%s3 + $0x3c8] sm:$0xff]
  %v3596 = vld [vmem:[%s3 + $0x3d0] sm:$0xff]
  %v3597 = vld [vmem:[%s3 + $0x3d8] sm:$0xff]
  %v3598 = vld [vmem:[%s3 + $0x3e0] sm:$0xff]
  %v3599 = vld [vmem:[%s3 + $0x3e8] sm:$0xff]
  %v3600 = vld [vmem:[%s3 + $0x3f0] sm:$0xff]
  %v3601 = vld [vmem:[%s3 + $0x3f8] sm:$0xff]
  %3602 = vmatprep.subr.mxu0 0.0
  %3603 = vmatpush1.msra.mxu0 %v3586
  %3604 = vmatprep.subr.mxu0 0.0
  %3605 = vmatpush1.msra.mxu0 %v3587
  %3606 = vmatprep.subr.mxu0 0.0
  %3607 = vmatpush1.msra.mxu0 %v3588
  %3608 = vmatprep.subr.mxu0 0.0
  %3609 = vmatpush1.msra.mxu0 %v3589
  %3610 = vmatprep.subr.mxu0 0.0
  %3611 = vmatpush1.msra.mxu0 %v3590
  %3612 = vmatprep.subr.mxu0 0.0
  %3613 = vmatpush1.msra.mxu0 %v3591
  %3614 = vmatprep.subr.mxu0 0.0
  %3615 = vmatpush1.msra.mxu0 %v3592
  %3616 = vmatprep.subr.mxu0 0.0
  %3617 = vmatpush1.msra.mxu0 %v3593
  %3618 = vmatprep.subr.mxu0 0.0
  %3619 = vmatpush1.msra.mxu0 %v3594
  %3620 = vmatprep.subr.mxu0 0.0
  %3621 = vmatpush1.msra.mxu0 %v3595
  %3622 = vmatprep.subr.mxu0 0.0
  %3623 = vmatpush1.msra.mxu0 %v3596
  %3624 = vmatprep.subr.mxu0 0.0
  %3625 = vmatpush1.msra.mxu0 %v3597
  %3626 = vmatprep.subr.mxu0 0.0
  %3627 = vmatpush1.msra.mxu0 %v3598
  %3628 = vmatprep.subr.mxu0 0.0
  %3629 = vmatpush1.msra.mxu0 %v3599
  %3630 = vmatprep.subr.mxu0 0.0
  %3631 = vmatpush1.msra.mxu0 %v3600
  %3632 = vmatprep.subr.mxu0 0.0
  %3633 = vmatpush1.msra.mxu0 %v3601
  %3634 = vmatprep.subr.mxu0 0.0
  %3635 = vmatpush1.msra.mxu0 0.0
  %3636 = vmatprep.subr.mxu0 0.0
  %3637 = vmatpush1.msra.mxu0 0.0
  %3638 = vmatprep.subr.mxu0 0.0
  %3639 = vmatpush1.msra.mxu0 0.0
  %3640 = vmatprep.subr.mxu0 0.0
  %3641 = vmatpush1.msra.mxu0 0.0
  %3642 = vmatprep.subr.mxu0 0.0
  %3643 = vmatpush1.msra.mxu0 0.0
  %3644 = vmatprep.subr.mxu0 0.0
  %3645 = vmatpush1.msra.mxu0 0.0
  %3646 = vmatprep.subr.mxu0 0.0
  %3647 = vmatpush1.msra.mxu0 0.0
  %3648 = vmatprep.subr.mxu0 0.0
  %3649 = vmatpush1.msra.mxu0 0.0
  %3650 = vmatprep.subr.mxu0 0.0
  %3651 = vmatpush1.msra.mxu0 0.0
  %3652 = vmatprep.subr.mxu0 0.0
  %3653 = vmatpush1.msra.mxu0 0.0
  %3654 = vmatprep.subr.mxu0 0.0
  %3655 = vmatpush1.msra.mxu0 0.0
  %3656 = vmatprep.subr.mxu0 0.0
  %3657 = vmatpush1.msra.mxu0 0.0
  %3658 = vmatprep.subr.mxu0 0.0
  %3659 = vmatpush1.msra.mxu0 0.0
  %3660 = vmatprep.subr.mxu0 0.0
  %3661 = vmatpush1.msra.mxu0 0.0
  %3662 = vmatprep.subr.mxu0 0.0
  %3663 = vmatpush1.msra.mxu0 0.0
  %3664 = vmatprep.subr.mxu0 0.0
  %3665 = vmatpush1.msra.mxu0 0.0
  %3666 = vmatprep.mubr.f32.mxu0 0.0
  %3667 = vmatmul.mubr.f32.gmra.mrb[0].mxu0 %v3567
  %v3668 = vpop.f32.mrb[0].mxu0
  %v3669 = vadd.f32 0.0, %v3668
  %v3670 = vpop.f32.mrb[0].mxu0
  %3671 = vmatprep.mubr.f32.mxu0 0.0
  %3672 = vmatmul.mubr.f32.gmra.mrb[0].mxu0 %v3568
  %v3673 = vpop.f32.mrb[0].mxu0
  %v3674 = vadd.f32 0.0, %v3673
  %v3675 = vpop.f32.mrb[0].mxu0
  %3676 = vmatprep.mubr.f32.mxu0 0.0
  %3677 = vmatmul.mubr.f32.gmra.mrb[0].mxu0 %v3569
  %v3678 = vpop.f32.mrb[0].mxu0
  %v3679 = vadd.f32 0.0, %v3678
  %v3680 = vpop.f32.mrb[0].mxu0
  %3681 = vmatprep.mubr.f32.mxu0 0.0
  %3682 = vmatmul.mubr.f32.gmra.mrb[0].mxu0 %v3570
  %v3683 = vpop.f32.mrb[0].mxu0
  %v3684 = vadd.f32 0.0, %v3683
  %v3685 = vpop.f32.mrb[0].mxu0
  %3686 = vmatprep.mubr.f32.mxu0 0.0
  %3687 = vmatmul.mubr.f32.gmra.mrb[0].mxu0 %v3571
  %v3688 = vpop.f32.mrb[0].mxu0
  %v3689 = vadd.f32 0.0, %v3688
  %v3690 = vpop.f32.mrb[0].mxu0
  %3691 = vmatprep.mubr.f32.mxu0 0.0
  %3692 = vmatmul.mubr.f32.gmra.mrb[0].mxu0 %v3572
  %v3693 = vpop.f32.mrb[0].mxu0
  %v3694 = vadd.f32 0.0, %v3693
  %v3695 = vpop.f32.mrb[0].mxu0
  %3696 = vmatprep.mubr.f32.mxu0 0.0
  %3697 = vmatmul.mubr.f32.gmra.mrb[0].mxu0 %v3573
  %v3698 = vpop.f32.mrb[0].mxu0
  %v3699 = vadd.f32 0.0, %v3698
  %v3700 = vpop.f32.mrb[0].mxu0
  %3701 = vmatprep.mubr.f32.mxu0 0.0
  %3702 = vmatmul.mubr.f32.gmra.mrb[0].mxu0 %v3574
  %v3703 = vpop.f32.mrb[0].mxu0
  %v3704 = vadd.f32 0.0, %v3703
  %v3705 = vpop.f32.mrb[0].mxu0
  %3706 = vmatprep.mubr.f32.mxu0 0.0
  %3707 = vmatmul.mubr.f32.gmra.mrb[0].mxu0 %v3575
  %v3708 = vpop.f32.mrb[0].mxu0
  %v3709 = vadd.f32 0.0, %v3708
  %v3710 = vpop.f32.mrb[0].mxu0
  %3711 = vmatprep.mubr.f32.mxu0 0.0
  %3712 = vmatmul.mubr.f32.gmra.mrb[0].mxu0 %v3576
  %v3713 = vpop.f32.mrb[0].mxu0
  %v3714 = vadd.f32 0.0, %v3713
  %v3715 = vpop.f32.mrb[0].mxu0
  %3716 = vmatprep.mubr.f32.mxu0 0.0
  %3717 = vmatmul.mubr.f32.gmra.mrb[0].mxu0 %v3577
  %v3718 = vpop.f32.mrb[0].mxu0
  %v3719 = vadd.f32 0.0, %v3718
  %v3720 = vpop.f32.mrb[0].mxu0
  %3721 = vmatprep.mubr.f32.mxu0 0.0
  %3722 = vmatmul.mubr.f32.gmra.mrb[0].mxu0 %v3578
  %v3723 = vpop.f32.mrb[0].mxu0
  %v3724 = vadd.f32 0.0, %v3723
  %v3725 = vpop.f32.mrb[0].mxu0
  %3726 = vmatprep.mubr.f32.mxu0 0.0
  %3727 = vmatmul.mubr.f32.gmra.mrb[0].mxu0 %v3579
  %v3728 = vpop.f32.mrb[0].mxu0
  %v3729 = vadd.f32 0.0, %v3728
  %v3730 = vpop.f32.mrb[0].mxu0
  %3731 = vmatprep.mubr.f32.mxu0 0.0
  %3732 = vmatmul.mubr.f32.gmra.mrb[0].mxu0 %v3580
  %v3733 = vpop.f32.mrb[0].mxu0
  %v3734 = vadd.f32 0.0, %v3733
  %v3735 = vpop.f32.mrb[0].mxu0
  %3736 = vmatprep.mubr.f32.mxu0 0.0
  %3737 = vmatmul.mubr.f32.gmra.mrb[0].mxu0 %v3581
  %v3738 = vpop.f32.mrb[0].mxu0
  %v3739 = vadd.f32 0.0, %v3738
  %v3740 = vpop.f32.mrb[0].mxu0
  %3741 = vmatprep.mubr.f32.mxu0 0.0
  %3742 = vmatmul.mubr.f32.gmra.mrb[0].mxu0 %v3582
  %v3743 = vpop.f32.mrb[0].mxu0
  %v3744 = vadd.f32 0.0, %v3743
  %v3745 = vpop.f32.mrb[0].mxu0
  %3746 = vmatprep.mubr.f32.mxu0 0.0
  %3747 = vmatmul.mubr.f32.gmra.mrb[0].mxu0 %v3583
  %v3748 = vpop.f32.mrb[0].mxu0
  %v3749 = vadd.f32 0.0, %v3748
  %v3750 = vpop.f32.mrb[0].mxu0
  %3751 = vmatprep.mubr.f32.mxu0 0.0
  %3752 = vmatmul.mubr.f32.gmra.mrb[0].mxu0 %v3584
  %v3753 = vpop.f32.mrb[0].mxu0
  %v3754 = vadd.f32 0.0, %v3753
  %v3755 = vpop.f32.mrb[0].mxu0
  %3756 = vmatprep.mubr.f32.mxu0 0.0
  %3757 = vmatmul.mubr.f32.gmra.mrb[0].mxu0 %v3585
  %v3758 = vpop.f32.mrb[0].mxu0
  %v3759 = vadd.f32 0.0, %v3758
  %v3760 = vpop.f32.mrb[0].mxu0
  %3761 = vdwg.mxu0
  %v3762 = vadd.f32 %v3548, %v3669
  %v3763 = vadd.f32 %v3549, %v3674
  %v3764 = vadd.f32 %v3550, %v3679
  %v3765 = vadd.f32 %v3551, %v3684
  %v3766 = vadd.f32 %v3552, %v3689
  %v3767 = vadd.f32 %v3553, %v3694
  %v3768 = vadd.f32 %v3554, %v3699
  %v3769 = vadd.f32 %v3555, %v3704
  %v3770 = vadd.f32 %v3556, %v3709
  %v3771 = vadd.f32 %v3557, %v3714
  %v3772 = vadd.f32 %v3558, %v3719
  %v3773 = vadd.f32 %v3559, %v3724
  %v3774 = vadd.f32 %v3560, %v3729
  %v3775 = vadd.f32 %v3561, %v3734
  %v3776 = vadd.f32 %v3562, %v3739
  %v3777 = vadd.f32 %v3563, %v3744
  %v3778 = vadd.f32 %v3564, %v3749
  %v3779 = vadd.f32 %v3565, %v3754
  %v3780 = vadd.f32 %v3566, %v3759
  %v3781 = vld [vmem:[#allocation2 + $0x14] sm:$0xff]
  %v3782 = vld [vmem:[#allocation2 + $0x1c] sm:$0xff]
  %v3783 = vld [vmem:[#allocation2 + $0x24] sm:$0xff]
  %v3784 = vld [vmem:[#allocation2 + $0x2c] sm:$0xff]
  %v3785 = vld [vmem:[#allocation2 + $0x34] sm:$0xff]
  %v3786 = vld [vmem:[#allocation2 + $0x3c] sm:$0xff]
  %v3787 = vld [vmem:[#allocation2 + $0x44] sm:$0xff]
  %v3788 = vld [vmem:[#allocation2 + $0x4c] sm:$0xff]
  %v3789 = vld [vmem:[#allocation2 + $0x54] sm:$0xff]
  %v3790 = vld [vmem:[#allocation2 + $0x5c] sm:$0xff]
  %v3791 = vld [vmem:[#allocation2 + $0x64] sm:$0xff]
  %v3792 = vld [vmem:[#allocation2 + $0x6c] sm:$0xff]
  %v3793 = vld [vmem:[#allocation2 + $0x74] sm:$0xff]
  %v3794 = vld [vmem:[#allocation2 + $0x7c] sm:$0xff]
  %v3795 = vld [vmem:[#allocation2 + $0x84] sm:$0xff]
  %v3796 = vld [vmem:[#allocation2 + $0x8c] sm:$0xff]
  %v3797 = vld [vmem:[#allocation2 + $0x94] sm:$0xff]
  %v3798 = vld [vmem:[#allocation2 + $0x9c] sm:$0xff]
  %v3799 = vld [vmem:[#allocation2 + $0xa4] sm:$0xff]
  %v3800 = vld [vmem:[%s3 + $0x400] sm:$0xff]
  %v3801 = vld [vmem:[%s3 + $0x408] sm:$0xff]
  %v3802 = vld [vmem:[%s3 + $0x410] sm:$0xff]
  %v3803 = vld [vmem:[%s3 + $0x418] sm:$0xff]
  %v3804 = vld [vmem:[%s3 + $0x420] sm:$0xff]
  %v3805 = vld [vmem:[%s3 + $0x428] sm:$0xff]
  %v3806 = vld [vmem:[%s3 + $0x430] sm:$0xff]
  %v3807 = vld [vmem:[%s3 + $0x438] sm:$0xff]
  %v3808 = vld [vmem:[%s3 + $0x440] sm:$0xff]
  %v3809 = vld [vmem:[%s3 + $0x448] sm:$0xff]
  %v3810 = vld [vmem:[%s3 + $0x450] sm:$0xff]
  %v3811 = vld [vmem:[%s3 + $0x458] sm:$0xff]
  %v3812 = vld [vmem:[%s3 + $0x460] sm:$0xff]
  %v3813 = vld [vmem:[%s3 + $0x468] sm:$0xff]
  %v3814 = vld [vmem:[%s3 + $0x470] sm:$0xff]
  %v3815 = vld [vmem:[%s3 + $0x478] sm:$0xff]
  %3816 = vmatprep.subr.mxu0 0.0
  %3817 = vmatpush1.msra.mxu0 %v3800
  %3818 = vmatprep.subr.mxu0 0.0
  %3819 = vmatpush1.msra.mxu0 %v3801
  %3820 = vmatprep.subr.mxu0 0.0
  %3821 = vmatpush1.msra.mxu0 %v3802
  %3822 = vmatprep.subr.mxu0 0.0
  %3823 = vmatpush1.msra.mxu0 %v3803
  %3824 = vmatprep.subr.mxu0 0.0
  %3825 = vmatpush1.msra.mxu0 %v3804
  %3826 = vmatprep.subr.mxu0 0.0
  %3827 = vmatpush1.msra.mxu0 %v3805
  %3828 = vmatprep.subr.mxu0 0.0
  %3829 = vmatpush1.msra.mxu0 %v3806
  %3830 = vmatprep.subr.mxu0 0.0
  %3831 = vmatpush1.msra.mxu0 %v3807
  %3832 = vmatprep.subr.mxu0 0.0
  %3833 = vmatpush1.msra.mxu0 %v3808
  %3834 = vmatprep.subr.mxu0 0.0
  %3835 = vmatpush1.msra.mxu0 %v3809
  %3836 = vmatprep.subr.mxu0 0.0
  %3837 = vmatpush1.msra.mxu0 %v3810
  %3838 = vmatprep.subr.mxu0 0.0
  %3839 = vmatpush1.msra.mxu0 %v3811
  %3840 = vmatprep.subr.mxu0 0.0
  %3841 = vmatpush1.msra.mxu0 %v3812
  %3842 = vmatprep.subr.mxu0 0.0
  %3843 = vmatpush1.msra.mxu0 %v3813
  %3844 = vmatprep.subr.mxu0 0.0
  %3845 = vmatpush1.msra.mxu0 %v3814
  %3846 = vmatprep.subr.mxu0 0.0
  %3847 = vmatpush1.msra.mxu0 %v3815
  %3848 = vmatprep.subr.mxu0 0.0
  %3849 = vmatpush1.msra.mxu0 0.0
  %3850 = vmatprep.subr.mxu0 0.0
  %3851 = vmatpush1.msra.mxu0 0.0
  %3852 = vmatprep.subr.mxu0 0.0
  %3853 = vmatpush1.msra.mxu0 0.0
  %3854 = vmatprep.subr.mxu0 0.0
  %3855 = vmatpush1.msra.mxu0 0.0
  %3856 = vmatprep.subr.mxu0 0.0
  %3857 = vmatpush1.msra.mxu0 0.0
  %3858 = vmatprep.subr.mxu0 0.0
  %3859 = vmatpush1.msra.mxu0 0.0
  %3860 = vmatprep.subr.mxu0 0.0
  %3861 = vmatpush1.msra.mxu0 0.0
  %3862 = vmatprep.subr.mxu0 0.0
  %3863 = vmatpush1.msra.mxu0 0.0
  %3864 = vmatprep.subr.mxu0 0.0
  %3865 = vmatpush1.msra.mxu0 0.0
  %3866 = vmatprep.subr.mxu0 0.0
  %3867 = vmatpush1.msra.mxu0 0.0
  %3868 = vmatprep.subr.mxu0 0.0
  %3869 = vmatpush1.msra.mxu0 0.0
  %3870 = vmatprep.subr.mxu0 0.0
  %3871 = vmatpush1.msra.mxu0 0.0
  %3872 = vmatprep.subr.mxu0 0.0
  %3873 = vmatpush1.msra.mxu0 0.0
  %3874 = vmatprep.subr.mxu0 0.0
  %3875 = vmatpush1.msra.mxu0 0.0
  %3876 = vmatprep.subr.mxu0 0.0
  %3877 = vmatpush1.msra.mxu0 0.0
  %3878 = vmatprep.subr.mxu0 0.0
  %3879 = vmatpush1.msra.mxu0 0.0
  %3880 = vmatprep.mubr.f32.mxu0 0.0
  %3881 = vmatmul.mubr.f32.gmra.mrb[0].mxu0 %v3781
  %v3882 = vpop.f32.mrb[0].mxu0
  %v3883 = vadd.f32 0.0, %v3882
  %v3884 = vpop.f32.mrb[0].mxu0
  %3885 = vmatprep.mubr.f32.mxu0 0.0
  %3886 = vmatmul.mubr.f32.gmra.mrb[0].mxu0 %v3782
  %v3887 = vpop.f32.mrb[0].mxu0
  %v3888 = vadd.f32 0.0, %v3887
  %v3889 = vpop.f32.mrb[0].mxu0
  %3890 = vmatprep.mubr.f32.mxu0 0.0
  %3891 = vmatmul.mubr.f32.gmra.mrb[0].mxu0 %v3783
  %v3892 = vpop.f32.mrb[0].mxu0
  %v3893 = vadd.f32 0.0, %v3892
  %v3894 = vpop.f32.mrb[0].mxu0
  %3895 = vmatprep.mubr.f32.mxu0 0.0
  %3896 = vmatmul.mubr.f32.gmra.mrb[0].mxu0 %v3784
  %v3897 = vpop.f32.mrb[0].mxu0
  %v3898 = vadd.f32 0.0, %v3897
  %v3899 = vpop.f32.mrb[0].mxu0
  %3900 = vmatprep.mubr.f32.mxu0 0.0
  %3901 = vmatmul.mubr.f32.gmra.mrb[0].mxu0 %v3785
  %v3902 = vpop.f32.mrb[0].mxu0
  %v3903 = vadd.f32 0.0, %v3902
  %v3904 = vpop.f32.mrb[0].mxu0
  %3905 = vmatprep.mubr.f32.mxu0 0.0
  %3906 = vmatmul.mubr.f32.gmra.mrb[0].mxu0 %v3786
  %v3907 = vpop.f32.mrb[0].mxu0
  %v3908 = vadd.f32 0.0, %v3907
  %v3909 = vpop.f32.mrb[0].mxu0
  %3910 = vmatprep.mubr.f32.mxu0 0.0
  %3911 = vmatmul.mubr.f32.gmra.mrb[0].mxu0 %v3787
  %v3912 = vpop.f32.mrb[0].mxu0
  %v3913 = vadd.f32 0.0, %v3912
  %v3914 = vpop.f32.mrb[0].mxu0
  %3915 = vmatprep.mubr.f32.mxu0 0.0
  %3916 = vmatmul.mubr.f32.gmra.mrb[0].mxu0 %v3788
  %v3917 = vpop.f32.mrb[0].mxu0
  %v3918 = vadd.f32 0.0, %v3917
  %v3919 = vpop.f32.mrb[0].mxu0
  %3920 = vmatprep.mubr.f32.mxu0 0.0
  %3921 = vmatmul.mubr.f32.gmra.mrb[0].mxu0 %v3789
  %v3922 = vpop.f32.mrb[0].mxu0
  %v3923 = vadd.f32 0.0, %v3922
  %v3924 = vpop.f32.mrb[0].mxu0
  %3925 = vmatprep.mubr.f32.mxu0 0.0
  %3926 = vmatmul.mubr.f32.gmra.mrb[0].mxu0 %v3790
  %v3927 = vpop.f32.mrb[0].mxu0
  %v3928 = vadd.f32 0.0, %v3927
  %v3929 = vpop.f32.mrb[0].mxu0
  %3930 = vmatprep.mubr.f32.mxu0 0.0
  %3931 = vmatmul.mubr.f32.gmra.mrb[0].mxu0 %v3791
  %v3932 = vpop.f32.mrb[0].mxu0
  %v3933 = vadd.f32 0.0, %v3932
  %v3934 = vpop.f32.mrb[0].mxu0
  %3935 = vmatprep.mubr.f32.mxu0 0.0
  %3936 = vmatmul.mubr.f32.gmra.mrb[0].mxu0 %v3792
  %v3937 = vpop.f32.mrb[0].mxu0
  %v3938 = vadd.f32 0.0, %v3937
  %v3939 = vpop.f32.mrb[0].mxu0
  %3940 = vmatprep.mubr.f32.mxu0 0.0
  %3941 = vmatmul.mubr.f32.gmra.mrb[0].mxu0 %v3793
  %v3942 = vpop.f32.mrb[0].mxu0
  %v3943 = vadd.f32 0.0, %v3942
  %v3944 = vpop.f32.mrb[0].mxu0
  %3945 = vmatprep.mubr.f32.mxu0 0.0
  %3946 = vmatmul.mubr.f32.gmra.mrb[0].mxu0 %v3794
  %v3947 = vpop.f32.mrb[0].mxu0
  %v3948 = vadd.f32 0.0, %v3947
  %v3949 = vpop.f32.mrb[0].mxu0
  %3950 = vmatprep.mubr.f32.mxu0 0.0
  %3951 = vmatmul.mubr.f32.gmra.mrb[0].mxu0 %v3795
  %v3952 = vpop.f32.mrb[0].mxu0
  %v3953 = vadd.f32 0.0, %v3952
  %v3954 = vpop.f32.mrb[0].mxu0
  %3955 = vmatprep.mubr.f32.mxu0 0.0
  %3956 = vmatmul.mubr.f32.gmra.mrb[0].mxu0 %v3796
  %v3957 = vpop.f32.mrb[0].mxu0
  %v3958 = vadd.f32 0.0, %v3957
  %v3959 = vpop.f32.mrb[0].mxu0
  %3960 = vmatprep.mubr.f32.mxu0 0.0
  %3961 = vmatmul.mubr.f32.gmra.mrb[0].mxu0 %v3797
  %v3962 = vpop.f32.mrb[0].mxu0
  %v3963 = vadd.f32 0.0, %v3962
  %v3964 = vpop.f32.mrb[0].mxu0
  %3965 = vmatprep.mubr.f32.mxu0 0.0
  %3966 = vmatmul.mubr.f32.gmra.mrb[0].mxu0 %v3798
  %v3967 = vpop.f32.mrb[0].mxu0
  %v3968 = vadd.f32 0.0, %v3967
  %v3969 = vpop.f32.mrb[0].mxu0
  %3970 = vmatprep.mubr.f32.mxu0 0.0
  %3971 = vmatmul.mubr.f32.gmra.mrb[0].mxu0 %v3799
  %v3972 = vpop.f32.mrb[0].mxu0
  %v3973 = vadd.f32 0.0, %v3972
  %v3974 = vpop.f32.mrb[0].mxu0
  %3975 = vdwg.mxu0
  %v3976 = vadd.f32 %v3762, %v3883
  %v3977 = vadd.f32 %v3763, %v3888
  %v3978 = vadd.f32 %v3764, %v3893
  %v3979 = vadd.f32 %v3765, %v3898
  %v3980 = vadd.f32 %v3766, %v3903
  %v3981 = vadd.f32 %v3767, %v3908
  %v3982 = vadd.f32 %v3768, %v3913
  %v3983 = vadd.f32 %v3769, %v3918
  %v3984 = vadd.f32 %v3770, %v3923
  %v3985 = vadd.f32 %v3771, %v3928
  %v3986 = vadd.f32 %v3772, %v3933
  %v3987 = vadd.f32 %v3773, %v3938
  %v3988 = vadd.f32 %v3774, %v3943
  %v3989 = vadd.f32 %v3775, %v3948
  %v3990 = vadd.f32 %v3776, %v3953
  %v3991 = vadd.f32 %v3777, %v3958
  %v3992 = vadd.f32 %v3778, %v3963
  %v3993 = vadd.f32 %v3779, %v3968
  %v3994 = vadd.f32 %v3780, %v3973
  %v3995 = vld [vmem:[%s4 + $0x1] sm:$0x1]
  %v3996 = vlaneseq
  %v3997 = vshrl.u32 %v3996, 7
  %v3998 = vsub.s32 0, %v3997
  %v3999 = vrot.slane %v3995, %v3998
  %v4000 = vadd.f32 %v3976, %v3999
  %v4001 = vadd.f32 %v3977, %v3999
  %v4002 = vadd.f32 %v3978, %v3999
  %v4003 = vadd.f32 %v3979, %v3999
  %v4004 = vadd.f32 %v3980, %v3999
  %v4005 = vadd.f32 %v3981, %v3999
  %v4006 = vadd.f32 %v3982, %v3999
  %v4007 = vadd.f32 %v3983, %v3999
  %v4008 = vadd.f32 %v3984, %v3999
  %v4009 = vadd.f32 %v3985, %v3999
  %v4010 = vadd.f32 %v3986, %v3999
  %v4011 = vadd.f32 %v3987, %v3999
  %v4012 = vadd.f32 %v3988, %v3999
  %v4013 = vadd.f32 %v3989, %v3999
  %v4014 = vadd.f32 %v3990, %v3999
  %v4015 = vadd.f32 %v3991, %v3999
  %v4016 = vadd.f32 %v3992, %v3999
  %v4017 = vadd.f32 %v3993, %v3999
  %v4018 = vadd.f32 %v3994, %v3999
  %v4019 = vld [vmem:[%s0 + $0xa] sm:$0xff]
  %v4020 = vld [vmem:[%s0 + $0x12] sm:$0xff]
  %v4021 = vld [vmem:[%s0 + $0x1a] sm:$0xff]
  %v4022 = vld [vmem:[%s0 + $0x22] sm:$0xff]
  %v4023 = vld [vmem:[%s0 + $0x2a] sm:$0xff]
  %v4024 = vld [vmem:[%s0 + $0x32] sm:$0xff]
  %v4025 = vld [vmem:[%s0 + $0x3a] sm:$0xff]
  %v4026 = vld [vmem:[%s0 + $0x42] sm:$0xff]
  %v4027 = vld [vmem:[%s0 + $0x4a] sm:$0xff]
  %v4028 = vld [vmem:[%s0 + $0x52] sm:$0xff]
  %v4029 = vld [vmem:[%s0 + $0x5a] sm:$0xff]
  %v4030 = vld [vmem:[%s0 + $0x62] sm:$0xff]
  %v4031 = vld [vmem:[%s0 + $0x6a] sm:$0xff]
  %v4032 = vld [vmem:[%s0 + $0x72] sm:$0xff]
  %v4033 = vld [vmem:[%s0 + $0x7a] sm:$0xff]
  %v4034 = vld [vmem:[%s0 + $0x82] sm:$0xff]
  %v4035 = vld [vmem:[%s0 + $0x8a] sm:$0xff]
  %v4036 = vld [vmem:[%s0 + $0x92] sm:$0xff]
  %v4037 = vld [vmem:[%s0 + $0x9a] sm:$0xff]
  %v4038 = vadd.f32 %v4000, %v4019
  %v4039 = vadd.f32 %v4001, %v4020
  %v4040 = vadd.f32 %v4002, %v4021
  %v4041 = vadd.f32 %v4003, %v4022
  %v4042 = vadd.f32 %v4004, %v4023
  %v4043 = vadd.f32 %v4005, %v4024
  %v4044 = vadd.f32 %v4006, %v4025
  %v4045 = vadd.f32 %v4007, %v4026
  %v4046 = vadd.f32 %v4008, %v4027
  %v4047 = vadd.f32 %v4009, %v4028
  %v4048 = vadd.f32 %v4010, %v4029
  %v4049 = vadd.f32 %v4011, %v4030
  %v4050 = vadd.f32 %v4012, %v4031
  %v4051 = vadd.f32 %v4013, %v4032
  %v4052 = vadd.f32 %v4014, %v4033
  %v4053 = vadd.f32 %v4015, %v4034
  %v4054 = vadd.f32 %v4016, %v4035
  %v4055 = vadd.f32 %v4017, %v4036
  %v4056 = vadd.f32 %v4018, %v4037
  %v4057 = vmax.f32 %v4038, 0.0
  %v4058 = vmax.f32 %v4039, 0.0
  %v4059 = vmax.f32 %v4040, 0.0
  %v4060 = vmax.f32 %v4041, 0.0
  %v4061 = vmax.f32 %v4042, 0.0
  %v4062 = vmax.f32 %v4043, 0.0
  %v4063 = vmax.f32 %v4044, 0.0
  %v4064 = vmax.f32 %v4045, 0.0
  %v4065 = vmax.f32 %v4046, 0.0
  %v4066 = vmax.f32 %v4047, 0.0
  %v4067 = vmax.f32 %v4048, 0.0
  %v4068 = vmax.f32 %v4049, 0.0
  %v4069 = vmax.f32 %v4050, 0.0
  %v4070 = vmax.f32 %v4051, 0.0
  %v4071 = vmax.f32 %v4052, 0.0
  %v4072 = vmax.f32 %v4053, 0.0
  %v4073 = vmax.f32 %v4054, 0.0
  %v4074 = vmax.f32 %v4055, 0.0
  %v4075 = vmax.f32 %v4056, 0.0
  %4076 = vst [vmem:[%s5] sm:$0xff] %v4057
  %4077 = vst [vmem:[%s5 + $0x8] sm:$0xff] %v4058
  %4078 = vst [vmem:[%s5 + $0x10] sm:$0xff] %v4059
  %4079 = vst [vmem:[%s5 + $0x18] sm:$0xff] %v4060
  %4080 = vst [vmem:[%s5 + $0x20] sm:$0xff] %v4061
  %4081 = vst [vmem:[%s5 + $0x28] sm:$0xff] %v4062
  %4082 = vst [vmem:[%s5 + $0x30] sm:$0xff] %v4063
  %4083 = vst [vmem:[%s5 + $0x38] sm:$0xff] %v4064
  %4084 = vst [vmem:[%s5 + $0x40] sm:$0xff] %v4065
  %4085 = vst [vmem:[%s5 + $0x48] sm:$0xff] %v4066
  %4086 = vst [vmem:[%s5 + $0x50] sm:$0xff] %v4067
  %4087 = vst [vmem:[%s5 + $0x58] sm:$0xff] %v4068
  %4088 = vst [vmem:[%s5 + $0x60] sm:$0xff] %v4069
  %4089 = vst [vmem:[%s5 + $0x68] sm:$0xff] %v4070
  %4090 = vst [vmem:[%s5 + $0x70] sm:$0xff] %v4071
  %4091 = vst [vmem:[%s5 + $0x78] sm:$0xff] %v4072
  %4092 = vst [vmem:[%s5 + $0x80] sm:$0xff] %v4073
  %4093 = vst [vmem:[%s5 + $0x88] sm:$0xff] %v4074
  %4094 = vst [vmem:[%s5 + $0x90] sm:$0xff] %v4075
  // Predicated region
  $region22: #{resblock_pallas.1} parent=0 // pred_check
    _
  $region23: #{resblock_pallas.1} parent=0 // pred_check_branch
    %4096 = sbr.rel (0) target = $region25
  $region24: #{resblock_pallas.1} parent=0 // pred_region
    _
  $region25: #{resblock_pallas.1} parent=0 // pred_fallthru
    _
  // Predicated region
  $region26: #{resblock_pallas.1} parent=0 // pred_check
    _
  $region27: #{resblock_pallas.1} parent=0 // pred_check_branch
    %4098 = sbr.rel (0) target = $region29
  $region28: #{resblock_pallas.1} parent=0 // pred_region
    _
  $region29: #{resblock_pallas.1} parent=0 // pred_fallthru
    _

</llo_original>
